<compile_context>
chip_gen: v7x
topology: tpu7x:2x2x1
jax: 0.10.0
libtpu: 0.0.40
codegen_flags: <defaults>
</compile_context>

<pallas_src>
import functools

import numpy as np
import jax
import jax.numpy as jnp
from jax import lax
from jax.experimental import pallas as pl
from jax.experimental.pallas import tpu as pltpu

WS = 11                       # window_size (module default)
C2 = (0.03 * 255.0) ** 2
EPS = float(np.spacing(1.0))  # np.spacing(1)


# ----------------------------------------------------------------------------- helpers
def gaussian_taps(window_size, sigma):
    x = np.arange(window_size, dtype=np.float64)
    g = np.exp(-((x - window_size // 2) ** 2) / (2.0 * sigma ** 2))
    g = g / g.sum()
    return g.astype(np.float32)


def band_matrix(taps, size):
    """(size, size) matrix B such that (a @ B) == 'same' 1-D conv of a's rows by taps."""
    ws = len(taps)
    pad = ws // 2
    B = np.zeros((size, size), np.float32)
    for d in range(-pad, pad + 1):
        t = float(taps[d + pad])
        js = np.arange(max(0, -d), min(size, size - d))
        B[js + d, js] = t
    return B


def _vconv_box(a, ws):
    """All-ones 'same' conv of odd length ws along sublanes: tripling roll tree."""
    size = a.shape[0]
    pad = ws // 2
    acc = a
    cur = 1
    while cur * 3 <= ws:
        acc = (acc
               + pltpu.roll(acc, shift=cur % size, axis=0)
               + pltpu.roll(acc, shift=(-cur) % size, axis=0))
        cur *= 3
    for d in range(cur // 2 + 1, pad + 1):
        acc = (acc
               + pltpu.roll(a, shift=d % size, axis=0)
               + pltpu.roll(a, shift=(-d) % size, axis=0))
    return acc


def _vconv_taps(a, taps):
    """Symmetric-tap 'same' conv along sublanes via roll pairs (sign-agnostic)."""
    size = a.shape[0]
    pad = len(taps) // 2
    acc = float(taps[pad]) * a
    for s in range(1, pad + 1):
        t = float(taps[pad + s])
        pair = (pltpu.roll(a, shift=s % size, axis=0)
                + pltpu.roll(a, shift=(-s) % size, axis=0))
        acc = acc + (pair if t == 1.0 else t * pair)
    return acc


# ----------------------------------------------------------------------------- kernel
def _mef_ssim_kernel(x_ref, y_ref, boxb_ref, gaussb_ref, out_ref, g_scr, *,
                     n_ch, h, w, hp, wp, pad, ws, gauss_taps):
    X = x_ref[...]            # (n_ch*hp, wp)  channel-packed, zero margins
    Y = y_ref[...]            # (hp, wp)       reference image, zero margins
    Bbox = boxb_ref[...]      # (wp, wp)       all-ones band matrix
    Bg = gaussb_ref[...]      # (wp, wp)       Gaussian band matrix

    # ---- validity masks (True on real image pixels) ----
    rows_c = lax.broadcasted_iota(jnp.int32, (n_ch * hp, wp), 0)
    cols_c = lax.broadcasted_iota(jnp.int32, (n_ch * hp, wp), 1)
    colv = (cols_c >= pad) & (cols_c < pad + w)
    rowv = (rows_c >= pad) & (rows_c < pad + h)
    for cc in range(1, n_ch):
        base = cc * hp
        rowv = rowv | ((rows_c >= base + pad) & (rows_c < base + pad + h))
    mask_c = rowv & colv

    rows_1 = lax.broadcasted_iota(jnp.int32, (hp, wp), 0)
    cols_1 = lax.broadcasted_iota(jnp.int32, (hp, wp), 1)
    mask_1 = ((rows_1 >= pad) & (rows_1 < pad + h) &
              (cols_1 >= pad) & (cols_1 < pad + w))

    # ---- separable 'same' conv: horizontal pass on MXU, vertical pass on XLU ----
    def box_conv(a, mask=None):
        am = a if mask is None else jnp.where(mask, a, 0.0)
        th = jnp.dot(am, Bbox, preferred_element_type=jnp.float32)
        return _vconv_box(th, ws)

    def gauss_conv(a, mask=None):
        am = a if mask is None else jnp.where(mask, a, 0.0)
        th = jnp.dot(am, Bg, preferred_element_type=jnp.float32)
        return _vconv_taps(th, gauss_taps)

    # ---- stage 1: per-channel local mean / centered signal / local norm ----
    inv_ws2 = 1.0 / float(ws * ws)
    mu = box_conv(X) * inv_ws2                          # X margins are exact zeros
    xh = X - mu                                         # x_hat
    xn = jnp.sqrt(box_conv(xh * xh, mask_c)) + 0.001    # ||x_hat||

    # ---- channel reductions (slices are sublane-aligned: hp % 8 == 0) ----
    c_hat = xn[0:hp]
    sum_xh = xh[0:hp]
    sum_norm = xn[0:hp]
    for cc in range(1, n_ch):
        sl = slice(cc * hp, (cc + 1) * hp)
        c_hat = jnp.maximum(c_hat, xn[sl])
        sum_xh = sum_xh + xh[sl]
        sum_norm = sum_norm + xn[sl]

    # ---- consistency map R and exponent p ----
    tmp1 = sum_xh * sum_xh
    R = (jnp.sqrt(box_conv(tmp1, mask_1)) + EPS + EPS) / (sum_norm + EPS)
    R = jnp.where(R > 1.0, 1.0 - EPS, R)
    R = jnp.where(R < 0.0, EPS, R)
    ang = R * (np.pi / 2.0)
    # Exact divide on purpose: an error in p is amplified by exp(p*log(xn)) below.
    p = jnp.sin(ang) / jnp.cos(ang)                     # tan(R * pi / 2)
    p = jnp.where(p > 10.0, 10.0, p)

    # ---- p-weighted structure average s_hat_one ----
    log_xn = jnp.log(xn)                                # xn >= 0.001 everywhere
    s_all = xh * pl.reciprocal(xn, approx=True)         # EUP
    num = jnp.zeros((hp, wp), jnp.float32)
    den = jnp.zeros((hp, wp), jnp.float32)
    for cc in range(n_ch):
        sl = slice(cc * hp, (cc + 1) * hp)
        pw = jnp.exp(p * log_xn[sl]) + EPS              # xn^p + eps
        num = num + pw * s_all[sl]
        den = den + pw
    s_hat_one = num * pl.reciprocal(den, approx=True)   # EUP, den >= n_ch*EPS

    # ---- normalize structure and build x_hat_two (masked at creation) ----
    d = box_conv(s_hat_one * s_hat_one, mask_1)
    s_hat_two = s_hat_one * lax.rsqrt(d)
    x2 = jnp.where(mask_1, c_hat * s_hat_two, 0.0)

    # ---- Gaussian-window SSIM statistics: one batched 5-plane conv ----
    g_scr[0 * hp:1 * hp, :] = x2
    g_scr[1 * hp:2 * hp, :] = Y
    g_scr[2 * hp:3 * hp, :] = x2 * x2
    g_scr[3 * hp:4 * hp, :] = Y * Y
    g_scr[4 * hp:5 * hp, :] = x2 * Y
    Gc = gauss_conv(g_scr[...])                          # inputs already zero in margins

    mu_x2 = Gc[0 * hp:1 * hp]
    mu_y = Gc[1 * hp:2 * hp]
    sig_x2 = Gc[2 * hp:3 * hp] - mu_x2 * mu_x2
    sig_y = Gc[3 * hp:4 * hp] - mu_y * mu_y
    sig_xy = Gc[4 * hp:5 * hp] - mu_x2 * mu_y

    mef_map = (2.0 * sig_xy + C2) * pl.reciprocal(sig_x2 + sig_y + C2, approx=True)
    total = jnp.sum(jnp.where(mask_1, mef_map, 0.0))
    out_ref[0, 0] = total * (1.0 / float(h * w))


# ----------------------------------------------------------------------------- wrapper
def _vmem_limit_bytes(est_bytes):
    cap = 64 * 1024 * 1024
    try:
        cap = int(getattr(pltpu.get_tpu_info(), "vmem_capacity_bytes", cap))
    except Exception:
        pass
    hi = max(int(0.72 * cap), 16 * 1024 * 1024)          # ~46 MiB v7x, ~92 MiB v5e/v6e
    return int(min(max(2 * est_bytes, 32 * 1024 * 1024), hi))


def mef_ssim_pallas(img_seq, ref_img, window_size=WS):
    n, c, h, w = img_seq.shape
    assert n == 1, "MEF_SSIM (like the PyTorch original) only supports batch size 1"
    assert ref_img.shape == (1, 1, h, w)
    assert window_size % 2 == 1, "window_size must be odd"

    pad = window_size // 2
    hp = int(-(-(h + 2 * pad) // 8) * 8)       # per-channel padded height, mult of 8
    wp = int(-(-(w + 2 * pad) // 128) * 128)   # padded width, mult of 128 (lane-aligned)

    x = img_seq[0].astype(jnp.float32)         # (C, H, W)
    y = ref_img[0, 0].astype(jnp.float32)      # (H, W)
    # TODO(synk): for large images (esp. v5e HBM) feed unpadded arrays with
    # memory_space=pl.ANY and DMA rows into a pre-zeroed VMEM scratch instead of
    # this extra HBM round-trip pad/reshape; negligible at these sizes.
    xp = jnp.pad(x, ((0, 0), (pad, hp - h - pad), (pad, wp - w - pad)))
    xp = xp.reshape(c * hp, wp)                # channels packed along sublanes
    yp = jnp.pad(y, ((pad, hp - h - pad), (pad, wp - w - pad)))

    box = tuple(1.0 for _ in range(window_size))                 # unnormalized ones
    gauss = tuple(float(v) for v in gaussian_taps(window_size, 1.5))
    box_band = jnp.asarray(band_matrix(box, wp))                 # f32 on purpose
    gauss_band = jnp.asarray(band_matrix(gauss, wp))

    kernel = functools.partial(
        _mef_ssim_kernel, n_ch=c, h=h, w=w, hp=hp, wp=wp, pad=pad,
        ws=window_size, gauss_taps=gauss)

    # Rough live-plane budget: packed/ single planes + 5-plane scratch + band mats.
    est = 4 * hp * wp * (6 * c + 30) + 2 * 4 * wp * wp

    vspec = pl.BlockSpec(memory_space=pltpu.MemorySpace.VMEM)
    out = pl.pallas_call(
        kernel,
        out_shape=jax.ShapeDtypeStruct((1, 1), jnp.float32),
        in_specs=[vspec, vspec, vspec, vspec],
        out_specs=pl.BlockSpec(memory_space=pltpu.MemorySpace.SMEM),
        scratch_shapes=[pltpu.VMEM((5 * hp, wp), jnp.float32)],
        compiler_params=pltpu.CompilerParams(
            vmem_limit_bytes=_vmem_limit_bytes(est)),
    )(xp, yp, box_band, gauss_band)
    return out[0, 0]


# ----------------------------------------------------------------------------- pure-JAX reference
def ref_mef_ssim(img_seq, ref_img, window_size=WS):
    ws = window_size
    pad = ws // 2

    def dwconv(x, k2d):
        ch = x.shape[1]
        kern = jnp.broadcast_to(k2d[None, None], (ch, 1, ws, ws)).astype(jnp.float32)
        return lax.conv_general_dilated(
            x, kern, (1, 1), [(pad, pad), (pad, pad)],
            dimension_numbers=("NCHW", "OIHW", "NCHW"), feature_group_count=ch)

    ones = jnp.ones((ws, ws), jnp.float32)
    g = jnp.asarray(gaussian_taps(ws, 1.5))
    win = jnp.outer(g, g)

    mu_x = dwconv(img_seq, ones / (ws * ws))
    x_hat = img_seq - mu_x
    x_hat_norm = jnp.sqrt(dwconv(x_hat ** 2, ones)) + 0.001
    c_hat = jnp.max(x_hat_norm, axis=1)
    tmp1 = jnp.sum(x_hat, axis=1, keepdims=True) ** 2
    R = (jnp.sqrt(dwconv(tmp1, ones)) + EPS + EPS) / (jnp.sum(x_hat_norm, 1, keepdims=True) + EPS)
    R = jnp.where(R > 1.0, 1.0 - EPS, R)
    R = jnp.where(R < 0.0, EPS, R)
    p = jnp.tan(R * np.pi / 2.0)
    p = jnp.where(p > 10.0, 10.0, p)
    s = x_hat / x_hat_norm
    pw = x_hat_norm ** p + EPS
    s_hat_one = jnp.sum(pw * s, 1, keepdims=True) / jnp.sum(pw, 1, keepdims=True)
    s_hat_two = s_hat_one / jnp.sqrt(dwconv(s_hat_one ** 2, ones))
    x_hat_two = c_hat[:, None] * s_hat_two
    mu_x2 = dwconv(x_hat_two, win)
    mu_y = dwconv(ref_img, win)
    sig_x2 = dwconv(x_hat_two ** 2, win) - mu_x2 ** 2
    sig_y = dwconv(ref_img ** 2, win) - mu_y ** 2
    sig_xy = dwconv(x_hat_two * ref_img, win) - mu_x2 * mu_y
    return jnp.mean((2.0 * sig_xy + C2) / (sig_x2 + sig_y + C2))


# ----------------------------------------------------------------------------- main
if __name__ == "__main__":
    key = jax.random.PRNGKey(0)
    k1, k2 = jax.random.split(key)
    N, C, H, W = 1, 3, 32, 32
    # exposure sequence in [0, 255] and a correlated "reference" fused image
    img_seq = jax.random.uniform(k1, (N, C, H, W), jnp.float32) * 255.0
    ref_img = (jnp.mean(img_seq, axis=1, keepdims=True)
               + 8.0 * jax.random.normal(k2, (N, 1, H, W), jnp.float32))
    ref_img = jnp.clip(ref_img, 0.0, 255.0)

    out = jax.block_until_ready(mef_ssim_pallas(img_seq, ref_img))
    ref = jax.block_until_ready(ref_mef_ssim(img_seq, ref_img))

    assert np.isfinite(float(out)), "Pallas MEF-SSIM produced non-finite output"
    np.testing.assert_allclose(float(out), float(ref), rtol=2e-2, atol=2e-2)
    print("KERNEL_OK")
</pallas_src>

<mosaic_0001>
module attributes {stable_mosaic.version = 11 : i64} {
  func.func @_mef_ssim_kernel(%arg0: memref<144x128xf32, #tpu.memory_space<vmem>>, %arg1: memref<48x128xf32, #tpu.memory_space<vmem>>, %arg2: memref<128x128xf32, #tpu.memory_space<vmem>>, %arg3: memref<128x128xf32, #tpu.memory_space<vmem>>, %arg4: memref<1x1xf32, #tpu.memory_space<smem>>, %arg5: memref<240x128xf32, #tpu.memory_space<vmem>>) attributes {dimension_semantics = [], scalar_prefetch = 0 : i64, scratch_operands = 1 : i64, tpu.core_type = #tpu.core_type<tc>} {
    %c0 = arith.constant 0 : index
    %c0_0 = arith.constant 0 : index
    %0 = vector.load %arg0[%c0, %c0_0] : memref<144x128xf32, #tpu.memory_space<vmem>>, vector<144x128xf32>
    %c0_1 = arith.constant 0 : index
    %c0_2 = arith.constant 0 : index
    %1 = vector.load %arg1[%c0_1, %c0_2] : memref<48x128xf32, #tpu.memory_space<vmem>>, vector<48x128xf32>
    %c0_3 = arith.constant 0 : index
    %c0_4 = arith.constant 0 : index
    %2 = vector.load %arg2[%c0_3, %c0_4] : memref<128x128xf32, #tpu.memory_space<vmem>>, vector<128x128xf32>
    %c0_5 = arith.constant 0 : index
    %c0_6 = arith.constant 0 : index
    %3 = vector.load %arg3[%c0_5, %c0_6] : memref<128x128xf32, #tpu.memory_space<vmem>>, vector<128x128xf32>
    %4 = tpu.iota {dimensions = array<i32: 0>} : vector<144x128xi32>
    %5 = tpu.iota {dimensions = array<i32: 1>} : vector<144x128xi32>
    %c5_i32 = arith.constant 5 : i32
    %6 = vector.broadcast %c5_i32 : i32 to vector<144x128xi32>
    %7 = arith.cmpi sge, %5, %6 : vector<144x128xi32>
    %c37_i32 = arith.constant 37 : i32
    %8 = vector.broadcast %c37_i32 : i32 to vector<144x128xi32>
    %9 = arith.cmpi slt, %5, %8 : vector<144x128xi32>
    %10 = arith.andi %7, %9 : vector<144x128xi1>
    %c5_i32_7 = arith.constant 5 : i32
    %11 = vector.broadcast %c5_i32_7 : i32 to vector<144x128xi32>
    %12 = arith.cmpi sge, %4, %11 : vector<144x128xi32>
    %c37_i32_8 = arith.constant 37 : i32
    %13 = vector.broadcast %c37_i32_8 : i32 to vector<144x128xi32>
    %14 = arith.cmpi slt, %4, %13 : vector<144x128xi32>
    %15 = arith.andi %12, %14 : vector<144x128xi1>
    %c53_i32 = arith.constant 53 : i32
    %16 = vector.broadcast %c53_i32 : i32 to vector<144x128xi32>
    %17 = arith.cmpi sge, %4, %16 : vector<144x128xi32>
    %c85_i32 = arith.constant 85 : i32
    %18 = vector.broadcast %c85_i32 : i32 to vector<144x128xi32>
    %19 = arith.cmpi slt, %4, %18 : vector<144x128xi32>
    %20 = arith.andi %17, %19 : vector<144x128xi1>
    %21 = arith.ori %15, %20 : vector<144x128xi1>
    %c101_i32 = arith.constant 101 : i32
    %22 = vector.broadcast %c101_i32 : i32 to vector<144x128xi32>
    %23 = arith.cmpi sge, %4, %22 : vector<144x128xi32>
    %c133_i32 = arith.constant 133 : i32
    %24 = vector.broadcast %c133_i32 : i32 to vector<144x128xi32>
    %25 = arith.cmpi slt, %4, %24 : vector<144x128xi32>
    %26 = arith.andi %23, %25 : vector<144x128xi1>
    %27 = arith.ori %21, %26 : vector<144x128xi1>
    %28 = arith.andi %27, %10 : vector<144x128xi1>
    %29 = tpu.iota {dimensions = array<i32: 0>} : vector<48x128xi32>
    %30 = tpu.iota {dimensions = array<i32: 1>} : vector<48x128xi32>
    %c5_i32_9 = arith.constant 5 : i32
    %31 = vector.broadcast %c5_i32_9 : i32 to vector<48x128xi32>
    %32 = arith.cmpi sge, %29, %31 : vector<48x128xi32>
    %c37_i32_10 = arith.constant 37 : i32
    %33 = vector.broadcast %c37_i32_10 : i32 to vector<48x128xi32>
    %34 = arith.cmpi slt, %29, %33 : vector<48x128xi32>
    %35 = arith.andi %32, %34 : vector<48x128xi1>
    %c5_i32_11 = arith.constant 5 : i32
    %36 = vector.broadcast %c5_i32_11 : i32 to vector<48x128xi32>
    %37 = arith.cmpi sge, %30, %36 : vector<48x128xi32>
    %38 = arith.andi %35, %37 : vector<48x128xi1>
    %c37_i32_12 = arith.constant 37 : i32
    %39 = vector.broadcast %c37_i32_12 : i32 to vector<48x128xi32>
    %40 = arith.cmpi slt, %30, %39 : vector<48x128xi32>
    %41 = arith.andi %38, %40 : vector<48x128xi1>
    %cst = arith.constant dense<0.000000e+00> : vector<144x128xf32>
    %42 = tpu.matmul %0, %2, %cst {dimension_numbers = #tpu.dot_dimension_numbers<[1], [0], [0], [1], [0, 0, 1, 1], [], []>} : vector<144x128xf32>, vector<128x128xf32>, vector<144x128xf32> -> vector<144x128xf32>
    %c1_i32 = arith.constant 1 : i32
    %43 = tpu.dynamic_rotate %42 by %c1_i32 dim 0 : vector<144x128xf32>, i32 -> vector<144x128xf32>
    %44 = arith.addf %42, %43 : vector<144x128xf32>
    %c143_i32 = arith.constant 143 : i32
    %45 = tpu.dynamic_rotate %42 by %c143_i32 dim 0 : vector<144x128xf32>, i32 -> vector<144x128xf32>
    %46 = arith.addf %44, %45 : vector<144x128xf32>
    %c3_i32 = arith.constant 3 : i32
    %47 = tpu.dynamic_rotate %46 by %c3_i32 dim 0 : vector<144x128xf32>, i32 -> vector<144x128xf32>
    %48 = arith.addf %46, %47 : vector<144x128xf32>
    %c141_i32 = arith.constant 141 : i32
    %49 = tpu.dynamic_rotate %46 by %c141_i32 dim 0 : vector<144x128xf32>, i32 -> vector<144x128xf32>
    %50 = arith.addf %48, %49 : vector<144x128xf32>
    %c5_i32_13 = arith.constant 5 : i32
    %51 = tpu.dynamic_rotate %42 by %c5_i32_13 dim 0 : vector<144x128xf32>, i32 -> vector<144x128xf32>
    %52 = arith.addf %50, %51 : vector<144x128xf32>
    %c139_i32 = arith.constant 139 : i32
    %53 = tpu.dynamic_rotate %42 by %c139_i32 dim 0 : vector<144x128xf32>, i32 -> vector<144x128xf32>
    %54 = arith.addf %52, %53 : vector<144x128xf32>
    %cst_14 = arith.constant 0.00826446246 : f32
    %55 = vector.broadcast %cst_14 : f32 to vector<144x128xf32>
    %56 = arith.mulf %54, %55 : vector<144x128xf32>
    %57 = arith.subf %0, %56 : vector<144x128xf32>
    %58 = arith.mulf %57, %57 : vector<144x128xf32>
    %cst_15 = arith.constant 0.000000e+00 : f32
    %59 = vector.broadcast %cst_15 : f32 to vector<144x128xf32>
    %60 = arith.select %28, %58, %59 : vector<144x128xi1>, vector<144x128xf32>
    %cst_16 = arith.constant dense<0.000000e+00> : vector<144x128xf32>
    %61 = tpu.matmul %60, %2, %cst_16 {dimension_numbers = #tpu.dot_dimension_numbers<[1], [0], [0], [1], [0, 0, 1, 1], [], []>} : vector<144x128xf32>, vector<128x128xf32>, vector<144x128xf32> -> vector<144x128xf32>
    %c1_i32_17 = arith.constant 1 : i32
    %62 = tpu.dynamic_rotate %61 by %c1_i32_17 dim 0 : vector<144x128xf32>, i32 -> vector<144x128xf32>
    %63 = arith.addf %61, %62 : vector<144x128xf32>
    %c143_i32_18 = arith.constant 143 : i32
    %64 = tpu.dynamic_rotate %61 by %c143_i32_18 dim 0 : vector<144x128xf32>, i32 -> vector<144x128xf32>
    %65 = arith.addf %63, %64 : vector<144x128xf32>
    %c3_i32_19 = arith.constant 3 : i32
    %66 = tpu.dynamic_rotate %65 by %c3_i32_19 dim 0 : vector<144x128xf32>, i32 -> vector<144x128xf32>
    %67 = arith.addf %65, %66 : vector<144x128xf32>
    %c141_i32_20 = arith.constant 141 : i32
    %68 = tpu.dynamic_rotate %65 by %c141_i32_20 dim 0 : vector<144x128xf32>, i32 -> vector<144x128xf32>
    %69 = arith.addf %67, %68 : vector<144x128xf32>
    %c5_i32_21 = arith.constant 5 : i32
    %70 = tpu.dynamic_rotate %61 by %c5_i32_21 dim 0 : vector<144x128xf32>, i32 -> vector<144x128xf32>
    %71 = arith.addf %69, %70 : vector<144x128xf32>
    %c139_i32_22 = arith.constant 139 : i32
    %72 = tpu.dynamic_rotate %61 by %c139_i32_22 dim 0 : vector<144x128xf32>, i32 -> vector<144x128xf32>
    %73 = arith.addf %71, %72 : vector<144x128xf32>
    %74 = math.sqrt %73 : vector<144x128xf32>
    %cst_23 = arith.constant 1.000000e-03 : f32
    %75 = vector.broadcast %cst_23 : f32 to vector<144x128xf32>
    %76 = arith.addf %74, %75 : vector<144x128xf32>
    %77 = vector.extract_strided_slice %76 {offsets = [0, 0], sizes = [48, 128], strides = [1, 1]} : vector<144x128xf32> to vector<48x128xf32>
    %78 = vector.extract_strided_slice %57 {offsets = [0, 0], sizes = [48, 128], strides = [1, 1]} : vector<144x128xf32> to vector<48x128xf32>
    %79 = vector.extract_strided_slice %76 {offsets = [0, 0], sizes = [48, 128], strides = [1, 1]} : vector<144x128xf32> to vector<48x128xf32>
    %80 = vector.extract_strided_slice %76 {offsets = [48, 0], sizes = [48, 128], strides = [1, 1]} : vector<144x128xf32> to vector<48x128xf32>
    %81 = arith.maximumf %77, %80 : vector<48x128xf32>
    %82 = vector.extract_strided_slice %57 {offsets = [48, 0], sizes = [48, 128], strides = [1, 1]} : vector<144x128xf32> to vector<48x128xf32>
    %83 = arith.addf %78, %82 : vector<48x128xf32>
    %84 = vector.extract_strided_slice %76 {offsets = [48, 0], sizes = [48, 128], strides = [1, 1]} : vector<144x128xf32> to vector<48x128xf32>
    %85 = arith.addf %79, %84 : vector<48x128xf32>
    %86 = vector.extract_strided_slice %76 {offsets = [96, 0], sizes = [48, 128], strides = [1, 1]} : vector<144x128xf32> to vector<48x128xf32>
    %87 = arith.maximumf %81, %86 : vector<48x128xf32>
    %88 = vector.extract_strided_slice %57 {offsets = [96, 0], sizes = [48, 128], strides = [1, 1]} : vector<144x128xf32> to vector<48x128xf32>
    %89 = arith.addf %83, %88 : vector<48x128xf32>
    %90 = vector.extract_strided_slice %76 {offsets = [96, 0], sizes = [48, 128], strides = [1, 1]} : vector<144x128xf32> to vector<48x128xf32>
    %91 = arith.addf %85, %90 : vector<48x128xf32>
    %92 = arith.mulf %89, %89 : vector<48x128xf32>
    %cst_24 = arith.constant 0.000000e+00 : f32
    %93 = vector.broadcast %cst_24 : f32 to vector<48x128xf32>
    %94 = arith.select %41, %92, %93 : vector<48x128xi1>, vector<48x128xf32>
    %cst_25 = arith.constant dense<0.000000e+00> : vector<48x128xf32>
    %95 = tpu.matmul %94, %2, %cst_25 {dimension_numbers = #tpu.dot_dimension_numbers<[1], [0], [0], [1], [0, 0, 1, 1], [], []>} : vector<48x128xf32>, vector<128x128xf32>, vector<48x128xf32> -> vector<48x128xf32>
    %c1_i32_26 = arith.constant 1 : i32
    %96 = tpu.dynamic_rotate %95 by %c1_i32_26 dim 0 : vector<48x128xf32>, i32 -> vector<48x128xf32>
    %97 = arith.addf %95, %96 : vector<48x128xf32>
    %c47_i32 = arith.constant 47 : i32
    %98 = tpu.dynamic_rotate %95 by %c47_i32 dim 0 : vector<48x128xf32>, i32 -> vector<48x128xf32>
    %99 = arith.addf %97, %98 : vector<48x128xf32>
    %c3_i32_27 = arith.constant 3 : i32
    %100 = tpu.dynamic_rotate %99 by %c3_i32_27 dim 0 : vector<48x128xf32>, i32 -> vector<48x128xf32>
    %101 = arith.addf %99, %100 : vector<48x128xf32>
    %c45_i32 = arith.constant 45 : i32
    %102 = tpu.dynamic_rotate %99 by %c45_i32 dim 0 : vector<48x128xf32>, i32 -> vector<48x128xf32>
    %103 = arith.addf %101, %102 : vector<48x128xf32>
    %c5_i32_28 = arith.constant 5 : i32
    %104 = tpu.dynamic_rotate %95 by %c5_i32_28 dim 0 : vector<48x128xf32>, i32 -> vector<48x128xf32>
    %105 = arith.addf %103, %104 : vector<48x128xf32>
    %c43_i32 = arith.constant 43 : i32
    %106 = tpu.dynamic_rotate %95 by %c43_i32 dim 0 : vector<48x128xf32>, i32 -> vector<48x128xf32>
    %107 = arith.addf %105, %106 : vector<48x128xf32>
    %108 = math.sqrt %107 : vector<48x128xf32>
    %cst_29 = arith.constant 2.22044605E-16 : f32
    %109 = vector.broadcast %cst_29 : f32 to vector<48x128xf32>
    %110 = arith.addf %108, %109 : vector<48x128xf32>
    %cst_30 = arith.constant 2.22044605E-16 : f32
    %111 = vector.broadcast %cst_30 : f32 to vector<48x128xf32>
    %112 = arith.addf %110, %111 : vector<48x128xf32>
    %cst_31 = arith.constant 2.22044605E-16 : f32
    %113 = vector.broadcast %cst_31 : f32 to vector<48x128xf32>
    %114 = arith.addf %91, %113 : vector<48x128xf32>
    %115 = arith.divf %112, %114 : vector<48x128xf32>
    %cst_32 = arith.constant 1.000000e+00 : f32
    %116 = vector.broadcast %cst_32 : f32 to vector<48x128xf32>
    %117 = arith.cmpf ogt, %115, %116 : vector<48x128xf32>
    %cst_33 = arith.constant 1.000000e+00 : f32
    %118 = vector.broadcast %cst_33 : f32 to vector<48x128xf32>
    %119 = arith.select %117, %118, %115 : vector<48x128xi1>, vector<48x128xf32>
    %cst_34 = arith.constant 0.000000e+00 : f32
    %120 = vector.broadcast %cst_34 : f32 to vector<48x128xf32>
    %121 = arith.cmpf olt, %119, %120 : vector<48x128xf32>
    %cst_35 = arith.constant 2.22044605E-16 : f32
    %122 = vector.broadcast %cst_35 : f32 to vector<48x128xf32>
    %123 = arith.select %121, %122, %119 : vector<48x128xi1>, vector<48x128xf32>
    %cst_36 = arith.constant 1.57079637 : f32
    %124 = vector.broadcast %cst_36 : f32 to vector<48x128xf32>
    %125 = arith.mulf %123, %124 : vector<48x128xf32>
    %126 = math.sin %125 : vector<48x128xf32>
    %127 = math.cos %125 : vector<48x128xf32>
    %128 = arith.divf %126, %127 : vector<48x128xf32>
    %cst_37 = arith.constant 1.000000e+01 : f32
    %129 = vector.broadcast %cst_37 : f32 to vector<48x128xf32>
    %130 = arith.cmpf ogt, %128, %129 : vector<48x128xf32>
    %cst_38 = arith.constant 1.000000e+01 : f32
    %131 = vector.broadcast %cst_38 : f32 to vector<48x128xf32>
    %132 = arith.select %130, %131, %128 : vector<48x128xi1>, vector<48x128xf32>
    %133 = math.log %76 : vector<144x128xf32>
    %134 = tpu.reciprocal %76 {approx = true} : vector<144x128xf32> -> vector<144x128xf32>
    %135 = arith.mulf %57, %134 : vector<144x128xf32>
    %cst_39 = arith.constant 0.000000e+00 : f32
    %136 = vector.broadcast %cst_39 : f32 to vector<48x128xf32>
    %cst_40 = arith.constant 0.000000e+00 : f32
    %137 = vector.broadcast %cst_40 : f32 to vector<48x128xf32>
    %138 = vector.extract_strided_slice %133 {offsets = [0, 0], sizes = [48, 128], strides = [1, 1]} : vector<144x128xf32> to vector<48x128xf32>
    %139 = arith.mulf %132, %138 : vector<48x128xf32>
    %140 = math.exp %139 : vector<48x128xf32>
    %cst_41 = arith.constant 2.22044605E-16 : f32
    %141 = vector.broadcast %cst_41 : f32 to vector<48x128xf32>
    %142 = arith.addf %140, %141 : vector<48x128xf32>
    %143 = vector.extract_strided_slice %135 {offsets = [0, 0], sizes = [48, 128], strides = [1, 1]} : vector<144x128xf32> to vector<48x128xf32>
    %144 = arith.mulf %142, %143 : vector<48x128xf32>
    %145 = arith.addf %136, %144 : vector<48x128xf32>
    %146 = arith.addf %137, %142 : vector<48x128xf32>
    %147 = vector.extract_strided_slice %133 {offsets = [48, 0], sizes = [48, 128], strides = [1, 1]} : vector<144x128xf32> to vector<48x128xf32>
    %148 = arith.mulf %132, %147 : vector<48x128xf32>
    %149 = math.exp %148 : vector<48x128xf32>
    %cst_42 = arith.constant 2.22044605E-16 : f32
    %150 = vector.broadcast %cst_42 : f32 to vector<48x128xf32>
    %151 = arith.addf %149, %150 : vector<48x128xf32>
    %152 = vector.extract_strided_slice %135 {offsets = [48, 0], sizes = [48, 128], strides = [1, 1]} : vector<144x128xf32> to vector<48x128xf32>
    %153 = arith.mulf %151, %152 : vector<48x128xf32>
    %154 = arith.addf %145, %153 : vector<48x128xf32>
    %155 = arith.addf %146, %151 : vector<48x128xf32>
    %156 = vector.extract_strided_slice %133 {offsets = [96, 0], sizes = [48, 128], strides = [1, 1]} : vector<144x128xf32> to vector<48x128xf32>
    %157 = arith.mulf %132, %156 : vector<48x128xf32>
    %158 = math.exp %157 : vector<48x128xf32>
    %cst_43 = arith.constant 2.22044605E-16 : f32
    %159 = vector.broadcast %cst_43 : f32 to vector<48x128xf32>
    %160 = arith.addf %158, %159 : vector<48x128xf32>
    %161 = vector.extract_strided_slice %135 {offsets = [96, 0], sizes = [48, 128], strides = [1, 1]} : vector<144x128xf32> to vector<48x128xf32>
    %162 = arith.mulf %160, %161 : vector<48x128xf32>
    %163 = arith.addf %154, %162 : vector<48x128xf32>
    %164 = arith.addf %155, %160 : vector<48x128xf32>
    %165 = tpu.reciprocal %164 {approx = true} : vector<48x128xf32> -> vector<48x128xf32>
    %166 = arith.mulf %163, %165 : vector<48x128xf32>
    %167 = arith.mulf %166, %166 : vector<48x128xf32>
    %cst_44 = arith.constant 0.000000e+00 : f32
    %168 = vector.broadcast %cst_44 : f32 to vector<48x128xf32>
    %169 = arith.select %41, %167, %168 : vector<48x128xi1>, vector<48x128xf32>
    %cst_45 = arith.constant dense<0.000000e+00> : vector<48x128xf32>
    %170 = tpu.matmul %169, %2, %cst_45 {dimension_numbers = #tpu.dot_dimension_numbers<[1], [0], [0], [1], [0, 0, 1, 1], [], []>} : vector<48x128xf32>, vector<128x128xf32>, vector<48x128xf32> -> vector<48x128xf32>
    %c1_i32_46 = arith.constant 1 : i32
    %171 = tpu.dynamic_rotate %170 by %c1_i32_46 dim 0 : vector<48x128xf32>, i32 -> vector<48x128xf32>
    %172 = arith.addf %170, %171 : vector<48x128xf32>
    %c47_i32_47 = arith.constant 47 : i32
    %173 = tpu.dynamic_rotate %170 by %c47_i32_47 dim 0 : vector<48x128xf32>, i32 -> vector<48x128xf32>
    %174 = arith.addf %172, %173 : vector<48x128xf32>
    %c3_i32_48 = arith.constant 3 : i32
    %175 = tpu.dynamic_rotate %174 by %c3_i32_48 dim 0 : vector<48x128xf32>, i32 -> vector<48x128xf32>
    %176 = arith.addf %174, %175 : vector<48x128xf32>
    %c45_i32_49 = arith.constant 45 : i32
    %177 = tpu.dynamic_rotate %174 by %c45_i32_49 dim 0 : vector<48x128xf32>, i32 -> vector<48x128xf32>
    %178 = arith.addf %176, %177 : vector<48x128xf32>
    %c5_i32_50 = arith.constant 5 : i32
    %179 = tpu.dynamic_rotate %170 by %c5_i32_50 dim 0 : vector<48x128xf32>, i32 -> vector<48x128xf32>
    %180 = arith.addf %178, %179 : vector<48x128xf32>
    %c43_i32_51 = arith.constant 43 : i32
    %181 = tpu.dynamic_rotate %170 by %c43_i32_51 dim 0 : vector<48x128xf32>, i32 -> vector<48x128xf32>
    %182 = arith.addf %180, %181 : vector<48x128xf32>
    %183 = math.rsqrt %182 : vector<48x128xf32>
    %184 = arith.mulf %166, %183 : vector<48x128xf32>
    %185 = arith.mulf %87, %184 : vector<48x128xf32>
    %cst_52 = arith.constant 0.000000e+00 : f32
    %186 = vector.broadcast %cst_52 : f32 to vector<48x128xf32>
    %187 = arith.select %41, %185, %186 : vector<48x128xi1>, vector<48x128xf32>
    %c0_53 = arith.constant 0 : index
    %c0_54 = arith.constant 0 : index
    %188 = vector.load %arg5[%c0_53, %c0_54] : memref<240x128xf32, #tpu.memory_space<vmem>>, vector<48x128xf32>
    tpu.vector_store %arg5[%c0_53, %c0_54], %187 {strides = array<i32>} : memref<240x128xf32, #tpu.memory_space<vmem>>, vector<48x128xf32>,
    %c48 = arith.constant 48 : index
    %c0_55 = arith.constant 0 : index
    %189 = vector.load %arg5[%c48, %c0_55] : memref<240x128xf32, #tpu.memory_space<vmem>>, vector<48x128xf32>
    tpu.vector_store %arg5[%c48, %c0_55], %1 {strides = array<i32>} : memref<240x128xf32, #tpu.memory_space<vmem>>, vector<48x128xf32>,
    %190 = arith.mulf %187, %187 : vector<48x128xf32>
    %c96 = arith.constant 96 : index
    %c0_56 = arith.constant 0 : index
    %191 = vector.load %arg5[%c96, %c0_56] : memref<240x128xf32, #tpu.memory_space<vmem>>, vector<48x128xf32>
    tpu.vector_store %arg5[%c96, %c0_56], %190 {strides = array<i32>} : memref<240x128xf32, #tpu.memory_space<vmem>>, vector<48x128xf32>,
    %192 = arith.mulf %1, %1 : vector<48x128xf32>
    %c144 = arith.constant 144 : index
    %c0_57 = arith.constant 0 : index
    %193 = vector.load %arg5[%c144, %c0_57] : memref<240x128xf32, #tpu.memory_space<vmem>>, vector<48x128xf32>
    tpu.vector_store %arg5[%c144, %c0_57], %192 {strides = array<i32>} : memref<240x128xf32, #tpu.memory_space<vmem>>, vector<48x128xf32>,
    %194 = arith.mulf %187, %1 : vector<48x128xf32>
    %c192 = arith.constant 192 : index
    %c0_58 = arith.constant 0 : index
    %195 = vector.load %arg5[%c192, %c0_58] : memref<240x128xf32, #tpu.memory_space<vmem>>, vector<48x128xf32>
    tpu.vector_store %arg5[%c192, %c0_58], %194 {strides = array<i32>} : memref<240x128xf32, #tpu.memory_space<vmem>>, vector<48x128xf32>,
    %c0_59 = arith.constant 0 : index
    %c0_60 = arith.constant 0 : index
    %196 = vector.load %arg5[%c0_59, %c0_60] : memref<240x128xf32, #tpu.memory_space<vmem>>, vector<240x128xf32>
    %cst_61 = arith.constant dense<0.000000e+00> : vector<240x128xf32>
    %197 = tpu.matmul %196, %3, %cst_61 {dimension_numbers = #tpu.dot_dimension_numbers<[1], [0], [0], [1], [0, 0, 1, 1], [], []>} : vector<240x128xf32>, vector<128x128xf32>, vector<240x128xf32> -> vector<240x128xf32>
    %cst_62 = arith.constant 0.266011715 : f32
    %198 = vector.broadcast %cst_62 : f32 to vector<240x128xf32>
    %199 = arith.mulf %198, %197 : vector<240x128xf32>
    %c1_i32_63 = arith.constant 1 : i32
    %200 = tpu.dynamic_rotate %197 by %c1_i32_63 dim 0 : vector<240x128xf32>, i32 -> vector<240x128xf32>
    %c239_i32 = arith.constant 239 : i32
    %201 = tpu.dynamic_rotate %197 by %c239_i32 dim 0 : vector<240x128xf32>, i32 -> vector<240x128xf32>
    %202 = arith.addf %200, %201 : vector<240x128xf32>
    %cst_64 = arith.constant 0.213005543 : f32
    %203 = vector.broadcast %cst_64 : f32 to vector<240x128xf32>
    %204 = arith.mulf %203, %202 : vector<240x128xf32>
    %205 = arith.addf %199, %204 : vector<240x128xf32>
    %c2_i32 = arith.constant 2 : i32
    %206 = tpu.dynamic_rotate %197 by %c2_i32 dim 0 : vector<240x128xf32>, i32 -> vector<240x128xf32>
    %c238_i32 = arith.constant 238 : i32
    %207 = tpu.dynamic_rotate %197 by %c238_i32 dim 0 : vector<240x128xf32>, i32 -> vector<240x128xf32>
    %208 = arith.addf %206, %207 : vector<240x128xf32>
    %cst_65 = arith.constant 0.109360687 : f32
    %209 = vector.broadcast %cst_65 : f32 to vector<240x128xf32>
    %210 = arith.mulf %209, %208 : vector<240x128xf32>
    %211 = arith.addf %205, %210 : vector<240x128xf32>
    %c3_i32_66 = arith.constant 3 : i32
    %212 = tpu.dynamic_rotate %197 by %c3_i32_66 dim 0 : vector<240x128xf32>, i32 -> vector<240x128xf32>
    %c237_i32 = arith.constant 237 : i32
    %213 = tpu.dynamic_rotate %197 by %c237_i32 dim 0 : vector<240x128xf32>, i32 -> vector<240x128xf32>
    %214 = arith.addf %212, %213 : vector<240x128xf32>
    %cst_67 = arith.constant 0.0360007733 : f32
    %215 = vector.broadcast %cst_67 : f32 to vector<240x128xf32>
    %216 = arith.mulf %215, %214 : vector<240x128xf32>
    %217 = arith.addf %211, %216 : vector<240x128xf32>
    %c4_i32 = arith.constant 4 : i32
    %218 = tpu.dynamic_rotate %197 by %c4_i32 dim 0 : vector<240x128xf32>, i32 -> vector<240x128xf32>
    %c236_i32 = arith.constant 236 : i32
    %219 = tpu.dynamic_rotate %197 by %c236_i32 dim 0 : vector<240x128xf32>, i32 -> vector<240x128xf32>
    %220 = arith.addf %218, %219 : vector<240x128xf32>
    %cst_68 = arith.constant 0.00759875821 : f32
    %221 = vector.broadcast %cst_68 : f32 to vector<240x128xf32>
    %222 = arith.mulf %221, %220 : vector<240x128xf32>
    %223 = arith.addf %217, %222 : vector<240x128xf32>
    %c5_i32_69 = arith.constant 5 : i32
    %224 = tpu.dynamic_rotate %197 by %c5_i32_69 dim 0 : vector<240x128xf32>, i32 -> vector<240x128xf32>
    %c235_i32 = arith.constant 235 : i32
    %225 = tpu.dynamic_rotate %197 by %c235_i32 dim 0 : vector<240x128xf32>, i32 -> vector<240x128xf32>
    %226 = arith.addf %224, %225 : vector<240x128xf32>
    %cst_70 = arith.constant 0.00102838012 : f32
    %227 = vector.broadcast %cst_70 : f32 to vector<240x128xf32>
    %228 = arith.mulf %227, %226 : vector<240x128xf32>
    %229 = arith.addf %223, %228 : vector<240x128xf32>
    %230 = vector.extract_strided_slice %229 {offsets = [0, 0], sizes = [48, 128], strides = [1, 1]} : vector<240x128xf32> to vector<48x128xf32>
    %231 = vector.extract_strided_slice %229 {offsets = [48, 0], sizes = [48, 128], strides = [1, 1]} : vector<240x128xf32> to vector<48x128xf32>
    %232 = vector.extract_strided_slice %229 {offsets = [96, 0], sizes = [48, 128], strides = [1, 1]} : vector<240x128xf32> to vector<48x128xf32>
    %233 = arith.mulf %230, %230 : vector<48x128xf32>
    %234 = arith.subf %232, %233 : vector<48x128xf32>
    %235 = vector.extract_strided_slice %229 {offsets = [144, 0], sizes = [48, 128], strides = [1, 1]} : vector<240x128xf32> to vector<48x128xf32>
    %236 = arith.mulf %231, %231 : vector<48x128xf32>
    %237 = arith.subf %235, %236 : vector<48x128xf32>
    %238 = vector.extract_strided_slice %229 {offsets = [192, 0], sizes = [48, 128], strides = [1, 1]} : vector<240x128xf32> to vector<48x128xf32>
    %239 = arith.mulf %230, %231 : vector<48x128xf32>
    %240 = arith.subf %238, %239 : vector<48x128xf32>
    %cst_71 = arith.constant 2.000000e+00 : f32
    %241 = vector.broadcast %cst_71 : f32 to vector<48x128xf32>
    %242 = arith.mulf %241, %240 : vector<48x128xf32>
    %cst_72 = arith.constant 5.852250e+01 : f32
    %243 = vector.broadcast %cst_72 : f32 to vector<48x128xf32>
    %244 = arith.addf %242, %243 : vector<48x128xf32>
    %245 = arith.addf %234, %237 : vector<48x128xf32>
    %cst_73 = arith.constant 5.852250e+01 : f32
    %246 = vector.broadcast %cst_73 : f32 to vector<48x128xf32>
    %247 = arith.addf %245, %246 : vector<48x128xf32>
    %248 = tpu.reciprocal %247 {approx = true} : vector<48x128xf32> -> vector<48x128xf32>
    %249 = arith.mulf %244, %248 : vector<48x128xf32>
    %cst_74 = arith.constant 0.000000e+00 : f32
    %250 = vector.broadcast %cst_74 : f32 to vector<48x128xf32>
    %251 = arith.select %41, %249, %250 : vector<48x128xi1>, vector<48x128xf32>
    %252 = vector.shape_cast %251 : vector<48x128xf32> to vector<1x48x128xf32>
    %cst_75 = arith.constant dense<0.000000e+00> : vector<1xf32>
    %253 = vector.multi_reduction <add>, %252, %cst_75 [1, 2] : vector<1x48x128xf32> to vector<1xf32>
    %254 = vector.shape_cast %253 : vector<1xf32> to vector<1x1x1xf32>
    %255 = vector.extract %254[0, 0, 0] : f32 from vector<1x1x1xf32>
    %cst_76 = arith.constant 9.765625E-4 : f32
    %256 = arith.mulf %255, %cst_76 : f32
    %c0_77 = arith.constant 0 : index
    %c0_78 = arith.constant 0 : index
    %257 = memref.load %arg4[%c0_77, %c0_78] : memref<1x1xf32, #tpu.memory_space<smem>>
    memref.store %256, %arg4[%c0_77, %c0_78] : memref<1x1xf32, #tpu.memory_space<smem>>
    return
  }
}

</mosaic_0001>

<llo_original>
// kernel: tpu_custom_call.1
$region0: #{tpu_custom_call.1}
  #allocation0 [shape = 'u32[]', space=smem, size = 0x4, offset = 0x4, fixed_abs, tag = 'smem constant byte address 0x4 - core index']
  #allocation1 [shape = 'u32[144,128]{1,0:T(1,128)}', space=vmem, size = 0x12000, scoped, tag = 'internal scratch']
  #allocation2 [shape = 'f32[240,128]{1,0:T(8,128)}', space=vmem, size = 0x1e000, scoped, tag = 'scratch operand']
  %s0 = inlined_call_operand.hbm [shape: f32[144,128], index: 0, kind: input, shape index: {}]
  %s1 = inlined_call_operand.hbm [shape: f32[48,128], index: 1, kind: input, shape index: {}]
  %s2 = inlined_call_operand.hbm [shape: f32[128,128], index: 2, kind: input, shape index: {}]
  %s3 = inlined_call_operand.hbm [shape: f32[128,128], index: 3, kind: input, shape index: {}]
  %s4 = inlined_call_operand.hbm [shape: f32[1,1], index: 4, kind: output, shape index: {}]
  %s5 = sld [smem:[#allocation0]]
  $region42: #{tpu_custom_call.1} parent=0
    _
  %s7 = ssub.s32 1, %s5
  %s8 = scalar_select 0, %s7, %s5
  $region1: #{tpu_custom_call.1} parent=0
    #allocation3 [shape = 'u8[73728]{0}', space=vmem, size = 0x12000, scoped, tag = 'input window, operand 0, single buffered']
    #allocation4 [shape = 's32[1]{0}', space=sflag, size = 0x4, scoped, tag = 'scoped memory for tpu_custom_call.1']
    #allocation5 [shape = 's32[1]{0}', space=sflag, size = 0x4, scoped, tag = 'scoped memory for tpu_custom_call.1']
    #allocation6 [shape = 'u8[24576]{0}', space=vmem, size = 0x6000, scoped, tag = 'input window, operand 1, single buffered']
    #allocation7 [shape = 's32[1]{0}', space=sflag, size = 0x4, scoped, tag = 'scoped memory for tpu_custom_call.1']
    #allocation8 [shape = 'u8[65536]{0}', space=vmem, size = 0x10000, scoped, tag = 'input window, operand 2, single buffered']
    #allocation9 [shape = 'u8[65536]{0}', space=vmem, size = 0x10000, scoped, tag = 'input window, operand 3, single buffered']
    #allocation10 [shape = 's32[1]{0}', space=sflag, size = 0x4, scoped, tag = 'scoped memory for tpu_custom_call.1']
    #allocation11 [shape = 'u8[512]{0}', space=smem, size = 0x200, scoped, tag = 'output window, operand 0, single buffered']
    %9 = vsyncpa [#allocation4], 0
    %10 = vsyncpa [#allocation7], 0
    %11 = vsyncpa [#allocation10], 0
    %12 = vsyncpa [#allocation5], 0
    // Predicated region
    $region2: #{tpu_custom_call.1} parent=1 // pred_check
      _
    $region3: #{tpu_custom_call.1} parent=1 // pred_check_branch
      %14 = sbr.rel (0) target = $region5
    $region4: #{tpu_custom_call.1} parent=1 // pred_region
      %s16 = ssub.s32 2304, 2304
      %17 = vsyncadd [#allocation4], %s16
      %s18 = sshll.u32 [#allocation3], 4
      %s19 = int_to_ptr.vmem [resolvable:$true] %s18
      %24 = dma.hbm_to_vmem [thread:$0]  %s0, 2304, %s19, [#allocation4], 128, 128, 8
    $region5: #{tpu_custom_call.1} parent=1 // pred_fallthru
      _
    // Predicated region
    $region6: #{tpu_custom_call.1} parent=1 // pred_check
      _
    $region7: #{tpu_custom_call.1} parent=1 // pred_check_branch
      %26 = sbr.rel (0) target = $region9
    $region8: #{tpu_custom_call.1} parent=1 // pred_region
      %s28 = ssub.s32 768, 768
      %29 = vsyncadd [#allocation7], %s28
      %s30 = sshll.u32 [#allocation6], 4
      %s31 = int_to_ptr.vmem [resolvable:$true] %s30
      %36 = dma.hbm_to_vmem [thread:$0]  %s1, 768, %s31, [#allocation7], 128, 128, 8
    $region9: #{tpu_custom_call.1} parent=1 // pred_fallthru
      _
    // Predicated region
    $region10: #{tpu_custom_call.1} parent=1 // pred_check
      _
    $region11: #{tpu_custom_call.1} parent=1 // pred_check_branch
      %38 = sbr.rel (0) target = $region13
    $region12: #{tpu_custom_call.1} parent=1 // pred_region
      %s40 = ssub.s32 2048, 2048
      %41 = vsyncadd [#allocation7], %s40
      %s42 = sshll.u32 [#allocation8], 4
      %s43 = int_to_ptr.vmem [resolvable:$true] %s42
      %48 = dma.hbm_to_vmem [thread:$0]  %s2, 2048, %s43, [#allocation7], 128, 128, 8
    $region13: #{tpu_custom_call.1} parent=1 // pred_fallthru
      _
    // Predicated region
    $region14: #{tpu_custom_call.1} parent=1 // pred_check
      _
    $region15: #{tpu_custom_call.1} parent=1 // pred_check_branch
      %50 = sbr.rel (0) target = $region17
    $region16: #{tpu_custom_call.1} parent=1 // pred_region
      %s52 = ssub.s32 2048, 2048
      %53 = vsyncadd [#allocation10], %s52
      %s54 = sshll.u32 [#allocation9], 4
      %s55 = int_to_ptr.vmem [resolvable:$true] %s54
      %60 = dma.hbm_to_vmem [thread:$0]  %s3, 2048, %s55, [#allocation10], 128, 128, 8
    $region17: #{tpu_custom_call.1} parent=1 // pred_fallthru
      _
    // Predicated region
    $region18: #{tpu_custom_call.1} parent=1 // pred_check
      _
    $region19: #{tpu_custom_call.1} parent=1 // pred_check_branch
      %62 = sbr.rel (0) target = $region21
    $region20: #{tpu_custom_call.1} parent=1 // pred_region
      %63 = dma.done [#allocation4], 2304
    $region21: #{tpu_custom_call.1} parent=1 // pred_fallthru
      _
    // Predicated region
    $region22: #{tpu_custom_call.1} parent=1 // pred_check
      _
    $region23: #{tpu_custom_call.1} parent=1 // pred_check_branch
      %65 = sbr.rel (0) target = $region25
    $region24: #{tpu_custom_call.1} parent=1 // pred_region
      %66 = dma.done [#allocation7], 768
    $region25: #{tpu_custom_call.1} parent=1 // pred_fallthru
      _
    // Predicated region
    $region26: #{tpu_custom_call.1} parent=1 // pred_check
      _
    $region27: #{tpu_custom_call.1} parent=1 // pred_check_branch
      %68 = sbr.rel (0) target = $region29
    $region28: #{tpu_custom_call.1} parent=1 // pred_region
      %69 = dma.done [#allocation7], 2048
    $region29: #{tpu_custom_call.1} parent=1 // pred_fallthru
      _
    // Predicated region
    $region30: #{tpu_custom_call.1} parent=1 // pred_check
      _
    $region31: #{tpu_custom_call.1} parent=1 // pred_check_branch
      %71 = sbr.rel (0) target = $region33
    $region32: #{tpu_custom_call.1} parent=1 // pred_region
      %72 = dma.done [#allocation10], 2048
    $region33: #{tpu_custom_call.1} parent=1 // pred_fallthru
      _
    %v73 = vld [vmem:[#allocation3] sm:$0xff]
    %v74 = vld [vmem:[#allocation3 + $0x8] sm:$0xff]
    %v75 = vld [vmem:[#allocation3 + $0x10] sm:$0xff]
    %v76 = vld [vmem:[#allocation3 + $0x18] sm:$0xff]
    %v77 = vld [vmem:[#allocation3 + $0x20] sm:$0xff]
    %v78 = vld [vmem:[#allocation3 + $0x28] sm:$0xff]
    %v79 = vld [vmem:[#allocation3 + $0x30] sm:$0xff]
    %v80 = vld [vmem:[#allocation3 + $0x38] sm:$0xff]
    %v81 = vld [vmem:[#allocation3 + $0x40] sm:$0xff]
    %v82 = vld [vmem:[#allocation3 + $0x48] sm:$0xff]
    %v83 = vld [vmem:[#allocation3 + $0x50] sm:$0xff]
    %v84 = vld [vmem:[#allocation3 + $0x58] sm:$0xff]
    %v85 = vld [vmem:[#allocation3 + $0x60] sm:$0xff]
    %v86 = vld [vmem:[#allocation3 + $0x68] sm:$0xff]
    %v87 = vld [vmem:[#allocation3 + $0x70] sm:$0xff]
    %v88 = vld [vmem:[#allocation3 + $0x78] sm:$0xff]
    %v89 = vld [vmem:[#allocation3 + $0x80] sm:$0xff]
    %v90 = vld [vmem:[#allocation3 + $0x88] sm:$0xff]
    %v91 = vld [vmem:[#allocation6] sm:$0xff]
    %v92 = vld [vmem:[#allocation6 + $0x8] sm:$0xff]
    %v93 = vld [vmem:[#allocation6 + $0x10] sm:$0xff]
    %v94 = vld [vmem:[#allocation6 + $0x18] sm:$0xff]
    %v95 = vld [vmem:[#allocation6 + $0x20] sm:$0xff]
    %v96 = vld [vmem:[#allocation6 + $0x28] sm:$0xff]
    %v97 = vld [vmem:[#allocation8] sm:$0xff]
    %v98 = vld [vmem:[#allocation8 + $0x8] sm:$0xff]
    %v99 = vld [vmem:[#allocation8 + $0x10] sm:$0xff]
    %v100 = vld [vmem:[#allocation8 + $0x18] sm:$0xff]
    %v101 = vld [vmem:[#allocation8 + $0x20] sm:$0xff]
    %v102 = vld [vmem:[#allocation8 + $0x28] sm:$0xff]
    %v103 = vld [vmem:[#allocation8 + $0x30] sm:$0xff]
    %v104 = vld [vmem:[#allocation8 + $0x38] sm:$0xff]
    %v105 = vld [vmem:[#allocation8 + $0x40] sm:$0xff]
    %v106 = vld [vmem:[#allocation8 + $0x48] sm:$0xff]
    %v107 = vld [vmem:[#allocation8 + $0x50] sm:$0xff]
    %v108 = vld [vmem:[#allocation8 + $0x58] sm:$0xff]
    %v109 = vld [vmem:[#allocation8 + $0x60] sm:$0xff]
    %v110 = vld [vmem:[#allocation8 + $0x68] sm:$0xff]
    %v111 = vld [vmem:[#allocation8 + $0x70] sm:$0xff]
    %v112 = vld [vmem:[#allocation8 + $0x78] sm:$0xff]
    %v113 = vld [vmem:[#allocation9] sm:$0xff]
    %v114 = vld [vmem:[#allocation9 + $0x8] sm:$0xff]
    %v115 = vld [vmem:[#allocation9 + $0x10] sm:$0xff]
    %v116 = vld [vmem:[#allocation9 + $0x18] sm:$0xff]
    %v117 = vld [vmem:[#allocation9 + $0x20] sm:$0xff]
    %v118 = vld [vmem:[#allocation9 + $0x28] sm:$0xff]
    %v119 = vld [vmem:[#allocation9 + $0x30] sm:$0xff]
    %v120 = vld [vmem:[#allocation9 + $0x38] sm:$0xff]
    %v121 = vld [vmem:[#allocation9 + $0x40] sm:$0xff]
    %v122 = vld [vmem:[#allocation9 + $0x48] sm:$0xff]
    %v123 = vld [vmem:[#allocation9 + $0x50] sm:$0xff]
    %v124 = vld [vmem:[#allocation9 + $0x58] sm:$0xff]
    %v125 = vld [vmem:[#allocation9 + $0x60] sm:$0xff]
    %v126 = vld [vmem:[#allocation9 + $0x68] sm:$0xff]
    %v127 = vld [vmem:[#allocation9 + $0x70] sm:$0xff]
    %v128 = vld [vmem:[#allocation9 + $0x78] sm:$0xff]
    %v129 = vlaneseq
    %v130 = vshrl.u32 %v129, 7
    %v131 = vadd.s32 %v130, 8
    %v132 = vadd.s32 %v130, 16
    %v133 = vadd.s32 %v130, 24
    %v134 = vadd.s32 %v130, 32
    %v135 = vadd.s32 %v130, 40
    %v136 = vadd.s32 %v130, 48
    %v137 = vadd.s32 %v130, 56
    %v138 = vadd.s32 %v130, 64
    %v139 = vadd.s32 %v130, 72
    %v140 = vadd.s32 %v130, 80
    %v141 = vadd.s32 %v130, 88
    %v142 = vadd.s32 %v130, 96
    %v143 = vadd.s32 %v130, 104
    %v144 = vadd.s32 %v130, 112
    %v145 = vadd.s32 %v130, 120
    %v146 = vadd.s32 %v130, 128
    %v147 = vadd.s32 %v130, 136
    %v148 = vlaneseq
    %v149 = vand.u32 %v148, 127
    %vm150 = vcmp.ge.s32.totalorder %v149, 5
    %vm151 = vcmp.lt.s32.totalorder %v149, 37
    %vm152 = vmand %vm150, %vm151
    %vm153 = vcmp.ge.s32.totalorder %v130, 5
    %vm154 = vcmp.ge.s32.totalorder %v131, 5
    %vm155 = vcmp.ge.s32.totalorder %v132, 5
    %vm156 = vcmp.ge.s32.totalorder %v133, 5
    %vm157 = vcmp.ge.s32.totalorder %v134, 5
    %vm158 = vcmp.ge.s32.totalorder %v135, 5
    %vm159 = vcmp.ge.s32.totalorder %v136, 5
    %vm160 = vcmp.ge.s32.totalorder %v137, 5
    %vm161 = vcmp.ge.s32.totalorder %v138, 5
    %vm162 = vcmp.ge.s32.totalorder %v139, 5
    %vm163 = vcmp.ge.s32.totalorder %v140, 5
    %vm164 = vcmp.ge.s32.totalorder %v141, 5
    %vm165 = vcmp.ge.s32.totalorder %v142, 5
    %vm166 = vcmp.ge.s32.totalorder %v143, 5
    %vm167 = vcmp.ge.s32.totalorder %v144, 5
    %vm168 = vcmp.ge.s32.totalorder %v145, 5
    %vm169 = vcmp.ge.s32.totalorder %v146, 5
    %vm170 = vcmp.ge.s32.totalorder %v147, 5
    %vm171 = vcmp.lt.s32.totalorder %v130, 37
    %vm172 = vcmp.lt.s32.totalorder %v131, 37
    %vm173 = vcmp.lt.s32.totalorder %v132, 37
    %vm174 = vcmp.lt.s32.totalorder %v133, 37
    %vm175 = vcmp.lt.s32.totalorder %v134, 37
    %vm176 = vcmp.lt.s32.totalorder %v135, 37
    %vm177 = vcmp.lt.s32.totalorder %v136, 37
    %vm178 = vcmp.lt.s32.totalorder %v137, 37
    %vm179 = vcmp.lt.s32.totalorder %v138, 37
    %vm180 = vcmp.lt.s32.totalorder %v139, 37
    %vm181 = vcmp.lt.s32.totalorder %v140, 37
    %vm182 = vcmp.lt.s32.totalorder %v141, 37
    %vm183 = vcmp.lt.s32.totalorder %v142, 37
    %vm184 = vcmp.lt.s32.totalorder %v143, 37
    %vm185 = vcmp.lt.s32.totalorder %v144, 37
    %vm186 = vcmp.lt.s32.totalorder %v145, 37
    %vm187 = vcmp.lt.s32.totalorder %v146, 37
    %vm188 = vcmp.lt.s32.totalorder %v147, 37
    %vm189 = vmand %vm153, %vm171
    %vm190 = vmand %vm154, %vm172
    %vm191 = vmand %vm155, %vm173
    %vm192 = vmand %vm156, %vm174
    %vm193 = vmand %vm157, %vm175
    %vm194 = vmand %vm158, %vm176
    %vm195 = vmand %vm159, %vm177
    %vm196 = vmand %vm160, %vm178
    %vm197 = vmand %vm161, %vm179
    %vm198 = vmand %vm162, %vm180
    %vm199 = vmand %vm163, %vm181
    %vm200 = vmand %vm164, %vm182
    %vm201 = vmand %vm165, %vm183
    %vm202 = vmand %vm166, %vm184
    %vm203 = vmand %vm167, %vm185
    %vm204 = vmand %vm168, %vm186
    %vm205 = vmand %vm169, %vm187
    %vm206 = vmand %vm170, %vm188
    %vm207 = vcmp.ge.s32.totalorder %v130, 53
    %vm208 = vcmp.ge.s32.totalorder %v131, 53
    %vm209 = vcmp.ge.s32.totalorder %v132, 53
    %vm210 = vcmp.ge.s32.totalorder %v133, 53
    %vm211 = vcmp.ge.s32.totalorder %v134, 53
    %vm212 = vcmp.ge.s32.totalorder %v135, 53
    %vm213 = vcmp.ge.s32.totalorder %v136, 53
    %vm214 = vcmp.ge.s32.totalorder %v137, 53
    %vm215 = vcmp.ge.s32.totalorder %v138, 53
    %vm216 = vcmp.ge.s32.totalorder %v139, 53
    %vm217 = vcmp.ge.s32.totalorder %v140, 53
    %vm218 = vcmp.ge.s32.totalorder %v141, 53
    %vm219 = vcmp.ge.s32.totalorder %v142, 53
    %vm220 = vcmp.ge.s32.totalorder %v143, 53
    %vm221 = vcmp.ge.s32.totalorder %v144, 53
    %vm222 = vcmp.ge.s32.totalorder %v145, 53
    %vm223 = vcmp.ge.s32.totalorder %v146, 53
    %vm224 = vcmp.ge.s32.totalorder %v147, 53
    %vm225 = vcmp.lt.s32.totalorder %v130, 85
    %vm226 = vcmp.lt.s32.totalorder %v131, 85
    %vm227 = vcmp.lt.s32.totalorder %v132, 85
    %vm228 = vcmp.lt.s32.totalorder %v133, 85
    %vm229 = vcmp.lt.s32.totalorder %v134, 85
    %vm230 = vcmp.lt.s32.totalorder %v135, 85
    %vm231 = vcmp.lt.s32.totalorder %v136, 85
    %vm232 = vcmp.lt.s32.totalorder %v137, 85
    %vm233 = vcmp.lt.s32.totalorder %v138, 85
    %vm234 = vcmp.lt.s32.totalorder %v139, 85
    %vm235 = vcmp.lt.s32.totalorder %v140, 85
    %vm236 = vcmp.lt.s32.totalorder %v141, 85
    %vm237 = vcmp.lt.s32.totalorder %v142, 85
    %vm238 = vcmp.lt.s32.totalorder %v143, 85
    %vm239 = vcmp.lt.s32.totalorder %v144, 85
    %vm240 = vcmp.lt.s32.totalorder %v145, 85
    %vm241 = vcmp.lt.s32.totalorder %v146, 85
    %vm242 = vcmp.lt.s32.totalorder %v147, 85
    %vm243 = vmand %vm207, %vm225
    %vm244 = vmand %vm208, %vm226
    %vm245 = vmand %vm209, %vm227
    %vm246 = vmand %vm210, %vm228
    %vm247 = vmand %vm211, %vm229
    %vm248 = vmand %vm212, %vm230
    %vm249 = vmand %vm213, %vm231
    %vm250 = vmand %vm214, %vm232
    %vm251 = vmand %vm215, %vm233
    %vm252 = vmand %vm216, %vm234
    %vm253 = vmand %vm217, %vm235
    %vm254 = vmand %vm218, %vm236
    %vm255 = vmand %vm219, %vm237
    %vm256 = vmand %vm220, %vm238
    %vm257 = vmand %vm221, %vm239
    %vm258 = vmand %vm222, %vm240
    %vm259 = vmand %vm223, %vm241
    %vm260 = vmand %vm224, %vm242
    %vm261 = vmor %vm189, %vm243
    %vm262 = vmor %vm190, %vm244
    %vm263 = vmor %vm191, %vm245
    %vm264 = vmor %vm192, %vm246
    %vm265 = vmor %vm193, %vm247
    %vm266 = vmor %vm194, %vm248
    %vm267 = vmor %vm195, %vm249
    %vm268 = vmor %vm196, %vm250
    %vm269 = vmor %vm197, %vm251
    %vm270 = vmor %vm198, %vm252
    %vm271 = vmor %vm199, %vm253
    %vm272 = vmor %vm200, %vm254
    %vm273 = vmor %vm201, %vm255
    %vm274 = vmor %vm202, %vm256
    %vm275 = vmor %vm203, %vm257
    %vm276 = vmor %vm204, %vm258
    %vm277 = vmor %vm205, %vm259
    %vm278 = vmor %vm206, %vm260
    %vm279 = vcmp.ge.s32.totalorder %v130, 101
    %vm280 = vcmp.ge.s32.totalorder %v131, 101
    %vm281 = vcmp.ge.s32.totalorder %v132, 101
    %vm282 = vcmp.ge.s32.totalorder %v133, 101
    %vm283 = vcmp.ge.s32.totalorder %v134, 101
    %vm284 = vcmp.ge.s32.totalorder %v135, 101
    %vm285 = vcmp.ge.s32.totalorder %v136, 101
    %vm286 = vcmp.ge.s32.totalorder %v137, 101
    %vm287 = vcmp.ge.s32.totalorder %v138, 101
    %vm288 = vcmp.ge.s32.totalorder %v139, 101
    %vm289 = vcmp.ge.s32.totalorder %v140, 101
    %vm290 = vcmp.ge.s32.totalorder %v141, 101
    %vm291 = vcmp.ge.s32.totalorder %v142, 101
    %vm292 = vcmp.ge.s32.totalorder %v143, 101
    %vm293 = vcmp.ge.s32.totalorder %v144, 101
    %vm294 = vcmp.ge.s32.totalorder %v145, 101
    %vm295 = vcmp.ge.s32.totalorder %v146, 101
    %vm296 = vcmp.ge.s32.totalorder %v147, 101
    %vm297 = vcmp.lt.s32.totalorder %v130, 133
    %vm298 = vcmp.lt.s32.totalorder %v131, 133
    %vm299 = vcmp.lt.s32.totalorder %v132, 133
    %vm300 = vcmp.lt.s32.totalorder %v133, 133
    %vm301 = vcmp.lt.s32.totalorder %v134, 133
    %vm302 = vcmp.lt.s32.totalorder %v135, 133
    %vm303 = vcmp.lt.s32.totalorder %v136, 133
    %vm304 = vcmp.lt.s32.totalorder %v137, 133
    %vm305 = vcmp.lt.s32.totalorder %v138, 133
    %vm306 = vcmp.lt.s32.totalorder %v139, 133
    %vm307 = vcmp.lt.s32.totalorder %v140, 133
    %vm308 = vcmp.lt.s32.totalorder %v141, 133
    %vm309 = vcmp.lt.s32.totalorder %v142, 133
    %vm310 = vcmp.lt.s32.totalorder %v143, 133
    %vm311 = vcmp.lt.s32.totalorder %v144, 133
    %vm312 = vcmp.lt.s32.totalorder %v145, 133
    %vm313 = vcmp.lt.s32.totalorder %v146, 133
    %vm314 = vcmp.lt.s32.totalorder %v147, 133
    %vm315 = vmand %vm279, %vm297
    %vm316 = vmand %vm280, %vm298
    %vm317 = vmand %vm281, %vm299
    %vm318 = vmand %vm282, %vm300
    %vm319 = vmand %vm283, %vm301
    %vm320 = vmand %vm284, %vm302
    %vm321 = vmand %vm285, %vm303
    %vm322 = vmand %vm286, %vm304
    %vm323 = vmand %vm287, %vm305
    %vm324 = vmand %vm288, %vm306
    %vm325 = vmand %vm289, %vm307
    %vm326 = vmand %vm290, %vm308
    %vm327 = vmand %vm291, %vm309
    %vm328 = vmand %vm292, %vm310
    %vm329 = vmand %vm293, %vm311
    %vm330 = vmand %vm294, %vm312
    %vm331 = vmand %vm295, %vm313
    %vm332 = vmand %vm296, %vm314
    %vm333 = vmor %vm261, %vm315
    %vm334 = vmor %vm262, %vm316
    %vm335 = vmor %vm263, %vm317
    %vm336 = vmor %vm264, %vm318
    %vm337 = vmor %vm265, %vm319
    %vm338 = vmor %vm266, %vm320
    %vm339 = vmor %vm267, %vm321
    %vm340 = vmor %vm268, %vm322
    %vm341 = vmor %vm269, %vm323
    %vm342 = vmor %vm270, %vm324
    %vm343 = vmor %vm271, %vm325
    %vm344 = vmor %vm272, %vm326
    %vm345 = vmor %vm273, %vm327
    %vm346 = vmor %vm274, %vm328
    %vm347 = vmor %vm275, %vm329
    %vm348 = vmor %vm276, %vm330
    %vm349 = vmor %vm277, %vm331
    %vm350 = vmor %vm278, %vm332
    %vm351 = vmand %vm333, %vm152
    %vm352 = vmand %vm334, %vm152
    %vm353 = vmand %vm335, %vm152
    %vm354 = vmand %vm336, %vm152
    %vm355 = vmand %vm337, %vm152
    %vm356 = vmand %vm338, %vm152
    %vm357 = vmand %vm339, %vm152
    %vm358 = vmand %vm340, %vm152
    %vm359 = vmand %vm341, %vm152
    %vm360 = vmand %vm342, %vm152
    %vm361 = vmand %vm343, %vm152
    %vm362 = vmand %vm344, %vm152
    %vm363 = vmand %vm345, %vm152
    %vm364 = vmand %vm346, %vm152
    %vm365 = vmand %vm347, %vm152
    %vm366 = vmand %vm348, %vm152
    %vm367 = vmand %vm349, %vm152
    %vm368 = vmand %vm350, %vm152
    %vm369 = vmand %vm189, %vm150
    %vm370 = vmand %vm190, %vm150
    %vm371 = vmand %vm191, %vm150
    %vm372 = vmand %vm192, %vm150
    %vm373 = vmand %vm193, %vm150
    %vm374 = vmand %vm194, %vm150
    %vm375 = vmand %vm369, %vm151
    %vm376 = vmand %vm370, %vm151
    %vm377 = vmand %vm371, %vm151
    %vm378 = vmand %vm372, %vm151
    %vm379 = vmand %vm373, %vm151
    %vm380 = vmand %vm374, %vm151
    %381 = vmatprep.subr.mxu0 0.0
    %382 = vmatpush1.msra.mxu0 %v97
    %383 = vmatprep.subr.mxu0 0.0
    %384 = vmatpush1.msra.mxu0 %v98
    %385 = vmatprep.subr.mxu0 0.0
    %386 = vmatpush1.msra.mxu0 %v99
    %387 = vmatprep.subr.mxu0 0.0
    %388 = vmatpush1.msra.mxu0 %v100
    %389 = vmatprep.subr.mxu0 0.0
    %390 = vmatpush1.msra.mxu0 %v101
    %391 = vmatprep.subr.mxu0 0.0
    %392 = vmatpush1.msra.mxu0 %v102
    %393 = vmatprep.subr.mxu0 0.0
    %394 = vmatpush1.msra.mxu0 %v103
    %395 = vmatprep.subr.mxu0 0.0
    %396 = vmatpush1.msra.mxu0 %v104
    %397 = vmatprep.subr.mxu0 0.0
    %398 = vmatpush1.msra.mxu0 %v105
    %399 = vmatprep.subr.mxu0 0.0
    %400 = vmatpush1.msra.mxu0 %v106
    %401 = vmatprep.subr.mxu0 0.0
    %402 = vmatpush1.msra.mxu0 %v107
    %403 = vmatprep.subr.mxu0 0.0
    %404 = vmatpush1.msra.mxu0 %v108
    %405 = vmatprep.subr.mxu0 0.0
    %406 = vmatpush1.msra.mxu0 %v109
    %407 = vmatprep.subr.mxu0 0.0
    %408 = vmatpush1.msra.mxu0 %v110
    %409 = vmatprep.subr.mxu0 0.0
    %410 = vmatpush1.msra.mxu0 %v111
    %411 = vmatprep.subr.mxu0 0.0
    %412 = vmatpush1.msra.mxu0 %v112
    %413 = vmatprep.subr.mxu0 0.0
    %414 = vmatpush1.msra.mxu0 0.0
    %415 = vmatprep.subr.mxu0 0.0
    %416 = vmatpush1.msra.mxu0 0.0
    %417 = vmatprep.subr.mxu0 0.0
    %418 = vmatpush1.msra.mxu0 0.0
    %419 = vmatprep.subr.mxu0 0.0
    %420 = vmatpush1.msra.mxu0 0.0
    %421 = vmatprep.subr.mxu0 0.0
    %422 = vmatpush1.msra.mxu0 0.0
    %423 = vmatprep.subr.mxu0 0.0
    %424 = vmatpush1.msra.mxu0 0.0
    %425 = vmatprep.subr.mxu0 0.0
    %426 = vmatpush1.msra.mxu0 0.0
    %427 = vmatprep.subr.mxu0 0.0
    %428 = vmatpush1.msra.mxu0 0.0
    %429 = vmatprep.subr.mxu0 0.0
    %430 = vmatpush1.msra.mxu0 0.0
    %431 = vmatprep.subr.mxu0 0.0
    %432 = vmatpush1.msra.mxu0 0.0
    %433 = vmatprep.subr.mxu0 0.0
    %434 = vmatpush1.msra.mxu0 0.0
    %435 = vmatprep.subr.mxu0 0.0
    %436 = vmatpush1.msra.mxu0 0.0
    %437 = vmatprep.subr.mxu0 0.0
    %438 = vmatpush1.msra.mxu0 0.0
    %439 = vmatprep.subr.mxu0 0.0
    %440 = vmatpush1.msra.mxu0 0.0
    %441 = vmatprep.subr.mxu0 0.0
    %442 = vmatpush1.msra.mxu0 0.0
    %443 = vmatprep.subr.mxu0 0.0
    %444 = vmatpush1.msra.mxu0 0.0
    %445 = vmatprep.mubr.f32.mxu0 0.0
    %446 = vmatmul.mubr.f32.gmra.mrb[0].mxu0 %v73
    %v447 = vpop.f32.mrb[0].mxu0
    %v448 = vadd.f32 0.0, %v447
    %v449 = vpop.f32.mrb[0].mxu0
    %450 = vmatprep.mubr.f32.mxu0 0.0
    %451 = vmatmul.mubr.f32.gmra.mrb[0].mxu0 %v74
    %v452 = vpop.f32.mrb[0].mxu0
    %v453 = vadd.f32 0.0, %v452
    %v454 = vpop.f32.mrb[0].mxu0
    %455 = vmatprep.mubr.f32.mxu0 0.0
    %456 = vmatmul.mubr.f32.gmra.mrb[0].mxu0 %v75
    %v457 = vpop.f32.mrb[0].mxu0
    %v458 = vadd.f32 0.0, %v457
    %v459 = vpop.f32.mrb[0].mxu0
    %460 = vmatprep.mubr.f32.mxu0 0.0
    %461 = vmatmul.mubr.f32.gmra.mrb[0].mxu0 %v76
    %v462 = vpop.f32.mrb[0].mxu0
    %v463 = vadd.f32 0.0, %v462
    %v464 = vpop.f32.mrb[0].mxu0
    %465 = vmatprep.mubr.f32.mxu0 0.0
    %466 = vmatmul.mubr.f32.gmra.mrb[0].mxu0 %v77
    %v467 = vpop.f32.mrb[0].mxu0
    %v468 = vadd.f32 0.0, %v467
    %v469 = vpop.f32.mrb[0].mxu0
    %470 = vmatprep.mubr.f32.mxu0 0.0
    %471 = vmatmul.mubr.f32.gmra.mrb[0].mxu0 %v78
    %v472 = vpop.f32.mrb[0].mxu0
    %v473 = vadd.f32 0.0, %v472
    %v474 = vpop.f32.mrb[0].mxu0
    %475 = vmatprep.mubr.f32.mxu0 0.0
    %476 = vmatmul.mubr.f32.gmra.mrb[0].mxu0 %v79
    %v477 = vpop.f32.mrb[0].mxu0
    %v478 = vadd.f32 0.0, %v477
    %v479 = vpop.f32.mrb[0].mxu0
    %480 = vmatprep.mubr.f32.mxu0 0.0
    %481 = vmatmul.mubr.f32.gmra.mrb[0].mxu0 %v80
    %v482 = vpop.f32.mrb[0].mxu0
    %v483 = vadd.f32 0.0, %v482
    %v484 = vpop.f32.mrb[0].mxu0
    %485 = vmatprep.mubr.f32.mxu0 0.0
    %486 = vmatmul.mubr.f32.gmra.mrb[0].mxu0 %v81
    %v487 = vpop.f32.mrb[0].mxu0
    %v488 = vadd.f32 0.0, %v487
    %v489 = vpop.f32.mrb[0].mxu0
    %490 = vmatprep.mubr.f32.mxu0 0.0
    %491 = vmatmul.mubr.f32.gmra.mrb[0].mxu0 %v82
    %v492 = vpop.f32.mrb[0].mxu0
    %v493 = vadd.f32 0.0, %v492
    %v494 = vpop.f32.mrb[0].mxu0
    %495 = vmatprep.mubr.f32.mxu0 0.0
    %496 = vmatmul.mubr.f32.gmra.mrb[0].mxu0 %v83
    %v497 = vpop.f32.mrb[0].mxu0
    %v498 = vadd.f32 0.0, %v497
    %v499 = vpop.f32.mrb[0].mxu0
    %500 = vmatprep.mubr.f32.mxu0 0.0
    %501 = vmatmul.mubr.f32.gmra.mrb[0].mxu0 %v84
    %v502 = vpop.f32.mrb[0].mxu0
    %v503 = vadd.f32 0.0, %v502
    %v504 = vpop.f32.mrb[0].mxu0
    %505 = vmatprep.mubr.f32.mxu0 0.0
    %506 = vmatmul.mubr.f32.gmra.mrb[0].mxu0 %v85
    %v507 = vpop.f32.mrb[0].mxu0
    %v508 = vadd.f32 0.0, %v507
    %v509 = vpop.f32.mrb[0].mxu0
    %510 = vmatprep.mubr.f32.mxu0 0.0
    %511 = vmatmul.mubr.f32.gmra.mrb[0].mxu0 %v86
    %v512 = vpop.f32.mrb[0].mxu0
    %v513 = vadd.f32 0.0, %v512
    %v514 = vpop.f32.mrb[0].mxu0
    %515 = vmatprep.mubr.f32.mxu0 0.0
    %516 = vmatmul.mubr.f32.gmra.mrb[0].mxu0 %v87
    %v517 = vpop.f32.mrb[0].mxu0
    %v518 = vadd.f32 0.0, %v517
    %v519 = vpop.f32.mrb[0].mxu0
    %520 = vmatprep.mubr.f32.mxu0 0.0
    %521 = vmatmul.mubr.f32.gmra.mrb[0].mxu0 %v88
    %v522 = vpop.f32.mrb[0].mxu0
    %v523 = vadd.f32 0.0, %v522
    %v524 = vpop.f32.mrb[0].mxu0
    %525 = vmatprep.mubr.f32.mxu0 0.0
    %526 = vmatmul.mubr.f32.gmra.mrb[0].mxu0 %v89
    %v527 = vpop.f32.mrb[0].mxu0
    %v528 = vadd.f32 0.0, %v527
    %v529 = vpop.f32.mrb[0].mxu0
    %530 = vmatprep.mubr.f32.mxu0 0.0
    %531 = vmatmul.mubr.f32.gmra.mrb[0].mxu0 %v90
    %v532 = vpop.f32.mrb[0].mxu0
    %v533 = vadd.f32 0.0, %v532
    %v534 = vpop.f32.mrb[0].mxu0
    %535 = vdwg.mxu0
    %v536 = vrot.slane %v448, 7
    %v537 = vrot.slane %v453, 7
    %v538 = vrot.slane %v458, 7
    %v539 = vrot.slane %v463, 7
    %v540 = vrot.slane %v468, 7
    %v541 = vrot.slane %v473, 7
    %v542 = vrot.slane %v478, 7
    %v543 = vrot.slane %v483, 7
    %v544 = vrot.slane %v488, 7
    %v545 = vrot.slane %v493, 7
    %v546 = vrot.slane %v498, 7
    %v547 = vrot.slane %v503, 7
    %v548 = vrot.slane %v508, 7
    %v549 = vrot.slane %v513, 7
    %v550 = vrot.slane %v518, 7
    %v551 = vrot.slane %v523, 7
    %v552 = vrot.slane %v528, 7
    %v553 = vrot.slane %v533, 7
    %vm554 = vcmp.lt.s32.totalorder %v130, 1
    %v555 = vsel %vm554, %v552, %v553
    %v556 = vsel %vm554, %v551, %v552
    %v557 = vsel %vm554, %v550, %v551
    %v558 = vsel %vm554, %v549, %v550
    %v559 = vsel %vm554, %v548, %v549
    %v560 = vsel %vm554, %v547, %v548
    %v561 = vsel %vm554, %v546, %v547
    %v562 = vsel %vm554, %v545, %v546
    %v563 = vsel %vm554, %v544, %v545
    %v564 = vsel %vm554, %v543, %v544
    %v565 = vsel %vm554, %v542, %v543
    %v566 = vsel %vm554, %v541, %v542
    %v567 = vsel %vm554, %v540, %v541
    %v568 = vsel %vm554, %v539, %v540
    %v569 = vsel %vm554, %v538, %v539
    %v570 = vsel %vm554, %v537, %v538
    %v571 = vsel %vm554, %v536, %v537
    %v572 = vsel %vm554, %v553, %v536
    %v573 = vadd.f32 %v448, %v572
    %v574 = vadd.f32 %v453, %v571
    %v575 = vadd.f32 %v458, %v570
    %v576 = vadd.f32 %v463, %v569
    %v577 = vadd.f32 %v468, %v568
    %v578 = vadd.f32 %v473, %v567
    %v579 = vadd.f32 %v478, %v566
    %v580 = vadd.f32 %v483, %v565
    %v581 = vadd.f32 %v488, %v564
    %v582 = vadd.f32 %v493, %v563
    %v583 = vadd.f32 %v498, %v562
    %v584 = vadd.f32 %v503, %v561
    %v585 = vadd.f32 %v508, %v560
    %v586 = vadd.f32 %v513, %v559
    %v587 = vadd.f32 %v518, %v558
    %v588 = vadd.f32 %v523, %v557
    %v589 = vadd.f32 %v528, %v556
    %v590 = vadd.f32 %v533, %v555
    %v591 = vrot.slane %v448, 1
    %v592 = vrot.slane %v453, 1
    %v593 = vrot.slane %v458, 1
    %v594 = vrot.slane %v463, 1
    %v595 = vrot.slane %v468, 1
    %v596 = vrot.slane %v473, 1
    %v597 = vrot.slane %v478, 1
    %v598 = vrot.slane %v483, 1
    %v599 = vrot.slane %v488, 1
    %v600 = vrot.slane %v493, 1
    %v601 = vrot.slane %v498, 1
    %v602 = vrot.slane %v503, 1
    %v603 = vrot.slane %v508, 1
    %v604 = vrot.slane %v513, 1
    %v605 = vrot.slane %v518, 1
    %v606 = vrot.slane %v523, 1
    %v607 = vrot.slane %v528, 1
    %v608 = vrot.slane %v533, 1
    %vm609 = vcmp.lt.s32.totalorder %v130, 7
    %v610 = vsel %vm609, %v607, %v608
    %v611 = vsel %vm609, %v606, %v607
    %v612 = vsel %vm609, %v605, %v606
    %v613 = vsel %vm609, %v604, %v605
    %v614 = vsel %vm609, %v603, %v604
    %v615 = vsel %vm609, %v602, %v603
    %v616 = vsel %vm609, %v601, %v602
    %v617 = vsel %vm609, %v600, %v601
    %v618 = vsel %vm609, %v599, %v600
    %v619 = vsel %vm609, %v598, %v599
    %v620 = vsel %vm609, %v597, %v598
    %v621 = vsel %vm609, %v596, %v597
    %v622 = vsel %vm609, %v595, %v596
    %v623 = vsel %vm609, %v594, %v595
    %v624 = vsel %vm609, %v593, %v594
    %v625 = vsel %vm609, %v592, %v593
    %v626 = vsel %vm609, %v591, %v592
    %v627 = vsel %vm609, %v608, %v591
    %v628 = vadd.f32 %v573, %v626
    %v629 = vadd.f32 %v574, %v625
    %v630 = vadd.f32 %v575, %v624
    %v631 = vadd.f32 %v576, %v623
    %v632 = vadd.f32 %v577, %v622
    %v633 = vadd.f32 %v578, %v621
    %v634 = vadd.f32 %v579, %v620
    %v635 = vadd.f32 %v580, %v619
    %v636 = vadd.f32 %v581, %v618
    %v637 = vadd.f32 %v582, %v617
    %v638 = vadd.f32 %v583, %v616
    %v639 = vadd.f32 %v584, %v615
    %v640 = vadd.f32 %v585, %v614
    %v641 = vadd.f32 %v586, %v613
    %v642 = vadd.f32 %v587, %v612
    %v643 = vadd.f32 %v588, %v611
    %v644 = vadd.f32 %v589, %v610
    %v645 = vadd.f32 %v590, %v627
    %v646 = vrot.slane %v628, 5
    %v647 = vrot.slane %v629, 5
    %v648 = vrot.slane %v630, 5
    %v649 = vrot.slane %v631, 5
    %v650 = vrot.slane %v632, 5
    %v651 = vrot.slane %v633, 5
    %v652 = vrot.slane %v634, 5
    %v653 = vrot.slane %v635, 5
    %v654 = vrot.slane %v636, 5
    %v655 = vrot.slane %v637, 5
    %v656 = vrot.slane %v638, 5
    %v657 = vrot.slane %v639, 5
    %v658 = vrot.slane %v640, 5
    %v659 = vrot.slane %v641, 5
    %v660 = vrot.slane %v642, 5
    %v661 = vrot.slane %v643, 5
    %v662 = vrot.slane %v644, 5
    %v663 = vrot.slane %v645, 5
    %vm664 = vcmp.lt.s32.totalorder %v130, 3
    %v665 = vsel %vm664, %v662, %v663
    %v666 = vsel %vm664, %v661, %v662
    %v667 = vsel %vm664, %v660, %v661
    %v668 = vsel %vm664, %v659, %v660
    %v669 = vsel %vm664, %v658, %v659
    %v670 = vsel %vm664, %v657, %v658
    %v671 = vsel %vm664, %v656, %v657
    %v672 = vsel %vm664, %v655, %v656
    %v673 = vsel %vm664, %v654, %v655
    %v674 = vsel %vm664, %v653, %v654
    %v675 = vsel %vm664, %v652, %v653
    %v676 = vsel %vm664, %v651, %v652
    %v677 = vsel %vm664, %v650, %v651
    %v678 = vsel %vm664, %v649, %v650
    %v679 = vsel %vm664, %v648, %v649
    %v680 = vsel %vm664, %v647, %v648
    %v681 = vsel %vm664, %v646, %v647
    %v682 = vsel %vm664, %v663, %v646
    %v683 = vadd.f32 %v628, %v682
    %v684 = vadd.f32 %v629, %v681
    %v685 = vadd.f32 %v630, %v680
    %v686 = vadd.f32 %v631, %v679
    %v687 = vadd.f32 %v632, %v678
    %v688 = vadd.f32 %v633, %v677
    %v689 = vadd.f32 %v634, %v676
    %v690 = vadd.f32 %v635, %v675
    %v691 = vadd.f32 %v636, %v674
    %v692 = vadd.f32 %v637, %v673
    %v693 = vadd.f32 %v638, %v672
    %v694 = vadd.f32 %v639, %v671
    %v695 = vadd.f32 %v640, %v670
    %v696 = vadd.f32 %v641, %v669
    %v697 = vadd.f32 %v642, %v668
    %v698 = vadd.f32 %v643, %v667
    %v699 = vadd.f32 %v644, %v666
    %v700 = vadd.f32 %v645, %v665
    %v701 = vrot.slane %v628, 3
    %v702 = vrot.slane %v629, 3
    %v703 = vrot.slane %v630, 3
    %v704 = vrot.slane %v631, 3
    %v705 = vrot.slane %v632, 3
    %v706 = vrot.slane %v633, 3
    %v707 = vrot.slane %v634, 3
    %v708 = vrot.slane %v635, 3
    %v709 = vrot.slane %v636, 3
    %v710 = vrot.slane %v637, 3
    %v711 = vrot.slane %v638, 3
    %v712 = vrot.slane %v639, 3
    %v713 = vrot.slane %v640, 3
    %v714 = vrot.slane %v641, 3
    %v715 = vrot.slane %v642, 3
    %v716 = vrot.slane %v643, 3
    %v717 = vrot.slane %v644, 3
    %v718 = vrot.slane %v645, 3
    %vm719 = vcmp.lt.s32.totalorder %v130, 5
    %v720 = vsel %vm719, %v717, %v718
    %v721 = vsel %vm719, %v716, %v717
    %v722 = vsel %vm719, %v715, %v716
    %v723 = vsel %vm719, %v714, %v715
    %v724 = vsel %vm719, %v713, %v714
    %v725 = vsel %vm719, %v712, %v713
    %v726 = vsel %vm719, %v711, %v712
    %v727 = vsel %vm719, %v710, %v711
    %v728 = vsel %vm719, %v709, %v710
    %v729 = vsel %vm719, %v708, %v709
    %v730 = vsel %vm719, %v707, %v708
    %v731 = vsel %vm719, %v706, %v707
    %v732 = vsel %vm719, %v705, %v706
    %v733 = vsel %vm719, %v704, %v705
    %v734 = vsel %vm719, %v703, %v704
    %v735 = vsel %vm719, %v702, %v703
    %v736 = vsel %vm719, %v701, %v702
    %v737 = vsel %vm719, %v718, %v701
    %v738 = vadd.f32 %v683, %v736
    %v739 = vadd.f32 %v684, %v735
    %v740 = vadd.f32 %v685, %v734
    %v741 = vadd.f32 %v686, %v733
    %v742 = vadd.f32 %v687, %v732
    %v743 = vadd.f32 %v688, %v731
    %v744 = vadd.f32 %v689, %v730
    %v745 = vadd.f32 %v690, %v729
    %v746 = vadd.f32 %v691, %v728
    %v747 = vadd.f32 %v692, %v727
    %v748 = vadd.f32 %v693, %v726
    %v749 = vadd.f32 %v694, %v725
    %v750 = vadd.f32 %v695, %v724
    %v751 = vadd.f32 %v696, %v723
    %v752 = vadd.f32 %v697, %v722
    %v753 = vadd.f32 %v698, %v721
    %v754 = vadd.f32 %v699, %v720
    %v755 = vadd.f32 %v700, %v737
    %v756 = vrot.slane %v448, 3
    %v757 = vrot.slane %v453, 3
    %v758 = vrot.slane %v458, 3
    %v759 = vrot.slane %v463, 3
    %v760 = vrot.slane %v468, 3
    %v761 = vrot.slane %v473, 3
    %v762 = vrot.slane %v478, 3
    %v763 = vrot.slane %v483, 3
    %v764 = vrot.slane %v488, 3
    %v765 = vrot.slane %v493, 3
    %v766 = vrot.slane %v498, 3
    %v767 = vrot.slane %v503, 3
    %v768 = vrot.slane %v508, 3
    %v769 = vrot.slane %v513, 3
    %v770 = vrot.slane %v518, 3
    %v771 = vrot.slane %v523, 3
    %v772 = vrot.slane %v528, 3
    %v773 = vrot.slane %v533, 3
    %v774 = vsel %vm719, %v772, %v773
    %v775 = vsel %vm719, %v771, %v772
    %v776 = vsel %vm719, %v770, %v771
    %v777 = vsel %vm719, %v769, %v770
    %v778 = vsel %vm719, %v768, %v769
    %v779 = vsel %vm719, %v767, %v768
    %v780 = vsel %vm719, %v766, %v767
    %v781 = vsel %vm719, %v765, %v766
    %v782 = vsel %vm719, %v764, %v765
    %v783 = vsel %vm719, %v763, %v764
    %v784 = vsel %vm719, %v762, %v763
    %v785 = vsel %vm719, %v761, %v762
    %v786 = vsel %vm719, %v760, %v761
    %v787 = vsel %vm719, %v759, %v760
    %v788 = vsel %vm719, %v758, %v759
    %v789 = vsel %vm719, %v757, %v758
    %v790 = vsel %vm719, %v756, %v757
    %v791 = vsel %vm719, %v773, %v756
    %v792 = vadd.f32 %v738, %v791
    %v793 = vadd.f32 %v739, %v790
    %v794 = vadd.f32 %v740, %v789
    %v795 = vadd.f32 %v741, %v788
    %v796 = vadd.f32 %v742, %v787
    %v797 = vadd.f32 %v743, %v786
    %v798 = vadd.f32 %v744, %v785
    %v799 = vadd.f32 %v745, %v784
    %v800 = vadd.f32 %v746, %v783
    %v801 = vadd.f32 %v747, %v782
    %v802 = vadd.f32 %v748, %v781
    %v803 = vadd.f32 %v749, %v780
    %v804 = vadd.f32 %v750, %v779
    %v805 = vadd.f32 %v751, %v778
    %v806 = vadd.f32 %v752, %v777
    %v807 = vadd.f32 %v753, %v776
    %v808 = vadd.f32 %v754, %v775
    %v809 = vadd.f32 %v755, %v774
    %v810 = vrot.slane %v448, 5
    %v811 = vrot.slane %v453, 5
    %v812 = vrot.slane %v458, 5
    %v813 = vrot.slane %v463, 5
    %v814 = vrot.slane %v468, 5
    %v815 = vrot.slane %v473, 5
    %v816 = vrot.slane %v478, 5
    %v817 = vrot.slane %v483, 5
    %v818 = vrot.slane %v488, 5
    %v819 = vrot.slane %v493, 5
    %v820 = vrot.slane %v498, 5
    %v821 = vrot.slane %v503, 5
    %v822 = vrot.slane %v508, 5
    %v823 = vrot.slane %v513, 5
    %v824 = vrot.slane %v518, 5
    %v825 = vrot.slane %v523, 5
    %v826 = vrot.slane %v528, 5
    %v827 = vrot.slane %v533, 5
    %v828 = vsel %vm664, %v826, %v827
    %v829 = vsel %vm664, %v825, %v826
    %v830 = vsel %vm664, %v824, %v825
    %v831 = vsel %vm664, %v823, %v824
    %v832 = vsel %vm664, %v822, %v823
    %v833 = vsel %vm664, %v821, %v822
    %v834 = vsel %vm664, %v820, %v821
    %v835 = vsel %vm664, %v819, %v820
    %v836 = vsel %vm664, %v818, %v819
    %v837 = vsel %vm664, %v817, %v818
    %v838 = vsel %vm664, %v816, %v817
    %v839 = vsel %vm664, %v815, %v816
    %v840 = vsel %vm664, %v814, %v815
    %v841 = vsel %vm664, %v813, %v814
    %v842 = vsel %vm664, %v812, %v813
    %v843 = vsel %vm664, %v811, %v812
    %v844 = vsel %vm664, %v810, %v811
    %v845 = vsel %vm664, %v827, %v810
    %v846 = vadd.f32 %v792, %v844
    %v847 = vadd.f32 %v793, %v843
    %v848 = vadd.f32 %v794, %v842
    %v849 = vadd.f32 %v795, %v841
    %v850 = vadd.f32 %v796, %v840
    %v851 = vadd.f32 %v797, %v839
    %v852 = vadd.f32 %v798, %v838
    %v853 = vadd.f32 %v799, %v837
    %v854 = vadd.f32 %v800, %v836
    %v855 = vadd.f32 %v801, %v835
    %v856 = vadd.f32 %v802, %v834
    %v857 = vadd.f32 %v803, %v833
    %v858 = vadd.f32 %v804, %v832
    %v859 = vadd.f32 %v805, %v831
    %v860 = vadd.f32 %v806, %v830
    %v861 = vadd.f32 %v807, %v829
    %v862 = vadd.f32 %v808, %v828
    %v863 = vadd.f32 %v809, %v845
    %v864 = vmul.f32 %v846, 0.008264462
    %v865 = vmul.f32 %v847, 0.008264462
    %v866 = vmul.f32 %v848, 0.008264462
    %v867 = vmul.f32 %v849, 0.008264462
    %v868 = vmul.f32 %v850, 0.008264462
    %v869 = vmul.f32 %v851, 0.008264462
    %v870 = vmul.f32 %v852, 0.008264462
    %v871 = vmul.f32 %v853, 0.008264462
    %v872 = vmul.f32 %v854, 0.008264462
    %v873 = vmul.f32 %v855, 0.008264462
    %v874 = vmul.f32 %v856, 0.008264462
    %v875 = vmul.f32 %v857, 0.008264462
    %v876 = vmul.f32 %v858, 0.008264462
    %v877 = vmul.f32 %v859, 0.008264462
    %v878 = vmul.f32 %v860, 0.008264462
    %v879 = vmul.f32 %v861, 0.008264462
    %v880 = vmul.f32 %v862, 0.008264462
    %v881 = vmul.f32 %v863, 0.008264462
    %v882 = vsub.f32 %v73, %v864
    %v883 = vsub.f32 %v74, %v865
    %v884 = vsub.f32 %v75, %v866
    %v885 = vsub.f32 %v76, %v867
    %v886 = vsub.f32 %v77, %v868
    %v887 = vsub.f32 %v78, %v869
    %v888 = vsub.f32 %v79, %v870
    %v889 = vsub.f32 %v80, %v871
    %v890 = vsub.f32 %v81, %v872
    %v891 = vsub.f32 %v82, %v873
    %v892 = vsub.f32 %v83, %v874
    %v893 = vsub.f32 %v84, %v875
    %v894 = vsub.f32 %v85, %v876
    %v895 = vsub.f32 %v86, %v877
    %v896 = vsub.f32 %v87, %v878
    %v897 = vsub.f32 %v88, %v879
    %v898 = vsub.f32 %v89, %v880
    %v899 = vsub.f32 %v90, %v881
    %v900 = vmul.f32 %v882, %v882
    %v901 = vmul.f32 %v883, %v883
    %v902 = vmul.f32 %v884, %v884
    %v903 = vmul.f32 %v885, %v885
    %v904 = vmul.f32 %v886, %v886
    %v905 = vmul.f32 %v887, %v887
    %v906 = vmul.f32 %v888, %v888
    %v907 = vmul.f32 %v889, %v889
    %v908 = vmul.f32 %v890, %v890
    %v909 = vmul.f32 %v891, %v891
    %v910 = vmul.f32 %v892, %v892
    %v911 = vmul.f32 %v893, %v893
    %v912 = vmul.f32 %v894, %v894
    %v913 = vmul.f32 %v895, %v895
    %v914 = vmul.f32 %v896, %v896
    %v915 = vmul.f32 %v897, %v897
    %v916 = vmul.f32 %v898, %v898
    %v917 = vmul.f32 %v899, %v899
    %v918 = vsel %vm351, %v900, 0.0
    %v919 = vsel %vm352, %v901, 0.0
    %v920 = vsel %vm353, %v902, 0.0
    %v921 = vsel %vm354, %v903, 0.0
    %v922 = vsel %vm355, %v904, 0.0
    %v923 = vsel %vm356, %v905, 0.0
    %v924 = vsel %vm357, %v906, 0.0
    %v925 = vsel %vm358, %v907, 0.0
    %v926 = vsel %vm359, %v908, 0.0
    %v927 = vsel %vm360, %v909, 0.0
    %v928 = vsel %vm361, %v910, 0.0
    %v929 = vsel %vm362, %v911, 0.0
    %v930 = vsel %vm363, %v912, 0.0
    %v931 = vsel %vm364, %v913, 0.0
    %v932 = vsel %vm365, %v914, 0.0
    %v933 = vsel %vm366, %v915, 0.0
    %v934 = vsel %vm367, %v916, 0.0
    %v935 = vsel %vm368, %v917, 0.0
    %936 = vmatprep.subr.mxu0 0.0
    %937 = vmatpush1.msra.mxu0 %v97
    %938 = vmatprep.subr.mxu0 0.0
    %939 = vmatpush1.msra.mxu0 %v98
    %940 = vmatprep.subr.mxu0 0.0
    %941 = vmatpush1.msra.mxu0 %v99
    %942 = vmatprep.subr.mxu0 0.0
    %943 = vmatpush1.msra.mxu0 %v100
    %944 = vmatprep.subr.mxu0 0.0
    %945 = vmatpush1.msra.mxu0 %v101
    %946 = vmatprep.subr.mxu0 0.0
    %947 = vmatpush1.msra.mxu0 %v102
    %948 = vmatprep.subr.mxu0 0.0
    %949 = vmatpush1.msra.mxu0 %v103
    %950 = vmatprep.subr.mxu0 0.0
    %951 = vmatpush1.msra.mxu0 %v104
    %952 = vmatprep.subr.mxu0 0.0
    %953 = vmatpush1.msra.mxu0 %v105
    %954 = vmatprep.subr.mxu0 0.0
    %955 = vmatpush1.msra.mxu0 %v106
    %956 = vmatprep.subr.mxu0 0.0
    %957 = vmatpush1.msra.mxu0 %v107
    %958 = vmatprep.subr.mxu0 0.0
    %959 = vmatpush1.msra.mxu0 %v108
    %960 = vmatprep.subr.mxu0 0.0
    %961 = vmatpush1.msra.mxu0 %v109
    %962 = vmatprep.subr.mxu0 0.0
    %963 = vmatpush1.msra.mxu0 %v110
    %964 = vmatprep.subr.mxu0 0.0
    %965 = vmatpush1.msra.mxu0 %v111
    %966 = vmatprep.subr.mxu0 0.0
    %967 = vmatpush1.msra.mxu0 %v112
    %968 = vmatprep.subr.mxu0 0.0
    %969 = vmatpush1.msra.mxu0 0.0
    %970 = vmatprep.subr.mxu0 0.0
    %971 = vmatpush1.msra.mxu0 0.0
    %972 = vmatprep.subr.mxu0 0.0
    %973 = vmatpush1.msra.mxu0 0.0
    %974 = vmatprep.subr.mxu0 0.0
    %975 = vmatpush1.msra.mxu0 0.0
    %976 = vmatprep.subr.mxu0 0.0
    %977 = vmatpush1.msra.mxu0 0.0
    %978 = vmatprep.subr.mxu0 0.0
    %979 = vmatpush1.msra.mxu0 0.0
    %980 = vmatprep.subr.mxu0 0.0
    %981 = vmatpush1.msra.mxu0 0.0
    %982 = vmatprep.subr.mxu0 0.0
    %983 = vmatpush1.msra.mxu0 0.0
    %984 = vmatprep.subr.mxu0 0.0
    %985 = vmatpush1.msra.mxu0 0.0
    %986 = vmatprep.subr.mxu0 0.0
    %987 = vmatpush1.msra.mxu0 0.0
    %988 = vmatprep.subr.mxu0 0.0
    %989 = vmatpush1.msra.mxu0 0.0
    %990 = vmatprep.subr.mxu0 0.0
    %991 = vmatpush1.msra.mxu0 0.0
    %992 = vmatprep.subr.mxu0 0.0
    %993 = vmatpush1.msra.mxu0 0.0
    %994 = vmatprep.subr.mxu0 0.0
    %995 = vmatpush1.msra.mxu0 0.0
    %996 = vmatprep.subr.mxu0 0.0
    %997 = vmatpush1.msra.mxu0 0.0
    %998 = vmatprep.subr.mxu0 0.0
    %999 = vmatpush1.msra.mxu0 0.0
    %1000 = vmatprep.mubr.f32.mxu0 0.0
    %1001 = vmatmul.mubr.f32.gmra.mrb[0].mxu0 %v918
    %v1002 = vpop.f32.mrb[0].mxu0
    %v1003 = vadd.f32 0.0, %v1002
    %v1004 = vpop.f32.mrb[0].mxu0
    %1005 = vmatprep.mubr.f32.mxu0 0.0
    %1006 = vmatmul.mubr.f32.gmra.mrb[0].mxu0 %v919
    %v1007 = vpop.f32.mrb[0].mxu0
    %v1008 = vadd.f32 0.0, %v1007
    %v1009 = vpop.f32.mrb[0].mxu0
    %1010 = vmatprep.mubr.f32.mxu0 0.0
    %1011 = vmatmul.mubr.f32.gmra.mrb[0].mxu0 %v920
    %v1012 = vpop.f32.mrb[0].mxu0
    %v1013 = vadd.f32 0.0, %v1012
    %v1014 = vpop.f32.mrb[0].mxu0
    %1015 = vmatprep.mubr.f32.mxu0 0.0
    %1016 = vmatmul.mubr.f32.gmra.mrb[0].mxu0 %v921
    %v1017 = vpop.f32.mrb[0].mxu0
    %v1018 = vadd.f32 0.0, %v1017
    %v1019 = vpop.f32.mrb[0].mxu0
    %1020 = vmatprep.mubr.f32.mxu0 0.0
    %1021 = vmatmul.mubr.f32.gmra.mrb[0].mxu0 %v922
    %v1022 = vpop.f32.mrb[0].mxu0
    %v1023 = vadd.f32 0.0, %v1022
    %v1024 = vpop.f32.mrb[0].mxu0
    %1025 = vmatprep.mubr.f32.mxu0 0.0
    %1026 = vmatmul.mubr.f32.gmra.mrb[0].mxu0 %v923
    %v1027 = vpop.f32.mrb[0].mxu0
    %v1028 = vadd.f32 0.0, %v1027
    %v1029 = vpop.f32.mrb[0].mxu0
    %1030 = vmatprep.mubr.f32.mxu0 0.0
    %1031 = vmatmul.mubr.f32.gmra.mrb[0].mxu0 %v924
    %v1032 = vpop.f32.mrb[0].mxu0
    %v1033 = vadd.f32 0.0, %v1032
    %v1034 = vpop.f32.mrb[0].mxu0
    %1035 = vmatprep.mubr.f32.mxu0 0.0
    %1036 = vmatmul.mubr.f32.gmra.mrb[0].mxu0 %v925
    %v1037 = vpop.f32.mrb[0].mxu0
    %v1038 = vadd.f32 0.0, %v1037
    %v1039 = vpop.f32.mrb[0].mxu0
    %1040 = vmatprep.mubr.f32.mxu0 0.0
    %1041 = vmatmul.mubr.f32.gmra.mrb[0].mxu0 %v926
    %v1042 = vpop.f32.mrb[0].mxu0
    %v1043 = vadd.f32 0.0, %v1042
    %v1044 = vpop.f32.mrb[0].mxu0
    %1045 = vmatprep.mubr.f32.mxu0 0.0
    %1046 = vmatmul.mubr.f32.gmra.mrb[0].mxu0 %v927
    %v1047 = vpop.f32.mrb[0].mxu0
    %v1048 = vadd.f32 0.0, %v1047
    %v1049 = vpop.f32.mrb[0].mxu0
    %1050 = vmatprep.mubr.f32.mxu0 0.0
    %1051 = vmatmul.mubr.f32.gmra.mrb[0].mxu0 %v928
    %v1052 = vpop.f32.mrb[0].mxu0
    %v1053 = vadd.f32 0.0, %v1052
    %v1054 = vpop.f32.mrb[0].mxu0
    %1055 = vmatprep.mubr.f32.mxu0 0.0
    %1056 = vmatmul.mubr.f32.gmra.mrb[0].mxu0 %v929
    %v1057 = vpop.f32.mrb[0].mxu0
    %v1058 = vadd.f32 0.0, %v1057
    %v1059 = vpop.f32.mrb[0].mxu0
    %1060 = vmatprep.mubr.f32.mxu0 0.0
    %1061 = vmatmul.mubr.f32.gmra.mrb[0].mxu0 %v930
    %v1062 = vpop.f32.mrb[0].mxu0
    %v1063 = vadd.f32 0.0, %v1062
    %v1064 = vpop.f32.mrb[0].mxu0
    %1065 = vmatprep.mubr.f32.mxu0 0.0
    %1066 = vmatmul.mubr.f32.gmra.mrb[0].mxu0 %v931
    %v1067 = vpop.f32.mrb[0].mxu0
    %v1068 = vadd.f32 0.0, %v1067
    %v1069 = vpop.f32.mrb[0].mxu0
    %1070 = vmatprep.mubr.f32.mxu0 0.0
    %1071 = vmatmul.mubr.f32.gmra.mrb[0].mxu0 %v932
    %v1072 = vpop.f32.mrb[0].mxu0
    %v1073 = vadd.f32 0.0, %v1072
    %v1074 = vpop.f32.mrb[0].mxu0
    %1075 = vmatprep.mubr.f32.mxu0 0.0
    %1076 = vmatmul.mubr.f32.gmra.mrb[0].mxu0 %v933
    %v1077 = vpop.f32.mrb[0].mxu0
    %v1078 = vadd.f32 0.0, %v1077
    %v1079 = vpop.f32.mrb[0].mxu0
    %1080 = vmatprep.mubr.f32.mxu0 0.0
    %1081 = vmatmul.mubr.f32.gmra.mrb[0].mxu0 %v934
    %v1082 = vpop.f32.mrb[0].mxu0
    %v1083 = vadd.f32 0.0, %v1082
    %v1084 = vpop.f32.mrb[0].mxu0
    %1085 = vmatprep.mubr.f32.mxu0 0.0
    %1086 = vmatmul.mubr.f32.gmra.mrb[0].mxu0 %v935
    %v1087 = vpop.f32.mrb[0].mxu0
    %v1088 = vadd.f32 0.0, %v1087
    %v1089 = vpop.f32.mrb[0].mxu0
    %1090 = vdwg.mxu0
    %v1091 = vrot.slane %v1003, 7
    %v1092 = vrot.slane %v1008, 7
    %v1093 = vrot.slane %v1013, 7
    %v1094 = vrot.slane %v1018, 7
    %v1095 = vrot.slane %v1023, 7
    %v1096 = vrot.slane %v1028, 7
    %v1097 = vrot.slane %v1033, 7
    %v1098 = vrot.slane %v1038, 7
    %v1099 = vrot.slane %v1043, 7
    %v1100 = vrot.slane %v1048, 7
    %v1101 = vrot.slane %v1053, 7
    %v1102 = vrot.slane %v1058, 7
    %v1103 = vrot.slane %v1063, 7
    %v1104 = vrot.slane %v1068, 7
    %v1105 = vrot.slane %v1073, 7
    %v1106 = vrot.slane %v1078, 7
    %v1107 = vrot.slane %v1083, 7
    %v1108 = vrot.slane %v1088, 7
    %v1109 = vsel %vm554, %v1107, %v1108
    %v1110 = vsel %vm554, %v1106, %v1107
    %v1111 = vsel %vm554, %v1105, %v1106
    %v1112 = vsel %vm554, %v1104, %v1105
    %v1113 = vsel %vm554, %v1103, %v1104
    %v1114 = vsel %vm554, %v1102, %v1103
    %v1115 = vsel %vm554, %v1101, %v1102
    %v1116 = vsel %vm554, %v1100, %v1101
    %v1117 = vsel %vm554, %v1099, %v1100
    %v1118 = vsel %vm554, %v1098, %v1099
    %v1119 = vsel %vm554, %v1097, %v1098
    %v1120 = vsel %vm554, %v1096, %v1097
    %v1121 = vsel %vm554, %v1095, %v1096
    %v1122 = vsel %vm554, %v1094, %v1095
    %v1123 = vsel %vm554, %v1093, %v1094
    %v1124 = vsel %vm554, %v1092, %v1093
    %v1125 = vsel %vm554, %v1091, %v1092
    %v1126 = vsel %vm554, %v1108, %v1091
    %v1127 = vadd.f32 %v1003, %v1126
    %v1128 = vadd.f32 %v1008, %v1125
    %v1129 = vadd.f32 %v1013, %v1124
    %v1130 = vadd.f32 %v1018, %v1123
    %v1131 = vadd.f32 %v1023, %v1122
    %v1132 = vadd.f32 %v1028, %v1121
    %v1133 = vadd.f32 %v1033, %v1120
    %v1134 = vadd.f32 %v1038, %v1119
    %v1135 = vadd.f32 %v1043, %v1118
    %v1136 = vadd.f32 %v1048, %v1117
    %v1137 = vadd.f32 %v1053, %v1116
    %v1138 = vadd.f32 %v1058, %v1115
    %v1139 = vadd.f32 %v1063, %v1114
    %v1140 = vadd.f32 %v1068, %v1113
    %v1141 = vadd.f32 %v1073, %v1112
    %v1142 = vadd.f32 %v1078, %v1111
    %v1143 = vadd.f32 %v1083, %v1110
    %v1144 = vadd.f32 %v1088, %v1109
    %v1145 = vrot.slane %v1003, 1
    %v1146 = vrot.slane %v1008, 1
    %v1147 = vrot.slane %v1013, 1
    %v1148 = vrot.slane %v1018, 1
    %v1149 = vrot.slane %v1023, 1
    %v1150 = vrot.slane %v1028, 1
    %v1151 = vrot.slane %v1033, 1
    %v1152 = vrot.slane %v1038, 1
    %v1153 = vrot.slane %v1043, 1
    %v1154 = vrot.slane %v1048, 1
    %v1155 = vrot.slane %v1053, 1
    %v1156 = vrot.slane %v1058, 1
    %v1157 = vrot.slane %v1063, 1
    %v1158 = vrot.slane %v1068, 1
    %v1159 = vrot.slane %v1073, 1
    %v1160 = vrot.slane %v1078, 1
    %v1161 = vrot.slane %v1083, 1
    %v1162 = vrot.slane %v1088, 1
    %v1163 = vsel %vm609, %v1161, %v1162
    %v1164 = vsel %vm609, %v1160, %v1161
    %v1165 = vsel %vm609, %v1159, %v1160
    %v1166 = vsel %vm609, %v1158, %v1159
    %v1167 = vsel %vm609, %v1157, %v1158
    %v1168 = vsel %vm609, %v1156, %v1157
    %v1169 = vsel %vm609, %v1155, %v1156
    %v1170 = vsel %vm609, %v1154, %v1155
    %v1171 = vsel %vm609, %v1153, %v1154
    %v1172 = vsel %vm609, %v1152, %v1153
    %v1173 = vsel %vm609, %v1151, %v1152
    %v1174 = vsel %vm609, %v1150, %v1151
    %v1175 = vsel %vm609, %v1149, %v1150
    %v1176 = vsel %vm609, %v1148, %v1149
    %v1177 = vsel %vm609, %v1147, %v1148
    %v1178 = vsel %vm609, %v1146, %v1147
    %v1179 = vsel %vm609, %v1145, %v1146
    %v1180 = vsel %vm609, %v1162, %v1145
    %v1181 = vadd.f32 %v1127, %v1179
    %v1182 = vadd.f32 %v1128, %v1178
    %v1183 = vadd.f32 %v1129, %v1177
    %v1184 = vadd.f32 %v1130, %v1176
    %v1185 = vadd.f32 %v1131, %v1175
    %v1186 = vadd.f32 %v1132, %v1174
    %v1187 = vadd.f32 %v1133, %v1173
    %v1188 = vadd.f32 %v1134, %v1172
    %v1189 = vadd.f32 %v1135, %v1171
    %v1190 = vadd.f32 %v1136, %v1170
    %v1191 = vadd.f32 %v1137, %v1169
    %v1192 = vadd.f32 %v1138, %v1168
    %v1193 = vadd.f32 %v1139, %v1167
    %v1194 = vadd.f32 %v1140, %v1166
    %v1195 = vadd.f32 %v1141, %v1165
    %v1196 = vadd.f32 %v1142, %v1164
    %v1197 = vadd.f32 %v1143, %v1163
    %v1198 = vadd.f32 %v1144, %v1180
    %v1199 = vrot.slane %v1181, 5
    %v1200 = vrot.slane %v1182, 5
    %v1201 = vrot.slane %v1183, 5
    %v1202 = vrot.slane %v1184, 5
    %v1203 = vrot.slane %v1185, 5
    %v1204 = vrot.slane %v1186, 5
    %v1205 = vrot.slane %v1187, 5
    %v1206 = vrot.slane %v1188, 5
    %v1207 = vrot.slane %v1189, 5
    %v1208 = vrot.slane %v1190, 5
    %v1209 = vrot.slane %v1191, 5
    %v1210 = vrot.slane %v1192, 5
    %v1211 = vrot.slane %v1193, 5
    %v1212 = vrot.slane %v1194, 5
    %v1213 = vrot.slane %v1195, 5
    %v1214 = vrot.slane %v1196, 5
    %v1215 = vrot.slane %v1197, 5
    %v1216 = vrot.slane %v1198, 5
    %v1217 = vsel %vm664, %v1215, %v1216
    %v1218 = vsel %vm664, %v1214, %v1215
    %v1219 = vsel %vm664, %v1213, %v1214
    %v1220 = vsel %vm664, %v1212, %v1213
    %v1221 = vsel %vm664, %v1211, %v1212
    %v1222 = vsel %vm664, %v1210, %v1211
    %v1223 = vsel %vm664, %v1209, %v1210
    %v1224 = vsel %vm664, %v1208, %v1209
    %v1225 = vsel %vm664, %v1207, %v1208
    %v1226 = vsel %vm664, %v1206, %v1207
    %v1227 = vsel %vm664, %v1205, %v1206
    %v1228 = vsel %vm664, %v1204, %v1205
    %v1229 = vsel %vm664, %v1203, %v1204
    %v1230 = vsel %vm664, %v1202, %v1203
    %v1231 = vsel %vm664, %v1201, %v1202
    %v1232 = vsel %vm664, %v1200, %v1201
    %v1233 = vsel %vm664, %v1199, %v1200
    %v1234 = vsel %vm664, %v1216, %v1199
    %v1235 = vadd.f32 %v1181, %v1234
    %v1236 = vadd.f32 %v1182, %v1233
    %v1237 = vadd.f32 %v1183, %v1232
    %v1238 = vadd.f32 %v1184, %v1231
    %v1239 = vadd.f32 %v1185, %v1230
    %v1240 = vadd.f32 %v1186, %v1229
    %v1241 = vadd.f32 %v1187, %v1228
    %v1242 = vadd.f32 %v1188, %v1227
    %v1243 = vadd.f32 %v1189, %v1226
    %v1244 = vadd.f32 %v1190, %v1225
    %v1245 = vadd.f32 %v1191, %v1224
    %v1246 = vadd.f32 %v1192, %v1223
    %v1247 = vadd.f32 %v1193, %v1222
    %v1248 = vadd.f32 %v1194, %v1221
    %v1249 = vadd.f32 %v1195, %v1220
    %v1250 = vadd.f32 %v1196, %v1219
    %v1251 = vadd.f32 %v1197, %v1218
    %v1252 = vadd.f32 %v1198, %v1217
    %v1253 = vrot.slane %v1181, 3
    %v1254 = vrot.slane %v1182, 3
    %v1255 = vrot.slane %v1183, 3
    %v1256 = vrot.slane %v1184, 3
    %v1257 = vrot.slane %v1185, 3
    %v1258 = vrot.slane %v1186, 3
    %v1259 = vrot.slane %v1187, 3
    %v1260 = vrot.slane %v1188, 3
    %v1261 = vrot.slane %v1189, 3
    %v1262 = vrot.slane %v1190, 3
    %v1263 = vrot.slane %v1191, 3
    %v1264 = vrot.slane %v1192, 3
    %v1265 = vrot.slane %v1193, 3
    %v1266 = vrot.slane %v1194, 3
    %v1267 = vrot.slane %v1195, 3
    %v1268 = vrot.slane %v1196, 3
    %v1269 = vrot.slane %v1197, 3
    %v1270 = vrot.slane %v1198, 3
    %v1271 = vsel %vm719, %v1269, %v1270
    %v1272 = vsel %vm719, %v1268, %v1269
    %v1273 = vsel %vm719, %v1267, %v1268
    %v1274 = vsel %vm719, %v1266, %v1267
    %v1275 = vsel %vm719, %v1265, %v1266
    %v1276 = vsel %vm719, %v1264, %v1265
    %v1277 = vsel %vm719, %v1263, %v1264
    %v1278 = vsel %vm719, %v1262, %v1263
    %v1279 = vsel %vm719, %v1261, %v1262
    %v1280 = vsel %vm719, %v1260, %v1261
    %v1281 = vsel %vm719, %v1259, %v1260
    %v1282 = vsel %vm719, %v1258, %v1259
    %v1283 = vsel %vm719, %v1257, %v1258
    %v1284 = vsel %vm719, %v1256, %v1257
    %v1285 = vsel %vm719, %v1255, %v1256
    %v1286 = vsel %vm719, %v1254, %v1255
    %v1287 = vsel %vm719, %v1253, %v1254
    %v1288 = vsel %vm719, %v1270, %v1253
    %v1289 = vadd.f32 %v1235, %v1287
    %v1290 = vadd.f32 %v1236, %v1286
    %v1291 = vadd.f32 %v1237, %v1285
    %v1292 = vadd.f32 %v1238, %v1284
    %v1293 = vadd.f32 %v1239, %v1283
    %v1294 = vadd.f32 %v1240, %v1282
    %v1295 = vadd.f32 %v1241, %v1281
    %v1296 = vadd.f32 %v1242, %v1280
    %v1297 = vadd.f32 %v1243, %v1279
    %v1298 = vadd.f32 %v1244, %v1278
    %v1299 = vadd.f32 %v1245, %v1277
    %v1300 = vadd.f32 %v1246, %v1276
    %v1301 = vadd.f32 %v1247, %v1275
    %v1302 = vadd.f32 %v1248, %v1274
    %v1303 = vadd.f32 %v1249, %v1273
    %v1304 = vadd.f32 %v1250, %v1272
    %v1305 = vadd.f32 %v1251, %v1271
    %v1306 = vadd.f32 %v1252, %v1288
    %v1307 = vrot.slane %v1003, 3
    %v1308 = vrot.slane %v1008, 3
    %v1309 = vrot.slane %v1013, 3
    %v1310 = vrot.slane %v1018, 3
    %v1311 = vrot.slane %v1023, 3
    %v1312 = vrot.slane %v1028, 3
    %v1313 = vrot.slane %v1033, 3
    %v1314 = vrot.slane %v1038, 3
    %v1315 = vrot.slane %v1043, 3
    %v1316 = vrot.slane %v1048, 3
    %v1317 = vrot.slane %v1053, 3
    %v1318 = vrot.slane %v1058, 3
    %v1319 = vrot.slane %v1063, 3
    %v1320 = vrot.slane %v1068, 3
    %v1321 = vrot.slane %v1073, 3
    %v1322 = vrot.slane %v1078, 3
    %v1323 = vrot.slane %v1083, 3
    %v1324 = vrot.slane %v1088, 3
    %v1325 = vsel %vm719, %v1323, %v1324
    %v1326 = vsel %vm719, %v1322, %v1323
    %v1327 = vsel %vm719, %v1321, %v1322
    %v1328 = vsel %vm719, %v1320, %v1321
    %v1329 = vsel %vm719, %v1319, %v1320
    %v1330 = vsel %vm719, %v1318, %v1319
    %v1331 = vsel %vm719, %v1317, %v1318
    %v1332 = vsel %vm719, %v1316, %v1317
    %v1333 = vsel %vm719, %v1315, %v1316
    %v1334 = vsel %vm719, %v1314, %v1315
    %v1335 = vsel %vm719, %v1313, %v1314
    %v1336 = vsel %vm719, %v1312, %v1313
    %v1337 = vsel %vm719, %v1311, %v1312
    %v1338 = vsel %vm719, %v1310, %v1311
    %v1339 = vsel %vm719, %v1309, %v1310
    %v1340 = vsel %vm719, %v1308, %v1309
    %v1341 = vsel %vm719, %v1307, %v1308
    %v1342 = vsel %vm719, %v1324, %v1307
    %v1343 = vadd.f32 %v1289, %v1342
    %v1344 = vadd.f32 %v1290, %v1341
    %v1345 = vadd.f32 %v1291, %v1340
    %v1346 = vadd.f32 %v1292, %v1339
    %v1347 = vadd.f32 %v1293, %v1338
    %v1348 = vadd.f32 %v1294, %v1337
    %v1349 = vadd.f32 %v1295, %v1336
    %v1350 = vadd.f32 %v1296, %v1335
    %v1351 = vadd.f32 %v1297, %v1334
    %v1352 = vadd.f32 %v1298, %v1333
    %v1353 = vadd.f32 %v1299, %v1332
    %v1354 = vadd.f32 %v1300, %v1331
    %v1355 = vadd.f32 %v1301, %v1330
    %v1356 = vadd.f32 %v1302, %v1329
    %v1357 = vadd.f32 %v1303, %v1328
    %v1358 = vadd.f32 %v1304, %v1327
    %v1359 = vadd.f32 %v1305, %v1326
    %v1360 = vadd.f32 %v1306, %v1325
    %v1361 = vrot.slane %v1003, 5
    %v1362 = vrot.slane %v1008, 5
    %v1363 = vrot.slane %v1013, 5
    %v1364 = vrot.slane %v1018, 5
    %v1365 = vrot.slane %v1023, 5
    %v1366 = vrot.slane %v1028, 5
    %v1367 = vrot.slane %v1033, 5
    %v1368 = vrot.slane %v1038, 5
    %v1369 = vrot.slane %v1043, 5
    %v1370 = vrot.slane %v1048, 5
    %v1371 = vrot.slane %v1053, 5
    %v1372 = vrot.slane %v1058, 5
    %v1373 = vrot.slane %v1063, 5
    %v1374 = vrot.slane %v1068, 5
    %v1375 = vrot.slane %v1073, 5
    %v1376 = vrot.slane %v1078, 5
    %v1377 = vrot.slane %v1083, 5
    %v1378 = vrot.slane %v1088, 5
    %v1379 = vsel %vm664, %v1377, %v1378
    %v1380 = vsel %vm664, %v1376, %v1377
    %v1381 = vsel %vm664, %v1375, %v1376
    %v1382 = vsel %vm664, %v1374, %v1375
    %v1383 = vsel %vm664, %v1373, %v1374
    %v1384 = vsel %vm664, %v1372, %v1373
    %v1385 = vsel %vm664, %v1371, %v1372
    %v1386 = vsel %vm664, %v1370, %v1371
    %v1387 = vsel %vm664, %v1369, %v1370
    %v1388 = vsel %vm664, %v1368, %v1369
    %v1389 = vsel %vm664, %v1367, %v1368
    %v1390 = vsel %vm664, %v1366, %v1367
    %v1391 = vsel %vm664, %v1365, %v1366
    %v1392 = vsel %vm664, %v1364, %v1365
    %v1393 = vsel %vm664, %v1363, %v1364
    %v1394 = vsel %vm664, %v1362, %v1363
    %v1395 = vsel %vm664, %v1361, %v1362
    %v1396 = vsel %vm664, %v1378, %v1361
    %v1397 = vadd.f32 %v1343, %v1395
    %v1398 = vadd.f32 %v1344, %v1394
    %v1399 = vadd.f32 %v1345, %v1393
    %v1400 = vadd.f32 %v1346, %v1392
    %v1401 = vadd.f32 %v1347, %v1391
    %v1402 = vadd.f32 %v1348, %v1390
    %v1403 = vadd.f32 %v1349, %v1389
    %v1404 = vadd.f32 %v1350, %v1388
    %v1405 = vadd.f32 %v1351, %v1387
    %v1406 = vadd.f32 %v1352, %v1386
    %v1407 = vadd.f32 %v1353, %v1385
    %v1408 = vadd.f32 %v1354, %v1384
    %v1409 = vadd.f32 %v1355, %v1383
    %v1410 = vadd.f32 %v1356, %v1382
    %v1411 = vadd.f32 %v1357, %v1381
    %v1412 = vadd.f32 %v1358, %v1380
    %v1413 = vadd.f32 %v1359, %v1379
    %v1414 = vadd.f32 %v1360, %v1396
    %v1415 = vrsqrt.pop %v1397
    %v1416 = vmul.f32 %v1397, %v1415
    %vm1417 = vcmp.eq.f32.partialorder %v1397, inf
    %v1418 = vsel %vm1417, %v1397, %v1416
    %vm1419 = vcmp.eq.f32.partialorder %v1397, 0.0
    %v1420 = vand.u32 %v1397, 2147483648
    %v1421 = vsel %vm1419, %v1420, %v1418
    %v1422 = vrsqrt.pop %v1398
    %v1423 = vmul.f32 %v1398, %v1422
    %vm1424 = vcmp.eq.f32.partialorder %v1398, inf
    %v1425 = vsel %vm1424, %v1398, %v1423
    %vm1426 = vcmp.eq.f32.partialorder %v1398, 0.0
    %v1427 = vand.u32 %v1398, 2147483648
    %v1428 = vsel %vm1426, %v1427, %v1425
    %v1429 = vrsqrt.pop %v1399
    %v1430 = vmul.f32 %v1399, %v1429
    %vm1431 = vcmp.eq.f32.partialorder %v1399, inf
    %v1432 = vsel %vm1431, %v1399, %v1430
    %vm1433 = vcmp.eq.f32.partialorder %v1399, 0.0
    %v1434 = vand.u32 %v1399, 2147483648
    %v1435 = vsel %vm1433, %v1434, %v1432
    %v1436 = vrsqrt.pop %v1400
    %v1437 = vmul.f32 %v1400, %v1436
    %vm1438 = vcmp.eq.f32.partialorder %v1400, inf
    %v1439 = vsel %vm1438, %v1400, %v1437
    %vm1440 = vcmp.eq.f32.partialorder %v1400, 0.0
    %v1441 = vand.u32 %v1400, 2147483648
    %v1442 = vsel %vm1440, %v1441, %v1439
    %v1443 = vrsqrt.pop %v1401
    %v1444 = vmul.f32 %v1401, %v1443
    %vm1445 = vcmp.eq.f32.partialorder %v1401, inf
    %v1446 = vsel %vm1445, %v1401, %v1444
    %vm1447 = vcmp.eq.f32.partialorder %v1401, 0.0
    %v1448 = vand.u32 %v1401, 2147483648
    %v1449 = vsel %vm1447, %v1448, %v1446
    %v1450 = vrsqrt.pop %v1402
    %v1451 = vmul.f32 %v1402, %v1450
    %vm1452 = vcmp.eq.f32.partialorder %v1402, inf
    %v1453 = vsel %vm1452, %v1402, %v1451
    %vm1454 = vcmp.eq.f32.partialorder %v1402, 0.0
    %v1455 = vand.u32 %v1402, 2147483648
    %v1456 = vsel %vm1454, %v1455, %v1453
    %v1457 = vrsqrt.pop %v1403
    %v1458 = vmul.f32 %v1403, %v1457
    %vm1459 = vcmp.eq.f32.partialorder %v1403, inf
    %v1460 = vsel %vm1459, %v1403, %v1458
    %vm1461 = vcmp.eq.f32.partialorder %v1403, 0.0
    %v1462 = vand.u32 %v1403, 2147483648
    %v1463 = vsel %vm1461, %v1462, %v1460
    %v1464 = vrsqrt.pop %v1404
    %v1465 = vmul.f32 %v1404, %v1464
    %vm1466 = vcmp.eq.f32.partialorder %v1404, inf
    %v1467 = vsel %vm1466, %v1404, %v1465
    %vm1468 = vcmp.eq.f32.partialorder %v1404, 0.0
    %v1469 = vand.u32 %v1404, 2147483648
    %v1470 = vsel %vm1468, %v1469, %v1467
    %v1471 = vrsqrt.pop %v1405
    %v1472 = vmul.f32 %v1405, %v1471
    %vm1473 = vcmp.eq.f32.partialorder %v1405, inf
    %v1474 = vsel %vm1473, %v1405, %v1472
    %vm1475 = vcmp.eq.f32.partialorder %v1405, 0.0
    %v1476 = vand.u32 %v1405, 2147483648
    %v1477 = vsel %vm1475, %v1476, %v1474
    %v1478 = vrsqrt.pop %v1406
    %v1479 = vmul.f32 %v1406, %v1478
    %vm1480 = vcmp.eq.f32.partialorder %v1406, inf
    %v1481 = vsel %vm1480, %v1406, %v1479
    %vm1482 = vcmp.eq.f32.partialorder %v1406, 0.0
    %v1483 = vand.u32 %v1406, 2147483648
    %v1484 = vsel %vm1482, %v1483, %v1481
    %v1485 = vrsqrt.pop %v1407
    %v1486 = vmul.f32 %v1407, %v1485
    %vm1487 = vcmp.eq.f32.partialorder %v1407, inf
    %v1488 = vsel %vm1487, %v1407, %v1486
    %vm1489 = vcmp.eq.f32.partialorder %v1407, 0.0
    %v1490 = vand.u32 %v1407, 2147483648
    %v1491 = vsel %vm1489, %v1490, %v1488
    %v1492 = vrsqrt.pop %v1408
    %v1493 = vmul.f32 %v1408, %v1492
    %vm1494 = vcmp.eq.f32.partialorder %v1408, inf
    %v1495 = vsel %vm1494, %v1408, %v1493
    %vm1496 = vcmp.eq.f32.partialorder %v1408, 0.0
    %v1497 = vand.u32 %v1408, 2147483648
    %v1498 = vsel %vm1496, %v1497, %v1495
    %v1499 = vrsqrt.pop %v1409
    %v1500 = vmul.f32 %v1409, %v1499
    %vm1501 = vcmp.eq.f32.partialorder %v1409, inf
    %v1502 = vsel %vm1501, %v1409, %v1500
    %vm1503 = vcmp.eq.f32.partialorder %v1409, 0.0
    %v1504 = vand.u32 %v1409, 2147483648
    %v1505 = vsel %vm1503, %v1504, %v1502
    %v1506 = vrsqrt.pop %v1410
    %v1507 = vmul.f32 %v1410, %v1506
    %vm1508 = vcmp.eq.f32.partialorder %v1410, inf
    %v1509 = vsel %vm1508, %v1410, %v1507
    %vm1510 = vcmp.eq.f32.partialorder %v1410, 0.0
    %v1511 = vand.u32 %v1410, 2147483648
    %v1512 = vsel %vm1510, %v1511, %v1509
    %v1513 = vrsqrt.pop %v1411
    %v1514 = vmul.f32 %v1411, %v1513
    %vm1515 = vcmp.eq.f32.partialorder %v1411, inf
    %v1516 = vsel %vm1515, %v1411, %v1514
    %vm1517 = vcmp.eq.f32.partialorder %v1411, 0.0
    %v1518 = vand.u32 %v1411, 2147483648
    %v1519 = vsel %vm1517, %v1518, %v1516
    %v1520 = vrsqrt.pop %v1412
    %v1521 = vmul.f32 %v1412, %v1520
    %vm1522 = vcmp.eq.f32.partialorder %v1412, inf
    %v1523 = vsel %vm1522, %v1412, %v1521
    %vm1524 = vcmp.eq.f32.partialorder %v1412, 0.0
    %v1525 = vand.u32 %v1412, 2147483648
    %v1526 = vsel %vm1524, %v1525, %v1523
    %v1527 = vrsqrt.pop %v1413
    %v1528 = vmul.f32 %v1413, %v1527
    %vm1529 = vcmp.eq.f32.partialorder %v1413, inf
    %v1530 = vsel %vm1529, %v1413, %v1528
    %vm1531 = vcmp.eq.f32.partialorder %v1413, 0.0
    %v1532 = vand.u32 %v1413, 2147483648
    %v1533 = vsel %vm1531, %v1532, %v1530
    %v1534 = vrsqrt.pop %v1414
    %v1535 = vmul.f32 %v1414, %v1534
    %vm1536 = vcmp.eq.f32.partialorder %v1414, inf
    %v1537 = vsel %vm1536, %v1414, %v1535
    %vm1538 = vcmp.eq.f32.partialorder %v1414, 0.0
    %v1539 = vand.u32 %v1414, 2147483648
    %v1540 = vsel %vm1538, %v1539, %v1537
    %v1541 = vadd.f32 %v1421, 0.001
    %v1542 = vadd.f32 %v1428, 0.001
    %v1543 = vadd.f32 %v1435, 0.001
    %v1544 = vadd.f32 %v1442, 0.001
    %v1545 = vadd.f32 %v1449, 0.001
    %v1546 = vadd.f32 %v1456, 0.001
    %v1547 = vadd.f32 %v1463, 0.001
    %v1548 = vadd.f32 %v1470, 0.001
    %v1549 = vadd.f32 %v1477, 0.001
    %v1550 = vadd.f32 %v1484, 0.001
    %v1551 = vadd.f32 %v1491, 0.001
    %v1552 = vadd.f32 %v1498, 0.001
    %v1553 = vadd.f32 %v1505, 0.001
    %v1554 = vadd.f32 %v1512, 0.001
    %v1555 = vadd.f32 %v1519, 0.001
    %v1556 = vadd.f32 %v1526, 0.001
    %v1557 = vadd.f32 %v1533, 0.001
    %v1558 = vadd.f32 %v1540, 0.001
    %v1559 = vmax.f32 %v1541, %v1547
    %v1560 = vmax.f32 %v1542, %v1548
    %v1561 = vmax.f32 %v1543, %v1549
    %v1562 = vmax.f32 %v1544, %v1550
    %v1563 = vmax.f32 %v1545, %v1551
    %v1564 = vmax.f32 %v1546, %v1552
    %v1565 = vadd.f32 %v882, %v888
    %v1566 = vadd.f32 %v883, %v889
    %v1567 = vadd.f32 %v884, %v890
    %v1568 = vadd.f32 %v885, %v891
    %v1569 = vadd.f32 %v886, %v892
    %v1570 = vadd.f32 %v887, %v893
    %v1571 = vadd.f32 %v1541, %v1547
    %v1572 = vadd.f32 %v1542, %v1548
    %v1573 = vadd.f32 %v1543, %v1549
    %v1574 = vadd.f32 %v1544, %v1550
    %v1575 = vadd.f32 %v1545, %v1551
    %v1576 = vadd.f32 %v1546, %v1552
    %v1577 = vmax.f32 %v1559, %v1553
    %v1578 = vmax.f32 %v1560, %v1554
    %v1579 = vmax.f32 %v1561, %v1555
    %v1580 = vmax.f32 %v1562, %v1556
    %v1581 = vmax.f32 %v1563, %v1557
    %v1582 = vmax.f32 %v1564, %v1558
    %v1583 = vadd.f32 %v1565, %v894
    %v1584 = vadd.f32 %v1566, %v895
    %v1585 = vadd.f32 %v1567, %v896
    %v1586 = vadd.f32 %v1568, %v897
    %v1587 = vadd.f32 %v1569, %v898
    %v1588 = vadd.f32 %v1570, %v899
    %v1589 = vadd.f32 %v1571, %v1553
    %v1590 = vadd.f32 %v1572, %v1554
    %v1591 = vadd.f32 %v1573, %v1555
    %v1592 = vadd.f32 %v1574, %v1556
    %v1593 = vadd.f32 %v1575, %v1557
    %v1594 = vadd.f32 %v1576, %v1558
    %v1595 = vmul.f32 %v1583, %v1583
    %v1596 = vmul.f32 %v1584, %v1584
    %v1597 = vmul.f32 %v1585, %v1585
    %v1598 = vmul.f32 %v1586, %v1586
    %v1599 = vmul.f32 %v1587, %v1587
    %v1600 = vmul.f32 %v1588, %v1588
    %v1601 = vsel %vm375, %v1595, 0.0
    %v1602 = vsel %vm376, %v1596, 0.0
    %v1603 = vsel %vm377, %v1597, 0.0
    %v1604 = vsel %vm378, %v1598, 0.0
    %v1605 = vsel %vm379, %v1599, 0.0
    %v1606 = vsel %vm380, %v1600, 0.0
    %1607 = vmatprep.subr.mxu0 0.0
    %1608 = vmatpush1.msra.mxu0 %v97
    %1609 = vmatprep.subr.mxu0 0.0
    %1610 = vmatpush1.msra.mxu0 %v98
    %1611 = vmatprep.subr.mxu0 0.0
    %1612 = vmatpush1.msra.mxu0 %v99
    %1613 = vmatprep.subr.mxu0 0.0
    %1614 = vmatpush1.msra.mxu0 %v100
    %1615 = vmatprep.subr.mxu0 0.0
    %1616 = vmatpush1.msra.mxu0 %v101
    %1617 = vmatprep.subr.mxu0 0.0
    %1618 = vmatpush1.msra.mxu0 %v102
    %1619 = vmatprep.subr.mxu0 0.0
    %1620 = vmatpush1.msra.mxu0 %v103
    %1621 = vmatprep.subr.mxu0 0.0
    %1622 = vmatpush1.msra.mxu0 %v104
    %1623 = vmatprep.subr.mxu0 0.0
    %1624 = vmatpush1.msra.mxu0 %v105
    %1625 = vmatprep.subr.mxu0 0.0
    %1626 = vmatpush1.msra.mxu0 %v106
    %1627 = vmatprep.subr.mxu0 0.0
    %1628 = vmatpush1.msra.mxu0 %v107
    %1629 = vmatprep.subr.mxu0 0.0
    %1630 = vmatpush1.msra.mxu0 %v108
    %1631 = vmatprep.subr.mxu0 0.0
    %1632 = vmatpush1.msra.mxu0 %v109
    %1633 = vmatprep.subr.mxu0 0.0
    %1634 = vmatpush1.msra.mxu0 %v110
    %1635 = vmatprep.subr.mxu0 0.0
    %1636 = vmatpush1.msra.mxu0 %v111
    %1637 = vmatprep.subr.mxu0 0.0
    %1638 = vmatpush1.msra.mxu0 %v112
    %1639 = vmatprep.subr.mxu0 0.0
    %1640 = vmatpush1.msra.mxu0 0.0
    %1641 = vmatprep.subr.mxu0 0.0
    %1642 = vmatpush1.msra.mxu0 0.0
    %1643 = vmatprep.subr.mxu0 0.0
    %1644 = vmatpush1.msra.mxu0 0.0
    %1645 = vmatprep.subr.mxu0 0.0
    %1646 = vmatpush1.msra.mxu0 0.0
    %1647 = vmatprep.subr.mxu0 0.0
    %1648 = vmatpush1.msra.mxu0 0.0
    %1649 = vmatprep.subr.mxu0 0.0
    %1650 = vmatpush1.msra.mxu0 0.0
    %1651 = vmatprep.subr.mxu0 0.0
    %1652 = vmatpush1.msra.mxu0 0.0
    %1653 = vmatprep.subr.mxu0 0.0
    %1654 = vmatpush1.msra.mxu0 0.0
    %1655 = vmatprep.subr.mxu0 0.0
    %1656 = vmatpush1.msra.mxu0 0.0
    %1657 = vmatprep.subr.mxu0 0.0
    %1658 = vmatpush1.msra.mxu0 0.0
    %1659 = vmatprep.subr.mxu0 0.0
    %1660 = vmatpush1.msra.mxu0 0.0
    %1661 = vmatprep.subr.mxu0 0.0
    %1662 = vmatpush1.msra.mxu0 0.0
    %1663 = vmatprep.subr.mxu0 0.0
    %1664 = vmatpush1.msra.mxu0 0.0
    %1665 = vmatprep.subr.mxu0 0.0
    %1666 = vmatpush1.msra.mxu0 0.0
    %1667 = vmatprep.subr.mxu0 0.0
    %1668 = vmatpush1.msra.mxu0 0.0
    %1669 = vmatprep.subr.mxu0 0.0
    %1670 = vmatpush1.msra.mxu0 0.0
    %1671 = vmatprep.mubr.f32.mxu0 0.0
    %1672 = vmatmul.mubr.f32.gmra.mrb[0].mxu0 %v1601
    %v1673 = vpop.f32.mrb[0].mxu0
    %v1674 = vadd.f32 0.0, %v1673
    %v1675 = vpop.f32.mrb[0].mxu0
    %1676 = vmatprep.mubr.f32.mxu0 0.0
    %1677 = vmatmul.mubr.f32.gmra.mrb[0].mxu0 %v1602
    %v1678 = vpop.f32.mrb[0].mxu0
    %v1679 = vadd.f32 0.0, %v1678
    %v1680 = vpop.f32.mrb[0].mxu0
    %1681 = vmatprep.mubr.f32.mxu0 0.0
    %1682 = vmatmul.mubr.f32.gmra.mrb[0].mxu0 %v1603
    %v1683 = vpop.f32.mrb[0].mxu0
    %v1684 = vadd.f32 0.0, %v1683
    %v1685 = vpop.f32.mrb[0].mxu0
    %1686 = vmatprep.mubr.f32.mxu0 0.0
    %1687 = vmatmul.mubr.f32.gmra.mrb[0].mxu0 %v1604
    %v1688 = vpop.f32.mrb[0].mxu0
    %v1689 = vadd.f32 0.0, %v1688
    %v1690 = vpop.f32.mrb[0].mxu0
    %1691 = vmatprep.mubr.f32.mxu0 0.0
    %1692 = vmatmul.mubr.f32.gmra.mrb[0].mxu0 %v1605
    %v1693 = vpop.f32.mrb[0].mxu0
    %v1694 = vadd.f32 0.0, %v1693
    %v1695 = vpop.f32.mrb[0].mxu0
    %1696 = vmatprep.mubr.f32.mxu0 0.0
    %1697 = vmatmul.mubr.f32.gmra.mrb[0].mxu0 %v1606
    %v1698 = vpop.f32.mrb[0].mxu0
    %v1699 = vadd.f32 0.0, %v1698
    %v1700 = vpop.f32.mrb[0].mxu0
    %1701 = vdwg.mxu0
    %v1702 = vrot.slane %v1674, 7
    %v1703 = vrot.slane %v1679, 7
    %v1704 = vrot.slane %v1684, 7
    %v1705 = vrot.slane %v1689, 7
    %v1706 = vrot.slane %v1694, 7
    %v1707 = vrot.slane %v1699, 7
    %v1708 = vsel %vm554, %v1706, %v1707
    %v1709 = vsel %vm554, %v1705, %v1706
    %v1710 = vsel %vm554, %v1704, %v1705
    %v1711 = vsel %vm554, %v1703, %v1704
    %v1712 = vsel %vm554, %v1702, %v1703
    %v1713 = vsel %vm554, %v1707, %v1702
    %v1714 = vadd.f32 %v1674, %v1713
    %v1715 = vadd.f32 %v1679, %v1712
    %v1716 = vadd.f32 %v1684, %v1711
    %v1717 = vadd.f32 %v1689, %v1710
    %v1718 = vadd.f32 %v1694, %v1709
    %v1719 = vadd.f32 %v1699, %v1708
    %v1720 = vrot.slane %v1674, 1
    %v1721 = vrot.slane %v1679, 1
    %v1722 = vrot.slane %v1684, 1
    %v1723 = vrot.slane %v1689, 1
    %v1724 = vrot.slane %v1694, 1
    %v1725 = vrot.slane %v1699, 1
    %v1726 = vsel %vm609, %v1724, %v1725
    %v1727 = vsel %vm609, %v1723, %v1724
    %v1728 = vsel %vm609, %v1722, %v1723
    %v1729 = vsel %vm609, %v1721, %v1722
    %v1730 = vsel %vm609, %v1720, %v1721
    %v1731 = vsel %vm609, %v1725, %v1720
    %v1732 = vadd.f32 %v1714, %v1730
    %v1733 = vadd.f32 %v1715, %v1729
    %v1734 = vadd.f32 %v1716, %v1728
    %v1735 = vadd.f32 %v1717, %v1727
    %v1736 = vadd.f32 %v1718, %v1726
    %v1737 = vadd.f32 %v1719, %v1731
    %v1738 = vrot.slane %v1732, 5
    %v1739 = vrot.slane %v1733, 5
    %v1740 = vrot.slane %v1734, 5
    %v1741 = vrot.slane %v1735, 5
    %v1742 = vrot.slane %v1736, 5
    %v1743 = vrot.slane %v1737, 5
    %v1744 = vsel %vm664, %v1742, %v1743
    %v1745 = vsel %vm664, %v1741, %v1742
    %v1746 = vsel %vm664, %v1740, %v1741
    %v1747 = vsel %vm664, %v1739, %v1740
    %v1748 = vsel %vm664, %v1738, %v1739
    %v1749 = vsel %vm664, %v1743, %v1738
    %v1750 = vadd.f32 %v1732, %v1749
    %v1751 = vadd.f32 %v1733, %v1748
    %v1752 = vadd.f32 %v1734, %v1747
    %v1753 = vadd.f32 %v1735, %v1746
    %v1754 = vadd.f32 %v1736, %v1745
    %v1755 = vadd.f32 %v1737, %v1744
    %v1756 = vrot.slane %v1732, 3
    %v1757 = vrot.slane %v1733, 3
    %v1758 = vrot.slane %v1734, 3
    %v1759 = vrot.slane %v1735, 3
    %v1760 = vrot.slane %v1736, 3
    %v1761 = vrot.slane %v1737, 3
    %v1762 = vsel %vm719, %v1760, %v1761
    %v1763 = vsel %vm719, %v1759, %v1760
    %v1764 = vsel %vm719, %v1758, %v1759
    %v1765 = vsel %vm719, %v1757, %v1758
    %v1766 = vsel %vm719, %v1756, %v1757
    %v1767 = vsel %vm719, %v1761, %v1756
    %v1768 = vadd.f32 %v1750, %v1766
    %v1769 = vadd.f32 %v1751, %v1765
    %v1770 = vadd.f32 %v1752, %v1764
    %v1771 = vadd.f32 %v1753, %v1763
    %v1772 = vadd.f32 %v1754, %v1762
    %v1773 = vadd.f32 %v1755, %v1767
    %v1774 = vrot.slane %v1674, 3
    %v1775 = vrot.slane %v1679, 3
    %v1776 = vrot.slane %v1684, 3
    %v1777 = vrot.slane %v1689, 3
    %v1778 = vrot.slane %v1694, 3
    %v1779 = vrot.slane %v1699, 3
    %v1780 = vsel %vm719, %v1778, %v1779
    %v1781 = vsel %vm719, %v1777, %v1778
    %v1782 = vsel %vm719, %v1776, %v1777
    %v1783 = vsel %vm719, %v1775, %v1776
    %v1784 = vsel %vm719, %v1774, %v1775
    %v1785 = vsel %vm719, %v1779, %v1774
    %v1786 = vadd.f32 %v1768, %v1785
    %v1787 = vadd.f32 %v1769, %v1784
    %v1788 = vadd.f32 %v1770, %v1783
    %v1789 = vadd.f32 %v1771, %v1782
    %v1790 = vadd.f32 %v1772, %v1781
    %v1791 = vadd.f32 %v1773, %v1780
    %v1792 = vrot.slane %v1674, 5
    %v1793 = vrot.slane %v1679, 5
    %v1794 = vrot.slane %v1684, 5
    %v1795 = vrot.slane %v1689, 5
    %v1796 = vrot.slane %v1694, 5
    %v1797 = vrot.slane %v1699, 5
    %v1798 = vsel %vm664, %v1796, %v1797
    %v1799 = vsel %vm664, %v1795, %v1796
    %v1800 = vsel %vm664, %v1794, %v1795
    %v1801 = vsel %vm664, %v1793, %v1794
    %v1802 = vsel %vm664, %v1792, %v1793
    %v1803 = vsel %vm664, %v1797, %v1792
    %v1804 = vadd.f32 %v1786, %v1802
    %v1805 = vadd.f32 %v1787, %v1801
    %v1806 = vadd.f32 %v1788, %v1800
    %v1807 = vadd.f32 %v1789, %v1799
    %v1808 = vadd.f32 %v1790, %v1798
    %v1809 = vadd.f32 %v1791, %v1803
    %v1810 = vrsqrt.pop %v1804
    %v1811 = vmul.f32 %v1804, %v1810
    %vm1812 = vcmp.eq.f32.partialorder %v1804, inf
    %v1813 = vsel %vm1812, %v1804, %v1811
    %vm1814 = vcmp.eq.f32.partialorder %v1804, 0.0
    %v1815 = vand.u32 %v1804, 2147483648
    %v1816 = vsel %vm1814, %v1815, %v1813
    %v1817 = vrsqrt.pop %v1805
    %v1818 = vmul.f32 %v1805, %v1817
    %vm1819 = vcmp.eq.f32.partialorder %v1805, inf
    %v1820 = vsel %vm1819, %v1805, %v1818
    %vm1821 = vcmp.eq.f32.partialorder %v1805, 0.0
    %v1822 = vand.u32 %v1805, 2147483648
    %v1823 = vsel %vm1821, %v1822, %v1820
    %v1824 = vrsqrt.pop %v1806
    %v1825 = vmul.f32 %v1806, %v1824
    %vm1826 = vcmp.eq.f32.partialorder %v1806, inf
    %v1827 = vsel %vm1826, %v1806, %v1825
    %vm1828 = vcmp.eq.f32.partialorder %v1806, 0.0
    %v1829 = vand.u32 %v1806, 2147483648
    %v1830 = vsel %vm1828, %v1829, %v1827
    %v1831 = vrsqrt.pop %v1807
    %v1832 = vmul.f32 %v1807, %v1831
    %vm1833 = vcmp.eq.f32.partialorder %v1807, inf
    %v1834 = vsel %vm1833, %v1807, %v1832
    %vm1835 = vcmp.eq.f32.partialorder %v1807, 0.0
    %v1836 = vand.u32 %v1807, 2147483648
    %v1837 = vsel %vm1835, %v1836, %v1834
    %v1838 = vrsqrt.pop %v1808
    %v1839 = vmul.f32 %v1808, %v1838
    %vm1840 = vcmp.eq.f32.partialorder %v1808, inf
    %v1841 = vsel %vm1840, %v1808, %v1839
    %vm1842 = vcmp.eq.f32.partialorder %v1808, 0.0
    %v1843 = vand.u32 %v1808, 2147483648
    %v1844 = vsel %vm1842, %v1843, %v1841
    %v1845 = vrsqrt.pop %v1809
    %v1846 = vmul.f32 %v1809, %v1845
    %vm1847 = vcmp.eq.f32.partialorder %v1809, inf
    %v1848 = vsel %vm1847, %v1809, %v1846
    %vm1849 = vcmp.eq.f32.partialorder %v1809, 0.0
    %v1850 = vand.u32 %v1809, 2147483648
    %v1851 = vsel %vm1849, %v1850, %v1848
    %v1852 = vadd.f32 %v1816, 2.220446e-16
    %v1853 = vadd.f32 %v1823, 2.220446e-16
    %v1854 = vadd.f32 %v1830, 2.220446e-16
    %v1855 = vadd.f32 %v1837, 2.220446e-16
    %v1856 = vadd.f32 %v1844, 2.220446e-16
    %v1857 = vadd.f32 %v1851, 2.220446e-16
    %v1858 = vadd.f32 %v1852, 2.220446e-16
    %v1859 = vadd.f32 %v1853, 2.220446e-16
    %v1860 = vadd.f32 %v1854, 2.220446e-16
    %v1861 = vadd.f32 %v1855, 2.220446e-16
    %v1862 = vadd.f32 %v1856, 2.220446e-16
    %v1863 = vadd.f32 %v1857, 2.220446e-16
    %v1864 = vadd.f32 %v1589, 2.220446e-16
    %v1865 = vadd.f32 %v1590, 2.220446e-16
    %v1866 = vadd.f32 %v1591, 2.220446e-16
    %v1867 = vadd.f32 %v1592, 2.220446e-16
    %v1868 = vadd.f32 %v1593, 2.220446e-16
    %v1869 = vadd.f32 %v1594, 2.220446e-16
    %v1870 = vrcp.pop %v1864
    %v1871 = vmul.f32 %v1858, %v1870
    %v1872 = vrcp.pop %v1865
    %v1873 = vmul.f32 %v1859, %v1872
    %v1874 = vrcp.pop %v1866
    %v1875 = vmul.f32 %v1860, %v1874
    %v1876 = vrcp.pop %v1867
    %v1877 = vmul.f32 %v1861, %v1876
    %v1878 = vrcp.pop %v1868
    %v1879 = vmul.f32 %v1862, %v1878
    %v1880 = vrcp.pop %v1869
    %v1881 = vmul.f32 %v1863, %v1880
    %vm1882 = vcmp.gt.f32.partialorder %v1871, 1.0
    %vm1883 = vcmp.gt.f32.partialorder %v1873, 1.0
    %vm1884 = vcmp.gt.f32.partialorder %v1875, 1.0
    %vm1885 = vcmp.gt.f32.partialorder %v1877, 1.0
    %vm1886 = vcmp.gt.f32.partialorder %v1879, 1.0
    %vm1887 = vcmp.gt.f32.partialorder %v1881, 1.0
    %v1888 = vsel %vm1882, 1.0, %v1871
    %v1889 = vsel %vm1883, 1.0, %v1873
    %v1890 = vsel %vm1884, 1.0, %v1875
    %v1891 = vsel %vm1885, 1.0, %v1877
    %v1892 = vsel %vm1886, 1.0, %v1879
    %v1893 = vsel %vm1887, 1.0, %v1881
    %vm1894 = vcmp.lt.f32.partialorder %v1888, 0.0
    %vm1895 = vcmp.lt.f32.partialorder %v1889, 0.0
    %vm1896 = vcmp.lt.f32.partialorder %v1890, 0.0
    %vm1897 = vcmp.lt.f32.partialorder %v1891, 0.0
    %vm1898 = vcmp.lt.f32.partialorder %v1892, 0.0
    %vm1899 = vcmp.lt.f32.partialorder %v1893, 0.0
    %v1900 = vsel %vm1894, 2.220446e-16, %v1888
    %v1901 = vsel %vm1895, 2.220446e-16, %v1889
    %v1902 = vsel %vm1896, 2.220446e-16, %v1890
    %v1903 = vsel %vm1897, 2.220446e-16, %v1891
    %v1904 = vsel %vm1898, 2.220446e-16, %v1892
    %v1905 = vsel %vm1899, 2.220446e-16, %v1893
    %v1906 = vmul.f32 %v1900, 1.5707964
    %v1907 = vmul.f32 %v1901, 1.5707964
    %v1908 = vmul.f32 %v1902, 1.5707964
    %v1909 = vmul.f32 %v1903, 1.5707964
    %v1910 = vmul.f32 %v1904, 1.5707964
    %v1911 = vmul.f32 %v1905, 1.5707964
    %v1912 = vand.u32 2147483647, %v1906
    %vm1913 = vcmp.le.f32.partialorder %v1912, 0.7853982
    %vm1914 = vcmp.lt.s32.totalorder %v1906, 0
    %v1915 = vand.u32 %v1906, 2139095040
    %v1916 = vshrl.u32 %v1915, 23
    %v1917 = vsub.s32 %v1916, 127
    %v1918 = vand.u32 2147483647, %v1906
    %v1919 = vand.u32 %v1918, 8388607
    %v1920 = vor.u32 %v1919, 8388608
    %v1921 = vsub.s32 0, %v1920
    %v1922 = vadd.s32 %v1917, 1
    %vm1923 = vcmp.gt.s32.totalorder %v1922, 0
    %v1924 = vsel %vm1923, %v1922, 0
    %v1925 = vshrl.u32 %v1924, 5
    %v1926 = vand.u32 %v1924, 31
    %v1927 = vsub.s32 32, %v1926
    %v1928 = vshrl.u32 683565275, %v1927
    %v1929 = vshll.u32 683565275, %v1926
    %v1930 = vshrl.u32 2475754826, %v1927
    %v1931 = vor.u32 %v1929, %v1930
    %v1932 = vshll.u32 2475754826, %v1926
    %v1933 = vshrl.u32 2131351028, %v1927
    %v1934 = vor.u32 %v1932, %v1933
    %v1935 = vshll.u32 2131351028, %v1926
    %v1936 = vshrl.u32 2102212464, %v1927
    %v1937 = vor.u32 %v1935, %v1936
    %v1938 = vshll.u32 2102212464, %v1926
    %v1939 = vshrl.u32 920167782, %v1927
    %v1940 = vor.u32 %v1938, %v1939
    %v1941 = vshll.u32 920167782, %v1926
    %v1942 = vshrl.u32 1326507024, %v1927
    %v1943 = vor.u32 %v1941, %v1942
    %vm1944 = vcmp.lt.s32.totalorder %v1925, 1
    %vm1945 = vcmp.lt.s32.totalorder %v1925, 2
    %vm1946 = vcmp.lt.s32.totalorder %v1925, 3
    %vm1947 = vcmp.lt.s32.totalorder %v1925, 4
    %v1948 = vsel %vm1944, %v1928, %v1931
    %v1949 = vsel %vm1947, %v1937, 2102212464
    %v1950 = vsel %vm1946, %v1934, %v1949
    %v1951 = vsel %vm1945, %v1948, %v1950
    %v1952 = vsel %vm1944, %v1931, %v1934
    %v1953 = vsel %vm1947, %v1940, 920167782
    %v1954 = vsel %vm1946, %v1937, %v1953
    %v1955 = vsel %vm1945, %v1952, %v1954
    %v1956 = vsel %vm1944, %v1934, %v1937
    %v1957 = vsel %vm1947, %v1943, 1326507024
    %v1958 = vsel %vm1946, %v1940, %v1957
    %v1959 = vsel %vm1945, %v1956, %v1958
    %v1960 = vshll.u32 %v1920, 8
    %v1961 = vmul.u32.u64.compose %v1960, %v1959
    %v1962 = vextract.low.u32 %v1961
    %v1963 = vextract.high.u32 %v1961
    %v1964 = vmul.u32.u64.compose %v1960, %v1955
    %v1965 = vextract.low.u32 %v1964
    %v1966 = vextract.high.u32 %v1964
    %v1967 = vmul.u32 %v1960, %v1951
    %v1968 = vadd.s32 %v1963, %v1965
    %vm1969 = vc.u32 %v1963, %v1965
    %v1970 = vadd.s32 %v1966, 1
    %v1971 = vsel %vm1969, %v1970, %v1966
    %v1972 = vadd.s32 %v1967, %v1971
    %v1973 = vadd.s32 %v1972, 536870912
    %v1974 = vshrl.u32 %v1973, 30
    %v1975 = vshll.u32 %v1974, 30
    %v1976 = vsub.s32 %v1972, %v1975
    %vm1977 = vcmp.lt.s32.totalorder %v1976, 0
    %v1978 = vsub.s32 0, %v1976
    %v1979 = vsel %vm1977, %v1978, %v1976
    %v1980 = vclz %v1979
    %v1981 = vsub.s32 %v1980, 2
    %vm1982 = vcmp.gt.s32.totalorder 0, %v1981
    %v1983 = vsel %vm1982, 0, %v1981
    %v1984 = vsub.s32 32, %v1983
    %v1985 = vshll.u32 %v1976, %v1983
    %v1986 = vshrl.u32 %v1968, %v1984
    %v1987 = vor.u32 %v1985, %v1986
    %v1988 = vsub.s32 4294967266, %v1983
    %v1989 = vadd.s32 %v1988, 127
    %v1990 = vshll.u32 %v1989, 23
    %v1991 = vor.u32 4788187, %v1990
    %v1992 = vand.u32 2147483647, %v1991
    %v1994 = vcvt.s32.f32 %v1987
    %v1995 = vmul.f32 %v1994, %v1992
    %v1996 = vxor.u32 %v1995, 2147483648
    %v1997 = vsel %vm1914, %v1996, %v1995
    %v1998 = vsub.s32 4, %v1974
    %v1999 = vsel %vm1914, %v1998, %v1974
    %v2000 = vsel %vm1913, %v1906, %v1997
    %v2001 = vsel %vm1913, 0, %v1999
    %v2002 = vcosq.f32.pop %v2000
    %v2003 = vsinq.f32.pop %v2000
    %vm2004 = vweird.f32 %v1906
    %v2005 = vadd.s32 %v2001, 3
    %v2006 = vand.u32 %v2005, 3
    %vm2007 = vcmp.lt.s32.totalorder %v2006, 2
    %vm2008 = vcmp.eq.s32.totalorder %v2006, 0
    %v2009 = vxor.u32 %v2003, 2147483648
    %v2010 = vsel %vm2008, %v2002, %v2009
    %vm2011 = vcmp.eq.s32.totalorder %v2006, 2
    %v2012 = vxor.u32 %v2002, 2147483648
    %v2013 = vsel %vm2011, %v2012, %v2003
    %v2014 = vsel %vm2007, %v2010, %v2013
    %v2015 = vsel %vm2004, nan, %v2014
    %v2016 = vand.u32 2147483647, %v1907
    %vm2017 = vcmp.le.f32.partialorder %v2016, 0.7853982
    %vm2018 = vcmp.lt.s32.totalorder %v1907, 0
    %v2019 = vand.u32 %v1907, 2139095040
    %v2020 = vshrl.u32 %v2019, 23
    %v2021 = vsub.s32 %v2020, 127
    %v2022 = vand.u32 2147483647, %v1907
    %v2023 = vand.u32 %v2022, 8388607
    %v2024 = vor.u32 %v2023, 8388608
    %v2025 = vsub.s32 0, %v2024
    %v2026 = vadd.s32 %v2021, 1
    %vm2027 = vcmp.gt.s32.totalorder %v2026, 0
    %v2028 = vsel %vm2027, %v2026, 0
    %v2029 = vshrl.u32 %v2028, 5
    %v2030 = vand.u32 %v2028, 31
    %v2031 = vsub.s32 32, %v2030
    %v2032 = vshrl.u32 683565275, %v2031
    %v2033 = vshll.u32 683565275, %v2030
    %v2034 = vshrl.u32 2475754826, %v2031
    %v2035 = vor.u32 %v2033, %v2034
    %v2036 = vshll.u32 2475754826, %v2030
    %v2037 = vshrl.u32 2131351028, %v2031
    %v2038 = vor.u32 %v2036, %v2037
    %v2039 = vshll.u32 2131351028, %v2030
    %v2040 = vshrl.u32 2102212464, %v2031
    %v2041 = vor.u32 %v2039, %v2040
    %v2042 = vshll.u32 2102212464, %v2030
    %v2043 = vshrl.u32 920167782, %v2031
    %v2044 = vor.u32 %v2042, %v2043
    %v2045 = vshll.u32 920167782, %v2030
    %v2046 = vshrl.u32 1326507024, %v2031
    %v2047 = vor.u32 %v2045, %v2046
    %vm2048 = vcmp.lt.s32.totalorder %v2029, 1
    %vm2049 = vcmp.lt.s32.totalorder %v2029, 2
    %vm2050 = vcmp.lt.s32.totalorder %v2029, 3
    %vm2051 = vcmp.lt.s32.totalorder %v2029, 4
    %v2052 = vsel %vm2048, %v2032, %v2035
    %v2053 = vsel %vm2051, %v2041, 2102212464
    %v2054 = vsel %vm2050, %v2038, %v2053
    %v2055 = vsel %vm2049, %v2052, %v2054
    %v2056 = vsel %vm2048, %v2035, %v2038
    %v2057 = vsel %vm2051, %v2044, 920167782
    %v2058 = vsel %vm2050, %v2041, %v2057
    %v2059 = vsel %vm2049, %v2056, %v2058
    %v2060 = vsel %vm2048, %v2038, %v2041
    %v2061 = vsel %vm2051, %v2047, 1326507024
    %v2062 = vsel %vm2050, %v2044, %v2061
    %v2063 = vsel %vm2049, %v2060, %v2062
    %v2064 = vshll.u32 %v2024, 8
    %v2065 = vmul.u32.u64.compose %v2064, %v2063
    %v2066 = vextract.low.u32 %v2065
    %v2067 = vextract.high.u32 %v2065
    %v2068 = vmul.u32.u64.compose %v2064, %v2059
    %v2069 = vextract.low.u32 %v2068
    %v2070 = vextract.high.u32 %v2068
    %v2071 = vmul.u32 %v2064, %v2055
    %v2072 = vadd.s32 %v2067, %v2069
    %vm2073 = vc.u32 %v2067, %v2069
    %v2074 = vadd.s32 %v2070, 1
    %v2075 = vsel %vm2073, %v2074, %v2070
    %v2076 = vadd.s32 %v2071, %v2075
    %v2077 = vadd.s32 %v2076, 536870912
    %v2078 = vshrl.u32 %v2077, 30
    %v2079 = vshll.u32 %v2078, 30
    %v2080 = vsub.s32 %v2076, %v2079
    %vm2081 = vcmp.lt.s32.totalorder %v2080, 0
    %v2082 = vsub.s32 0, %v2080
    %v2083 = vsel %vm2081, %v2082, %v2080
    %v2084 = vclz %v2083
    %v2085 = vsub.s32 %v2084, 2
    %vm2086 = vcmp.gt.s32.totalorder 0, %v2085
    %v2087 = vsel %vm2086, 0, %v2085
    %v2088 = vsub.s32 32, %v2087
    %v2089 = vshll.u32 %v2080, %v2087
    %v2090 = vshrl.u32 %v2072, %v2088
    %v2091 = vor.u32 %v2089, %v2090
    %v2092 = vsub.s32 4294967266, %v2087
    %v2093 = vadd.s32 %v2092, 127
    %v2094 = vshll.u32 %v2093, 23
    %v2095 = vor.u32 4788187, %v2094
    %v2096 = vand.u32 2147483647, %v2095
    %v2098 = vcvt.s32.f32 %v2091
    %v2099 = vmul.f32 %v2098, %v2096
    %v2100 = vxor.u32 %v2099, 2147483648
    %v2101 = vsel %vm2018, %v2100, %v2099
    %v2102 = vsub.s32 4, %v2078
    %v2103 = vsel %vm2018, %v2102, %v2078
    %v2104 = vsel %vm2017, %v1907, %v2101
    %v2105 = vsel %vm2017, 0, %v2103
    %v2106 = vcosq.f32.pop %v2104
    %v2107 = vsinq.f32.pop %v2104
    %vm2108 = vweird.f32 %v1907
    %v2109 = vadd.s32 %v2105, 3
    %v2110 = vand.u32 %v2109, 3
    %vm2111 = vcmp.lt.s32.totalorder %v2110, 2
    %vm2112 = vcmp.eq.s32.totalorder %v2110, 0
    %v2113 = vxor.u32 %v2107, 2147483648
    %v2114 = vsel %vm2112, %v2106, %v2113
    %vm2115 = vcmp.eq.s32.totalorder %v2110, 2
    %v2116 = vxor.u32 %v2106, 2147483648
    %v2117 = vsel %vm2115, %v2116, %v2107
    %v2118 = vsel %vm2111, %v2114, %v2117
    %v2119 = vsel %vm2108, nan, %v2118
    %v2120 = vand.u32 2147483647, %v1908
    %vm2121 = vcmp.le.f32.partialorder %v2120, 0.7853982
    %vm2122 = vcmp.lt.s32.totalorder %v1908, 0
    %v2123 = vand.u32 %v1908, 2139095040
    %v2124 = vshrl.u32 %v2123, 23
    %v2125 = vsub.s32 %v2124, 127
    %v2126 = vand.u32 2147483647, %v1908
    %v2127 = vand.u32 %v2126, 8388607
    %v2128 = vor.u32 %v2127, 8388608
    %v2129 = vsub.s32 0, %v2128
    %v2130 = vadd.s32 %v2125, 1
    %vm2131 = vcmp.gt.s32.totalorder %v2130, 0
    %v2132 = vsel %vm2131, %v2130, 0
    %v2133 = vshrl.u32 %v2132, 5
    %v2134 = vand.u32 %v2132, 31
    %v2135 = vsub.s32 32, %v2134
    %v2136 = vshrl.u32 683565275, %v2135
    %v2137 = vshll.u32 683565275, %v2134
    %v2138 = vshrl.u32 2475754826, %v2135
    %v2139 = vor.u32 %v2137, %v2138
    %v2140 = vshll.u32 2475754826, %v2134
    %v2141 = vshrl.u32 2131351028, %v2135
    %v2142 = vor.u32 %v2140, %v2141
    %v2143 = vshll.u32 2131351028, %v2134
    %v2144 = vshrl.u32 2102212464, %v2135
    %v2145 = vor.u32 %v2143, %v2144
    %v2146 = vshll.u32 2102212464, %v2134
    %v2147 = vshrl.u32 920167782, %v2135
    %v2148 = vor.u32 %v2146, %v2147
    %v2149 = vshll.u32 920167782, %v2134
    %v2150 = vshrl.u32 1326507024, %v2135
    %v2151 = vor.u32 %v2149, %v2150
    %vm2152 = vcmp.lt.s32.totalorder %v2133, 1
    %vm2153 = vcmp.lt.s32.totalorder %v2133, 2
    %vm2154 = vcmp.lt.s32.totalorder %v2133, 3
    %vm2155 = vcmp.lt.s32.totalorder %v2133, 4
    %v2156 = vsel %vm2152, %v2136, %v2139
    %v2157 = vsel %vm2155, %v2145, 2102212464
    %v2158 = vsel %vm2154, %v2142, %v2157
    %v2159 = vsel %vm2153, %v2156, %v2158
    %v2160 = vsel %vm2152, %v2139, %v2142
    %v2161 = vsel %vm2155, %v2148, 920167782
    %v2162 = vsel %vm2154, %v2145, %v2161
    %v2163 = vsel %vm2153, %v2160, %v2162
    %v2164 = vsel %vm2152, %v2142, %v2145
    %v2165 = vsel %vm2155, %v2151, 1326507024
    %v2166 = vsel %vm2154, %v2148, %v2165
    %v2167 = vsel %vm2153, %v2164, %v2166
    %v2168 = vshll.u32 %v2128, 8
    %v2169 = vmul.u32.u64.compose %v2168, %v2167
    %v2170 = vextract.low.u32 %v2169
    %v2171 = vextract.high.u32 %v2169
    %v2172 = vmul.u32.u64.compose %v2168, %v2163
    %v2173 = vextract.low.u32 %v2172
    %v2174 = vextract.high.u32 %v2172
    %v2175 = vmul.u32 %v2168, %v2159
    %v2176 = vadd.s32 %v2171, %v2173
    %vm2177 = vc.u32 %v2171, %v2173
    %v2178 = vadd.s32 %v2174, 1
    %v2179 = vsel %vm2177, %v2178, %v2174
    %v2180 = vadd.s32 %v2175, %v2179
    %v2181 = vadd.s32 %v2180, 536870912
    %v2182 = vshrl.u32 %v2181, 30
    %v2183 = vshll.u32 %v2182, 30
    %v2184 = vsub.s32 %v2180, %v2183
    %vm2185 = vcmp.lt.s32.totalorder %v2184, 0
    %v2186 = vsub.s32 0, %v2184
    %v2187 = vsel %vm2185, %v2186, %v2184
    %v2188 = vclz %v2187
    %v2189 = vsub.s32 %v2188, 2
    %vm2190 = vcmp.gt.s32.totalorder 0, %v2189
    %v2191 = vsel %vm2190, 0, %v2189
    %v2192 = vsub.s32 32, %v2191
    %v2193 = vshll.u32 %v2184, %v2191
    %v2194 = vshrl.u32 %v2176, %v2192
    %v2195 = vor.u32 %v2193, %v2194
    %v2196 = vsub.s32 4294967266, %v2191
    %v2197 = vadd.s32 %v2196, 127
    %v2198 = vshll.u32 %v2197, 23
    %v2199 = vor.u32 4788187, %v2198
    %v2200 = vand.u32 2147483647, %v2199
    %v2202 = vcvt.s32.f32 %v2195
    %v2203 = vmul.f32 %v2202, %v2200
    %v2204 = vxor.u32 %v2203, 2147483648
    %v2205 = vsel %vm2122, %v2204, %v2203
    %v2206 = vsub.s32 4, %v2182
    %v2207 = vsel %vm2122, %v2206, %v2182
    %v2208 = vsel %vm2121, %v1908, %v2205
    %v2209 = vsel %vm2121, 0, %v2207
    %v2210 = vcosq.f32.pop %v2208
    %v2211 = vsinq.f32.pop %v2208
    %vm2212 = vweird.f32 %v1908
    %v2213 = vadd.s32 %v2209, 3
    %v2214 = vand.u32 %v2213, 3
    %vm2215 = vcmp.lt.s32.totalorder %v2214, 2
    %vm2216 = vcmp.eq.s32.totalorder %v2214, 0
    %v2217 = vxor.u32 %v2211, 2147483648
    %v2218 = vsel %vm2216, %v2210, %v2217
    %vm2219 = vcmp.eq.s32.totalorder %v2214, 2
    %v2220 = vxor.u32 %v2210, 2147483648
    %v2221 = vsel %vm2219, %v2220, %v2211
    %v2222 = vsel %vm2215, %v2218, %v2221
    %v2223 = vsel %vm2212, nan, %v2222
    %v2224 = vand.u32 2147483647, %v1909
    %vm2225 = vcmp.le.f32.partialorder %v2224, 0.7853982
    %vm2226 = vcmp.lt.s32.totalorder %v1909, 0
    %v2227 = vand.u32 %v1909, 2139095040
    %v2228 = vshrl.u32 %v2227, 23
    %v2229 = vsub.s32 %v2228, 127
    %v2230 = vand.u32 2147483647, %v1909
    %v2231 = vand.u32 %v2230, 8388607
    %v2232 = vor.u32 %v2231, 8388608
    %v2233 = vsub.s32 0, %v2232
    %v2234 = vadd.s32 %v2229, 1
    %vm2235 = vcmp.gt.s32.totalorder %v2234, 0
    %v2236 = vsel %vm2235, %v2234, 0
    %v2237 = vshrl.u32 %v2236, 5
    %v2238 = vand.u32 %v2236, 31
    %v2239 = vsub.s32 32, %v2238
    %v2240 = vshrl.u32 683565275, %v2239
    %v2241 = vshll.u32 683565275, %v2238
    %v2242 = vshrl.u32 2475754826, %v2239
    %v2243 = vor.u32 %v2241, %v2242
    %v2244 = vshll.u32 2475754826, %v2238
    %v2245 = vshrl.u32 2131351028, %v2239
    %v2246 = vor.u32 %v2244, %v2245
    %v2247 = vshll.u32 2131351028, %v2238
    %v2248 = vshrl.u32 2102212464, %v2239
    %v2249 = vor.u32 %v2247, %v2248
    %v2250 = vshll.u32 2102212464, %v2238
    %v2251 = vshrl.u32 920167782, %v2239
    %v2252 = vor.u32 %v2250, %v2251
    %v2253 = vshll.u32 920167782, %v2238
    %v2254 = vshrl.u32 1326507024, %v2239
    %v2255 = vor.u32 %v2253, %v2254
    %vm2256 = vcmp.lt.s32.totalorder %v2237, 1
    %vm2257 = vcmp.lt.s32.totalorder %v2237, 2
    %vm2258 = vcmp.lt.s32.totalorder %v2237, 3
    %vm2259 = vcmp.lt.s32.totalorder %v2237, 4
    %v2260 = vsel %vm2256, %v2240, %v2243
    %v2261 = vsel %vm2259, %v2249, 2102212464
    %v2262 = vsel %vm2258, %v2246, %v2261
    %v2263 = vsel %vm2257, %v2260, %v2262
    %v2264 = vsel %vm2256, %v2243, %v2246
    %v2265 = vsel %vm2259, %v2252, 920167782
    %v2266 = vsel %vm2258, %v2249, %v2265
    %v2267 = vsel %vm2257, %v2264, %v2266
    %v2268 = vsel %vm2256, %v2246, %v2249
    %v2269 = vsel %vm2259, %v2255, 1326507024
    %v2270 = vsel %vm2258, %v2252, %v2269
    %v2271 = vsel %vm2257, %v2268, %v2270
    %v2272 = vshll.u32 %v2232, 8
    %v2273 = vmul.u32.u64.compose %v2272, %v2271
    %v2274 = vextract.low.u32 %v2273
    %v2275 = vextract.high.u32 %v2273
    %v2276 = vmul.u32.u64.compose %v2272, %v2267
    %v2277 = vextract.low.u32 %v2276
    %v2278 = vextract.high.u32 %v2276
    %v2279 = vmul.u32 %v2272, %v2263
    %v2280 = vadd.s32 %v2275, %v2277
    %vm2281 = vc.u32 %v2275, %v2277
    %v2282 = vadd.s32 %v2278, 1
    %v2283 = vsel %vm2281, %v2282, %v2278
    %v2284 = vadd.s32 %v2279, %v2283
    %v2285 = vadd.s32 %v2284, 536870912
    %v2286 = vshrl.u32 %v2285, 30
    %v2287 = vshll.u32 %v2286, 30
    %v2288 = vsub.s32 %v2284, %v2287
    %vm2289 = vcmp.lt.s32.totalorder %v2288, 0
    %v2290 = vsub.s32 0, %v2288
    %v2291 = vsel %vm2289, %v2290, %v2288
    %v2292 = vclz %v2291
    %v2293 = vsub.s32 %v2292, 2
    %vm2294 = vcmp.gt.s32.totalorder 0, %v2293
    %v2295 = vsel %vm2294, 0, %v2293
    %v2296 = vsub.s32 32, %v2295
    %v2297 = vshll.u32 %v2288, %v2295
    %v2298 = vshrl.u32 %v2280, %v2296
    %v2299 = vor.u32 %v2297, %v2298
    %v2300 = vsub.s32 4294967266, %v2295
    %v2301 = vadd.s32 %v2300, 127
    %v2302 = vshll.u32 %v2301, 23
    %v2303 = vor.u32 4788187, %v2302
    %v2304 = vand.u32 2147483647, %v2303
    %v2306 = vcvt.s32.f32 %v2299
    %v2307 = vmul.f32 %v2306, %v2304
    %v2308 = vxor.u32 %v2307, 2147483648
    %v2309 = vsel %vm2226, %v2308, %v2307
    %v2310 = vsub.s32 4, %v2286
    %v2311 = vsel %vm2226, %v2310, %v2286
    %v2312 = vsel %vm2225, %v1909, %v2309
    %v2313 = vsel %vm2225, 0, %v2311
    %v2314 = vcosq.f32.pop %v2312
    %v2315 = vsinq.f32.pop %v2312
    %vm2316 = vweird.f32 %v1909
    %v2317 = vadd.s32 %v2313, 3
    %v2318 = vand.u32 %v2317, 3
    %vm2319 = vcmp.lt.s32.totalorder %v2318, 2
    %vm2320 = vcmp.eq.s32.totalorder %v2318, 0
    %v2321 = vxor.u32 %v2315, 2147483648
    %v2322 = vsel %vm2320, %v2314, %v2321
    %vm2323 = vcmp.eq.s32.totalorder %v2318, 2
    %v2324 = vxor.u32 %v2314, 2147483648
    %v2325 = vsel %vm2323, %v2324, %v2315
    %v2326 = vsel %vm2319, %v2322, %v2325
    %v2327 = vsel %vm2316, nan, %v2326
    %v2328 = vand.u32 2147483647, %v1910
    %vm2329 = vcmp.le.f32.partialorder %v2328, 0.7853982
    %vm2330 = vcmp.lt.s32.totalorder %v1910, 0
    %v2331 = vand.u32 %v1910, 2139095040
    %v2332 = vshrl.u32 %v2331, 23
    %v2333 = vsub.s32 %v2332, 127
    %v2334 = vand.u32 2147483647, %v1910
    %v2335 = vand.u32 %v2334, 8388607
    %v2336 = vor.u32 %v2335, 8388608
    %v2337 = vsub.s32 0, %v2336
    %v2338 = vadd.s32 %v2333, 1
    %vm2339 = vcmp.gt.s32.totalorder %v2338, 0
    %v2340 = vsel %vm2339, %v2338, 0
    %v2341 = vshrl.u32 %v2340, 5
    %v2342 = vand.u32 %v2340, 31
    %v2343 = vsub.s32 32, %v2342
    %v2344 = vshrl.u32 683565275, %v2343
    %v2345 = vshll.u32 683565275, %v2342
    %v2346 = vshrl.u32 2475754826, %v2343
    %v2347 = vor.u32 %v2345, %v2346
    %v2348 = vshll.u32 2475754826, %v2342
    %v2349 = vshrl.u32 2131351028, %v2343
    %v2350 = vor.u32 %v2348, %v2349
    %v2351 = vshll.u32 2131351028, %v2342
    %v2352 = vshrl.u32 2102212464, %v2343
    %v2353 = vor.u32 %v2351, %v2352
    %v2354 = vshll.u32 2102212464, %v2342
    %v2355 = vshrl.u32 920167782, %v2343
    %v2356 = vor.u32 %v2354, %v2355
    %v2357 = vshll.u32 920167782, %v2342
    %v2358 = vshrl.u32 1326507024, %v2343
    %v2359 = vor.u32 %v2357, %v2358
    %vm2360 = vcmp.lt.s32.totalorder %v2341, 1
    %vm2361 = vcmp.lt.s32.totalorder %v2341, 2
    %vm2362 = vcmp.lt.s32.totalorder %v2341, 3
    %vm2363 = vcmp.lt.s32.totalorder %v2341, 4
    %v2364 = vsel %vm2360, %v2344, %v2347
    %v2365 = vsel %vm2363, %v2353, 2102212464
    %v2366 = vsel %vm2362, %v2350, %v2365
    %v2367 = vsel %vm2361, %v2364, %v2366
    %v2368 = vsel %vm2360, %v2347, %v2350
    %v2369 = vsel %vm2363, %v2356, 920167782
    %v2370 = vsel %vm2362, %v2353, %v2369
    %v2371 = vsel %vm2361, %v2368, %v2370
    %v2372 = vsel %vm2360, %v2350, %v2353
    %v2373 = vsel %vm2363, %v2359, 1326507024
    %v2374 = vsel %vm2362, %v2356, %v2373
    %v2375 = vsel %vm2361, %v2372, %v2374
    %v2376 = vshll.u32 %v2336, 8
    %v2377 = vmul.u32.u64.compose %v2376, %v2375
    %v2378 = vextract.low.u32 %v2377
    %v2379 = vextract.high.u32 %v2377
    %v2380 = vmul.u32.u64.compose %v2376, %v2371
    %v2381 = vextract.low.u32 %v2380
    %v2382 = vextract.high.u32 %v2380
    %v2383 = vmul.u32 %v2376, %v2367
    %v2384 = vadd.s32 %v2379, %v2381
    %vm2385 = vc.u32 %v2379, %v2381
    %v2386 = vadd.s32 %v2382, 1
    %v2387 = vsel %vm2385, %v2386, %v2382
    %v2388 = vadd.s32 %v2383, %v2387
    %v2389 = vadd.s32 %v2388, 536870912
    %v2390 = vshrl.u32 %v2389, 30
    %v2391 = vshll.u32 %v2390, 30
    %v2392 = vsub.s32 %v2388, %v2391
    %vm2393 = vcmp.lt.s32.totalorder %v2392, 0
    %v2394 = vsub.s32 0, %v2392
    %v2395 = vsel %vm2393, %v2394, %v2392
    %v2396 = vclz %v2395
    %v2397 = vsub.s32 %v2396, 2
    %vm2398 = vcmp.gt.s32.totalorder 0, %v2397
    %v2399 = vsel %vm2398, 0, %v2397
    %v2400 = vsub.s32 32, %v2399
    %v2401 = vshll.u32 %v2392, %v2399
    %v2402 = vshrl.u32 %v2384, %v2400
    %v2403 = vor.u32 %v2401, %v2402
    %v2404 = vsub.s32 4294967266, %v2399
    %v2405 = vadd.s32 %v2404, 127
    %v2406 = vshll.u32 %v2405, 23
    %v2407 = vor.u32 4788187, %v2406
    %v2408 = vand.u32 2147483647, %v2407
    %v2410 = vcvt.s32.f32 %v2403
    %v2411 = vmul.f32 %v2410, %v2408
    %v2412 = vxor.u32 %v2411, 2147483648
    %v2413 = vsel %vm2330, %v2412, %v2411
    %v2414 = vsub.s32 4, %v2390
    %v2415 = vsel %vm2330, %v2414, %v2390
    %v2416 = vsel %vm2329, %v1910, %v2413
    %v2417 = vsel %vm2329, 0, %v2415
    %v2418 = vcosq.f32.pop %v2416
    %v2419 = vsinq.f32.pop %v2416
    %vm2420 = vweird.f32 %v1910
    %v2421 = vadd.s32 %v2417, 3
    %v2422 = vand.u32 %v2421, 3
    %vm2423 = vcmp.lt.s32.totalorder %v2422, 2
    %vm2424 = vcmp.eq.s32.totalorder %v2422, 0
    %v2425 = vxor.u32 %v2419, 2147483648
    %v2426 = vsel %vm2424, %v2418, %v2425
    %vm2427 = vcmp.eq.s32.totalorder %v2422, 2
    %v2428 = vxor.u32 %v2418, 2147483648
    %v2429 = vsel %vm2427, %v2428, %v2419
    %v2430 = vsel %vm2423, %v2426, %v2429
    %v2431 = vsel %vm2420, nan, %v2430
    %v2432 = vand.u32 2147483647, %v1911
    %vm2433 = vcmp.le.f32.partialorder %v2432, 0.7853982
    %vm2434 = vcmp.lt.s32.totalorder %v1911, 0
    %v2435 = vand.u32 %v1911, 2139095040
    %v2436 = vshrl.u32 %v2435, 23
    %v2437 = vsub.s32 %v2436, 127
    %v2438 = vand.u32 2147483647, %v1911
    %v2439 = vand.u32 %v2438, 8388607
    %v2440 = vor.u32 %v2439, 8388608
    %v2441 = vsub.s32 0, %v2440
    %v2442 = vadd.s32 %v2437, 1
    %vm2443 = vcmp.gt.s32.totalorder %v2442, 0
    %v2444 = vsel %vm2443, %v2442, 0
    %v2445 = vshrl.u32 %v2444, 5
    %v2446 = vand.u32 %v2444, 31
    %v2447 = vsub.s32 32, %v2446
    %v2448 = vshrl.u32 683565275, %v2447
    %v2449 = vshll.u32 683565275, %v2446
    %v2450 = vshrl.u32 2475754826, %v2447
    %v2451 = vor.u32 %v2449, %v2450
    %v2452 = vshll.u32 2475754826, %v2446
    %v2453 = vshrl.u32 2131351028, %v2447
    %v2454 = vor.u32 %v2452, %v2453
    %v2455 = vshll.u32 2131351028, %v2446
    %v2456 = vshrl.u32 2102212464, %v2447
    %v2457 = vor.u32 %v2455, %v2456
    %v2458 = vshll.u32 2102212464, %v2446
    %v2459 = vshrl.u32 920167782, %v2447
    %v2460 = vor.u32 %v2458, %v2459
    %v2461 = vshll.u32 920167782, %v2446
    %v2462 = vshrl.u32 1326507024, %v2447
    %v2463 = vor.u32 %v2461, %v2462
    %vm2464 = vcmp.lt.s32.totalorder %v2445, 1
    %vm2465 = vcmp.lt.s32.totalorder %v2445, 2
    %vm2466 = vcmp.lt.s32.totalorder %v2445, 3
    %vm2467 = vcmp.lt.s32.totalorder %v2445, 4
    %v2468 = vsel %vm2464, %v2448, %v2451
    %v2469 = vsel %vm2467, %v2457, 2102212464
    %v2470 = vsel %vm2466, %v2454, %v2469
    %v2471 = vsel %vm2465, %v2468, %v2470
    %v2472 = vsel %vm2464, %v2451, %v2454
    %v2473 = vsel %vm2467, %v2460, 920167782
    %v2474 = vsel %vm2466, %v2457, %v2473
    %v2475 = vsel %vm2465, %v2472, %v2474
    %v2476 = vsel %vm2464, %v2454, %v2457
    %v2477 = vsel %vm2467, %v2463, 1326507024
    %v2478 = vsel %vm2466, %v2460, %v2477
    %v2479 = vsel %vm2465, %v2476, %v2478
    %v2480 = vshll.u32 %v2440, 8
    %v2481 = vmul.u32.u64.compose %v2480, %v2479
    %v2482 = vextract.low.u32 %v2481
    %v2483 = vextract.high.u32 %v2481
    %v2484 = vmul.u32.u64.compose %v2480, %v2475
    %v2485 = vextract.low.u32 %v2484
    %v2486 = vextract.high.u32 %v2484
    %v2487 = vmul.u32 %v2480, %v2471
    %v2488 = vadd.s32 %v2483, %v2485
    %vm2489 = vc.u32 %v2483, %v2485
    %v2490 = vadd.s32 %v2486, 1
    %v2491 = vsel %vm2489, %v2490, %v2486
    %v2492 = vadd.s32 %v2487, %v2491
    %v2493 = vadd.s32 %v2492, 536870912
    %v2494 = vshrl.u32 %v2493, 30
    %v2495 = vshll.u32 %v2494, 30
    %v2496 = vsub.s32 %v2492, %v2495
    %vm2497 = vcmp.lt.s32.totalorder %v2496, 0
    %v2498 = vsub.s32 0, %v2496
    %v2499 = vsel %vm2497, %v2498, %v2496
    %v2500 = vclz %v2499
    %v2501 = vsub.s32 %v2500, 2
    %vm2502 = vcmp.gt.s32.totalorder 0, %v2501
    %v2503 = vsel %vm2502, 0, %v2501
    %v2504 = vsub.s32 32, %v2503
    %v2505 = vshll.u32 %v2496, %v2503
    %v2506 = vshrl.u32 %v2488, %v2504
    %v2507 = vor.u32 %v2505, %v2506
    %v2508 = vsub.s32 4294967266, %v2503
    %v2509 = vadd.s32 %v2508, 127
    %v2510 = vshll.u32 %v2509, 23
    %v2511 = vor.u32 4788187, %v2510
    %v2512 = vand.u32 2147483647, %v2511
    %v2514 = vcvt.s32.f32 %v2507
    %v2515 = vmul.f32 %v2514, %v2512
    %v2516 = vxor.u32 %v2515, 2147483648
    %v2517 = vsel %vm2434, %v2516, %v2515
    %v2518 = vsub.s32 4, %v2494
    %v2519 = vsel %vm2434, %v2518, %v2494
    %v2520 = vsel %vm2433, %v1911, %v2517
    %v2521 = vsel %vm2433, 0, %v2519
    %v2522 = vcosq.f32.pop %v2520
    %v2523 = vsinq.f32.pop %v2520
    %vm2524 = vweird.f32 %v1911
    %v2525 = vadd.s32 %v2521, 3
    %v2526 = vand.u32 %v2525, 3
    %vm2527 = vcmp.lt.s32.totalorder %v2526, 2
    %vm2528 = vcmp.eq.s32.totalorder %v2526, 0
    %v2529 = vxor.u32 %v2523, 2147483648
    %v2530 = vsel %vm2528, %v2522, %v2529
    %vm2531 = vcmp.eq.s32.totalorder %v2526, 2
    %v2532 = vxor.u32 %v2522, 2147483648
    %v2533 = vsel %vm2531, %v2532, %v2523
    %v2534 = vsel %vm2527, %v2530, %v2533
    %v2535 = vsel %vm2524, nan, %v2534
    %v2536 = vand.u32 2147483647, %v1906
    %vm2537 = vcmp.le.f32.partialorder %v2536, 0.7853982
    %vm2538 = vcmp.lt.s32.totalorder %v1906, 0
    %v2539 = vand.u32 %v1906, 2139095040
    %v2540 = vshrl.u32 %v2539, 23
    %v2541 = vsub.s32 %v2540, 127
    %v2542 = vand.u32 2147483647, %v1906
    %v2543 = vand.u32 %v2542, 8388607
    %v2544 = vor.u32 %v2543, 8388608
    %v2545 = vsub.s32 0, %v2544
    %v2546 = vadd.s32 %v2541, 1
    %vm2547 = vcmp.gt.s32.totalorder %v2546, 0
    %v2548 = vsel %vm2547, %v2546, 0
    %v2549 = vshrl.u32 %v2548, 5
    %v2550 = vand.u32 %v2548, 31
    %v2551 = vsub.s32 32, %v2550
    %v2552 = vshrl.u32 683565275, %v2551
    %v2553 = vshll.u32 683565275, %v2550
    %v2554 = vshrl.u32 2475754826, %v2551
    %v2555 = vor.u32 %v2553, %v2554
    %v2556 = vshll.u32 2475754826, %v2550
    %v2557 = vshrl.u32 2131351028, %v2551
    %v2558 = vor.u32 %v2556, %v2557
    %v2559 = vshll.u32 2131351028, %v2550
    %v2560 = vshrl.u32 2102212464, %v2551
    %v2561 = vor.u32 %v2559, %v2560
    %v2562 = vshll.u32 2102212464, %v2550
    %v2563 = vshrl.u32 920167782, %v2551
    %v2564 = vor.u32 %v2562, %v2563
    %v2565 = vshll.u32 920167782, %v2550
    %v2566 = vshrl.u32 1326507024, %v2551
    %v2567 = vor.u32 %v2565, %v2566
    %vm2568 = vcmp.lt.s32.totalorder %v2549, 1
    %vm2569 = vcmp.lt.s32.totalorder %v2549, 2
    %vm2570 = vcmp.lt.s32.totalorder %v2549, 3
    %vm2571 = vcmp.lt.s32.totalorder %v2549, 4
    %v2572 = vsel %vm2568, %v2552, %v2555
    %v2573 = vsel %vm2571, %v2561, 2102212464
    %v2574 = vsel %vm2570, %v2558, %v2573
    %v2575 = vsel %vm2569, %v2572, %v2574
    %v2576 = vsel %vm2568, %v2555, %v2558
    %v2577 = vsel %vm2571, %v2564, 920167782
    %v2578 = vsel %vm2570, %v2561, %v2577
    %v2579 = vsel %vm2569, %v2576, %v2578
    %v2580 = vsel %vm2568, %v2558, %v2561
    %v2581 = vsel %vm2571, %v2567, 1326507024
    %v2582 = vsel %vm2570, %v2564, %v2581
    %v2583 = vsel %vm2569, %v2580, %v2582
    %v2584 = vshll.u32 %v2544, 8
    %v2585 = vmul.u32.u64.compose %v2584, %v2583
    %v2586 = vextract.low.u32 %v2585
    %v2587 = vextract.high.u32 %v2585
    %v2588 = vmul.u32.u64.compose %v2584, %v2579
    %v2589 = vextract.low.u32 %v2588
    %v2590 = vextract.high.u32 %v2588
    %v2591 = vmul.u32 %v2584, %v2575
    %v2592 = vadd.s32 %v2587, %v2589
    %vm2593 = vc.u32 %v2587, %v2589
    %v2594 = vadd.s32 %v2590, 1
    %v2595 = vsel %vm2593, %v2594, %v2590
    %v2596 = vadd.s32 %v2591, %v2595
    %v2597 = vadd.s32 %v2596, 536870912
    %v2598 = vshrl.u32 %v2597, 30
    %v2599 = vshll.u32 %v2598, 30
    %v2600 = vsub.s32 %v2596, %v2599
    %vm2601 = vcmp.lt.s32.totalorder %v2600, 0
    %v2602 = vsub.s32 0, %v2600
    %v2603 = vsel %vm2601, %v2602, %v2600
    %v2604 = vclz %v2603
    %v2605 = vsub.s32 %v2604, 2
    %vm2606 = vcmp.gt.s32.totalorder 0, %v2605
    %v2607 = vsel %vm2606, 0, %v2605
    %v2608 = vsub.s32 32, %v2607
    %v2609 = vshll.u32 %v2600, %v2607
    %v2610 = vshrl.u32 %v2592, %v2608
    %v2611 = vor.u32 %v2609, %v2610
    %v2612 = vsub.s32 4294967266, %v2607
    %v2613 = vadd.s32 %v2612, 127
    %v2614 = vshll.u32 %v2613, 23
    %v2615 = vor.u32 4788187, %v2614
    %v2616 = vand.u32 2147483647, %v2615
    %v2618 = vcvt.s32.f32 %v2611
    %v2619 = vmul.f32 %v2618, %v2616
    %v2620 = vxor.u32 %v2619, 2147483648
    %v2621 = vsel %vm2538, %v2620, %v2619
    %v2622 = vsub.s32 4, %v2598
    %v2623 = vsel %vm2538, %v2622, %v2598
    %v2624 = vsel %vm2537, %v1906, %v2621
    %v2625 = vsel %vm2537, 0, %v2623
    %v2626 = vcosq.f32.pop %v2624
    %v2627 = vsinq.f32.pop %v2624
    %vm2628 = vweird.f32 %v1906
    %v2629 = vand.u32 %v2625, 3
    %vm2630 = vcmp.lt.s32.totalorder %v2629, 2
    %vm2631 = vcmp.eq.s32.totalorder %v2629, 0
    %v2632 = vxor.u32 %v2627, 2147483648
    %v2633 = vsel %vm2631, %v2626, %v2632
    %vm2634 = vcmp.eq.s32.totalorder %v2629, 2
    %v2635 = vxor.u32 %v2626, 2147483648
    %v2636 = vsel %vm2634, %v2635, %v2627
    %v2637 = vsel %vm2630, %v2633, %v2636
    %v2638 = vsel %vm2628, nan, %v2637
    %v2639 = vand.u32 2147483647, %v1907
    %vm2640 = vcmp.le.f32.partialorder %v2639, 0.7853982
    %vm2641 = vcmp.lt.s32.totalorder %v1907, 0
    %v2642 = vand.u32 %v1907, 2139095040
    %v2643 = vshrl.u32 %v2642, 23
    %v2644 = vsub.s32 %v2643, 127
    %v2645 = vand.u32 2147483647, %v1907
    %v2646 = vand.u32 %v2645, 8388607
    %v2647 = vor.u32 %v2646, 8388608
    %v2648 = vsub.s32 0, %v2647
    %v2649 = vadd.s32 %v2644, 1
    %vm2650 = vcmp.gt.s32.totalorder %v2649, 0
    %v2651 = vsel %vm2650, %v2649, 0
    %v2652 = vshrl.u32 %v2651, 5
    %v2653 = vand.u32 %v2651, 31
    %v2654 = vsub.s32 32, %v2653
    %v2655 = vshrl.u32 683565275, %v2654
    %v2656 = vshll.u32 683565275, %v2653
    %v2657 = vshrl.u32 2475754826, %v2654
    %v2658 = vor.u32 %v2656, %v2657
    %v2659 = vshll.u32 2475754826, %v2653
    %v2660 = vshrl.u32 2131351028, %v2654
    %v2661 = vor.u32 %v2659, %v2660
    %v2662 = vshll.u32 2131351028, %v2653
    %v2663 = vshrl.u32 2102212464, %v2654
    %v2664 = vor.u32 %v2662, %v2663
    %v2665 = vshll.u32 2102212464, %v2653
    %v2666 = vshrl.u32 920167782, %v2654
    %v2667 = vor.u32 %v2665, %v2666
    %v2668 = vshll.u32 920167782, %v2653
    %v2669 = vshrl.u32 1326507024, %v2654
    %v2670 = vor.u32 %v2668, %v2669
    %vm2671 = vcmp.lt.s32.totalorder %v2652, 1
    %vm2672 = vcmp.lt.s32.totalorder %v2652, 2
    %vm2673 = vcmp.lt.s32.totalorder %v2652, 3
    %vm2674 = vcmp.lt.s32.totalorder %v2652, 4
    %v2675 = vsel %vm2671, %v2655, %v2658
    %v2676 = vsel %vm2674, %v2664, 2102212464
    %v2677 = vsel %vm2673, %v2661, %v2676
    %v2678 = vsel %vm2672, %v2675, %v2677
    %v2679 = vsel %vm2671, %v2658, %v2661
    %v2680 = vsel %vm2674, %v2667, 920167782
    %v2681 = vsel %vm2673, %v2664, %v2680
    %v2682 = vsel %vm2672, %v2679, %v2681
    %v2683 = vsel %vm2671, %v2661, %v2664
    %v2684 = vsel %vm2674, %v2670, 1326507024
    %v2685 = vsel %vm2673, %v2667, %v2684
    %v2686 = vsel %vm2672, %v2683, %v2685
    %v2687 = vshll.u32 %v2647, 8
    %v2688 = vmul.u32.u64.compose %v2687, %v2686
    %v2689 = vextract.low.u32 %v2688
    %v2690 = vextract.high.u32 %v2688
    %v2691 = vmul.u32.u64.compose %v2687, %v2682
    %v2692 = vextract.low.u32 %v2691
    %v2693 = vextract.high.u32 %v2691
    %v2694 = vmul.u32 %v2687, %v2678
    %v2695 = vadd.s32 %v2690, %v2692
    %vm2696 = vc.u32 %v2690, %v2692
    %v2697 = vadd.s32 %v2693, 1
    %v2698 = vsel %vm2696, %v2697, %v2693
    %v2699 = vadd.s32 %v2694, %v2698
    %v2700 = vadd.s32 %v2699, 536870912
    %v2701 = vshrl.u32 %v2700, 30
    %v2702 = vshll.u32 %v2701, 30
    %v2703 = vsub.s32 %v2699, %v2702
    %vm2704 = vcmp.lt.s32.totalorder %v2703, 0
    %v2705 = vsub.s32 0, %v2703
    %v2706 = vsel %vm2704, %v2705, %v2703
    %v2707 = vclz %v2706
    %v2708 = vsub.s32 %v2707, 2
    %vm2709 = vcmp.gt.s32.totalorder 0, %v2708
    %v2710 = vsel %vm2709, 0, %v2708
    %v2711 = vsub.s32 32, %v2710
    %v2712 = vshll.u32 %v2703, %v2710
    %v2713 = vshrl.u32 %v2695, %v2711
    %v2714 = vor.u32 %v2712, %v2713
    %v2715 = vsub.s32 4294967266, %v2710
    %v2716 = vadd.s32 %v2715, 127
    %v2717 = vshll.u32 %v2716, 23
    %v2718 = vor.u32 4788187, %v2717
    %v2719 = vand.u32 2147483647, %v2718
    %v2721 = vcvt.s32.f32 %v2714
    %v2722 = vmul.f32 %v2721, %v2719
    %v2723 = vxor.u32 %v2722, 2147483648
    %v2724 = vsel %vm2641, %v2723, %v2722
    %v2725 = vsub.s32 4, %v2701
    %v2726 = vsel %vm2641, %v2725, %v2701
    %v2727 = vsel %vm2640, %v1907, %v2724
    %v2728 = vsel %vm2640, 0, %v2726
    %v2729 = vcosq.f32.pop %v2727
    %v2730 = vsinq.f32.pop %v2727
    %vm2731 = vweird.f32 %v1907
    %v2732 = vand.u32 %v2728, 3
    %vm2733 = vcmp.lt.s32.totalorder %v2732, 2
    %vm2734 = vcmp.eq.s32.totalorder %v2732, 0
    %v2735 = vxor.u32 %v2730, 2147483648
    %v2736 = vsel %vm2734, %v2729, %v2735
    %vm2737 = vcmp.eq.s32.totalorder %v2732, 2
    %v2738 = vxor.u32 %v2729, 2147483648
    %v2739 = vsel %vm2737, %v2738, %v2730
    %v2740 = vsel %vm2733, %v2736, %v2739
    %v2741 = vsel %vm2731, nan, %v2740
    %v2742 = vand.u32 2147483647, %v1908
    %vm2743 = vcmp.le.f32.partialorder %v2742, 0.7853982
    %vm2744 = vcmp.lt.s32.totalorder %v1908, 0
    %v2745 = vand.u32 %v1908, 2139095040
    %v2746 = vshrl.u32 %v2745, 23
    %v2747 = vsub.s32 %v2746, 127
    %v2748 = vand.u32 2147483647, %v1908
    %v2749 = vand.u32 %v2748, 8388607
    %v2750 = vor.u32 %v2749, 8388608
    %v2751 = vsub.s32 0, %v2750
    %v2752 = vadd.s32 %v2747, 1
    %vm2753 = vcmp.gt.s32.totalorder %v2752, 0
    %v2754 = vsel %vm2753, %v2752, 0
    %v2755 = vshrl.u32 %v2754, 5
    %v2756 = vand.u32 %v2754, 31
    %v2757 = vsub.s32 32, %v2756
    %v2758 = vshrl.u32 683565275, %v2757
    %v2759 = vshll.u32 683565275, %v2756
    %v2760 = vshrl.u32 2475754826, %v2757
    %v2761 = vor.u32 %v2759, %v2760
    %v2762 = vshll.u32 2475754826, %v2756
    %v2763 = vshrl.u32 2131351028, %v2757
    %v2764 = vor.u32 %v2762, %v2763
    %v2765 = vshll.u32 2131351028, %v2756
    %v2766 = vshrl.u32 2102212464, %v2757
    %v2767 = vor.u32 %v2765, %v2766
    %v2768 = vshll.u32 2102212464, %v2756
    %v2769 = vshrl.u32 920167782, %v2757
    %v2770 = vor.u32 %v2768, %v2769
    %v2771 = vshll.u32 920167782, %v2756
    %v2772 = vshrl.u32 1326507024, %v2757
    %v2773 = vor.u32 %v2771, %v2772
    %vm2774 = vcmp.lt.s32.totalorder %v2755, 1
    %vm2775 = vcmp.lt.s32.totalorder %v2755, 2
    %vm2776 = vcmp.lt.s32.totalorder %v2755, 3
    %vm2777 = vcmp.lt.s32.totalorder %v2755, 4
    %v2778 = vsel %vm2774, %v2758, %v2761
    %v2779 = vsel %vm2777, %v2767, 2102212464
    %v2780 = vsel %vm2776, %v2764, %v2779
    %v2781 = vsel %vm2775, %v2778, %v2780
    %v2782 = vsel %vm2774, %v2761, %v2764
    %v2783 = vsel %vm2777, %v2770, 920167782
    %v2784 = vsel %vm2776, %v2767, %v2783
    %v2785 = vsel %vm2775, %v2782, %v2784
    %v2786 = vsel %vm2774, %v2764, %v2767
    %v2787 = vsel %vm2777, %v2773, 1326507024
    %v2788 = vsel %vm2776, %v2770, %v2787
    %v2789 = vsel %vm2775, %v2786, %v2788
    %v2790 = vshll.u32 %v2750, 8
    %v2791 = vmul.u32.u64.compose %v2790, %v2789
    %v2792 = vextract.low.u32 %v2791
    %v2793 = vextract.high.u32 %v2791
    %v2794 = vmul.u32.u64.compose %v2790, %v2785
    %v2795 = vextract.low.u32 %v2794
    %v2796 = vextract.high.u32 %v2794
    %v2797 = vmul.u32 %v2790, %v2781
    %v2798 = vadd.s32 %v2793, %v2795
    %vm2799 = vc.u32 %v2793, %v2795
    %v2800 = vadd.s32 %v2796, 1
    %v2801 = vsel %vm2799, %v2800, %v2796
    %v2802 = vadd.s32 %v2797, %v2801
    %v2803 = vadd.s32 %v2802, 536870912
    %v2804 = vshrl.u32 %v2803, 30
    %v2805 = vshll.u32 %v2804, 30
    %v2806 = vsub.s32 %v2802, %v2805
    %vm2807 = vcmp.lt.s32.totalorder %v2806, 0
    %v2808 = vsub.s32 0, %v2806
    %v2809 = vsel %vm2807, %v2808, %v2806
    %v2810 = vclz %v2809
    %v2811 = vsub.s32 %v2810, 2
    %vm2812 = vcmp.gt.s32.totalorder 0, %v2811
    %v2813 = vsel %vm2812, 0, %v2811
    %v2814 = vsub.s32 32, %v2813
    %v2815 = vshll.u32 %v2806, %v2813
    %v2816 = vshrl.u32 %v2798, %v2814
    %v2817 = vor.u32 %v2815, %v2816
    %v2818 = vsub.s32 4294967266, %v2813
    %v2819 = vadd.s32 %v2818, 127
    %v2820 = vshll.u32 %v2819, 23
    %v2821 = vor.u32 4788187, %v2820
    %v2822 = vand.u32 2147483647, %v2821
    %v2824 = vcvt.s32.f32 %v2817
    %v2825 = vmul.f32 %v2824, %v2822
    %v2826 = vxor.u32 %v2825, 2147483648
    %v2827 = vsel %vm2744, %v2826, %v2825
    %v2828 = vsub.s32 4, %v2804
    %v2829 = vsel %vm2744, %v2828, %v2804
    %v2830 = vsel %vm2743, %v1908, %v2827
    %v2831 = vsel %vm2743, 0, %v2829
    %v2832 = vcosq.f32.pop %v2830
    %v2833 = vsinq.f32.pop %v2830
    %vm2834 = vweird.f32 %v1908
    %v2835 = vand.u32 %v2831, 3
    %vm2836 = vcmp.lt.s32.totalorder %v2835, 2
    %vm2837 = vcmp.eq.s32.totalorder %v2835, 0
    %v2838 = vxor.u32 %v2833, 2147483648
    %v2839 = vsel %vm2837, %v2832, %v2838
    %vm2840 = vcmp.eq.s32.totalorder %v2835, 2
    %v2841 = vxor.u32 %v2832, 2147483648
    %v2842 = vsel %vm2840, %v2841, %v2833
    %v2843 = vsel %vm2836, %v2839, %v2842
    %v2844 = vsel %vm2834, nan, %v2843
    %v2845 = vand.u32 2147483647, %v1909
    %vm2846 = vcmp.le.f32.partialorder %v2845, 0.7853982
    %vm2847 = vcmp.lt.s32.totalorder %v1909, 0
    %v2848 = vand.u32 %v1909, 2139095040
    %v2849 = vshrl.u32 %v2848, 23
    %v2850 = vsub.s32 %v2849, 127
    %v2851 = vand.u32 2147483647, %v1909
    %v2852 = vand.u32 %v2851, 8388607
    %v2853 = vor.u32 %v2852, 8388608
    %v2854 = vsub.s32 0, %v2853
    %v2855 = vadd.s32 %v2850, 1
    %vm2856 = vcmp.gt.s32.totalorder %v2855, 0
    %v2857 = vsel %vm2856, %v2855, 0
    %v2858 = vshrl.u32 %v2857, 5
    %v2859 = vand.u32 %v2857, 31
    %v2860 = vsub.s32 32, %v2859
    %v2861 = vshrl.u32 683565275, %v2860
    %v2862 = vshll.u32 683565275, %v2859
    %v2863 = vshrl.u32 2475754826, %v2860
    %v2864 = vor.u32 %v2862, %v2863
    %v2865 = vshll.u32 2475754826, %v2859
    %v2866 = vshrl.u32 2131351028, %v2860
    %v2867 = vor.u32 %v2865, %v2866
    %v2868 = vshll.u32 2131351028, %v2859
    %v2869 = vshrl.u32 2102212464, %v2860
    %v2870 = vor.u32 %v2868, %v2869
    %v2871 = vshll.u32 2102212464, %v2859
    %v2872 = vshrl.u32 920167782, %v2860
    %v2873 = vor.u32 %v2871, %v2872
    %v2874 = vshll.u32 920167782, %v2859
    %v2875 = vshrl.u32 1326507024, %v2860
    %v2876 = vor.u32 %v2874, %v2875
    %vm2877 = vcmp.lt.s32.totalorder %v2858, 1
    %vm2878 = vcmp.lt.s32.totalorder %v2858, 2
    %vm2879 = vcmp.lt.s32.totalorder %v2858, 3
    %vm2880 = vcmp.lt.s32.totalorder %v2858, 4
    %v2881 = vsel %vm2877, %v2861, %v2864
    %v2882 = vsel %vm2880, %v2870, 2102212464
    %v2883 = vsel %vm2879, %v2867, %v2882
    %v2884 = vsel %vm2878, %v2881, %v2883
    %v2885 = vsel %vm2877, %v2864, %v2867
    %v2886 = vsel %vm2880, %v2873, 920167782
    %v2887 = vsel %vm2879, %v2870, %v2886
    %v2888 = vsel %vm2878, %v2885, %v2887
    %v2889 = vsel %vm2877, %v2867, %v2870
    %v2890 = vsel %vm2880, %v2876, 1326507024
    %v2891 = vsel %vm2879, %v2873, %v2890
    %v2892 = vsel %vm2878, %v2889, %v2891
    %v2893 = vshll.u32 %v2853, 8
    %v2894 = vmul.u32.u64.compose %v2893, %v2892
    %v2895 = vextract.low.u32 %v2894
    %v2896 = vextract.high.u32 %v2894
    %v2897 = vmul.u32.u64.compose %v2893, %v2888
    %v2898 = vextract.low.u32 %v2897
    %v2899 = vextract.high.u32 %v2897
    %v2900 = vmul.u32 %v2893, %v2884
    %v2901 = vadd.s32 %v2896, %v2898
    %vm2902 = vc.u32 %v2896, %v2898
    %v2903 = vadd.s32 %v2899, 1
    %v2904 = vsel %vm2902, %v2903, %v2899
    %v2905 = vadd.s32 %v2900, %v2904
    %v2906 = vadd.s32 %v2905, 536870912
    %v2907 = vshrl.u32 %v2906, 30
    %v2908 = vshll.u32 %v2907, 30
    %v2909 = vsub.s32 %v2905, %v2908
    %vm2910 = vcmp.lt.s32.totalorder %v2909, 0
    %v2911 = vsub.s32 0, %v2909
    %v2912 = vsel %vm2910, %v2911, %v2909
    %v2913 = vclz %v2912
    %v2914 = vsub.s32 %v2913, 2
    %vm2915 = vcmp.gt.s32.totalorder 0, %v2914
    %v2916 = vsel %vm2915, 0, %v2914
    %v2917 = vsub.s32 32, %v2916
    %v2918 = vshll.u32 %v2909, %v2916
    %v2919 = vshrl.u32 %v2901, %v2917
    %v2920 = vor.u32 %v2918, %v2919
    %v2921 = vsub.s32 4294967266, %v2916
    %v2922 = vadd.s32 %v2921, 127
    %v2923 = vshll.u32 %v2922, 23
    %v2924 = vor.u32 4788187, %v2923
    %v2925 = vand.u32 2147483647, %v2924
    %v2927 = vcvt.s32.f32 %v2920
    %v2928 = vmul.f32 %v2927, %v2925
    %v2929 = vxor.u32 %v2928, 2147483648
    %v2930 = vsel %vm2847, %v2929, %v2928
    %v2931 = vsub.s32 4, %v2907
    %v2932 = vsel %vm2847, %v2931, %v2907
    %v2933 = vsel %vm2846, %v1909, %v2930
    %v2934 = vsel %vm2846, 0, %v2932
    %v2935 = vcosq.f32.pop %v2933
    %v2936 = vsinq.f32.pop %v2933
    %vm2937 = vweird.f32 %v1909
    %v2938 = vand.u32 %v2934, 3
    %vm2939 = vcmp.lt.s32.totalorder %v2938, 2
    %vm2940 = vcmp.eq.s32.totalorder %v2938, 0
    %v2941 = vxor.u32 %v2936, 2147483648
    %v2942 = vsel %vm2940, %v2935, %v2941
    %vm2943 = vcmp.eq.s32.totalorder %v2938, 2
    %v2944 = vxor.u32 %v2935, 2147483648
    %v2945 = vsel %vm2943, %v2944, %v2936
    %v2946 = vsel %vm2939, %v2942, %v2945
    %v2947 = vsel %vm2937, nan, %v2946
    %v2948 = vand.u32 2147483647, %v1910
    %vm2949 = vcmp.le.f32.partialorder %v2948, 0.7853982
    %vm2950 = vcmp.lt.s32.totalorder %v1910, 0
    %v2951 = vand.u32 %v1910, 2139095040
    %v2952 = vshrl.u32 %v2951, 23
    %v2953 = vsub.s32 %v2952, 127
    %v2954 = vand.u32 2147483647, %v1910
    %v2955 = vand.u32 %v2954, 8388607
    %v2956 = vor.u32 %v2955, 8388608
    %v2957 = vsub.s32 0, %v2956
    %v2958 = vadd.s32 %v2953, 1
    %vm2959 = vcmp.gt.s32.totalorder %v2958, 0
    %v2960 = vsel %vm2959, %v2958, 0
    %v2961 = vshrl.u32 %v2960, 5
    %v2962 = vand.u32 %v2960, 31
    %v2963 = vsub.s32 32, %v2962
    %v2964 = vshrl.u32 683565275, %v2963
    %v2965 = vshll.u32 683565275, %v2962
    %v2966 = vshrl.u32 2475754826, %v2963
    %v2967 = vor.u32 %v2965, %v2966
    %v2968 = vshll.u32 2475754826, %v2962
    %v2969 = vshrl.u32 2131351028, %v2963
    %v2970 = vor.u32 %v2968, %v2969
    %v2971 = vshll.u32 2131351028, %v2962
    %v2972 = vshrl.u32 2102212464, %v2963
    %v2973 = vor.u32 %v2971, %v2972
    %v2974 = vshll.u32 2102212464, %v2962
    %v2975 = vshrl.u32 920167782, %v2963
    %v2976 = vor.u32 %v2974, %v2975
    %v2977 = vshll.u32 920167782, %v2962
    %v2978 = vshrl.u32 1326507024, %v2963
    %v2979 = vor.u32 %v2977, %v2978
    %vm2980 = vcmp.lt.s32.totalorder %v2961, 1
    %vm2981 = vcmp.lt.s32.totalorder %v2961, 2
    %vm2982 = vcmp.lt.s32.totalorder %v2961, 3
    %vm2983 = vcmp.lt.s32.totalorder %v2961, 4
    %v2984 = vsel %vm2980, %v2964, %v2967
    %v2985 = vsel %vm2983, %v2973, 2102212464
    %v2986 = vsel %vm2982, %v2970, %v2985
    %v2987 = vsel %vm2981, %v2984, %v2986
    %v2988 = vsel %vm2980, %v2967, %v2970
    %v2989 = vsel %vm2983, %v2976, 920167782
    %v2990 = vsel %vm2982, %v2973, %v2989
    %v2991 = vsel %vm2981, %v2988, %v2990
    %v2992 = vsel %vm2980, %v2970, %v2973
    %v2993 = vsel %vm2983, %v2979, 1326507024
    %v2994 = vsel %vm2982, %v2976, %v2993
    %v2995 = vsel %vm2981, %v2992, %v2994
    %v2996 = vshll.u32 %v2956, 8
    %v2997 = vmul.u32.u64.compose %v2996, %v2995
    %v2998 = vextract.low.u32 %v2997
    %v2999 = vextract.high.u32 %v2997
    %v3000 = vmul.u32.u64.compose %v2996, %v2991
    %v3001 = vextract.low.u32 %v3000
    %v3002 = vextract.high.u32 %v3000
    %v3003 = vmul.u32 %v2996, %v2987
    %v3004 = vadd.s32 %v2999, %v3001
    %vm3005 = vc.u32 %v2999, %v3001
    %v3006 = vadd.s32 %v3002, 1
    %v3007 = vsel %vm3005, %v3006, %v3002
    %v3008 = vadd.s32 %v3003, %v3007
    %v3009 = vadd.s32 %v3008, 536870912
    %v3010 = vshrl.u32 %v3009, 30
    %v3011 = vshll.u32 %v3010, 30
    %v3012 = vsub.s32 %v3008, %v3011
    %vm3013 = vcmp.lt.s32.totalorder %v3012, 0
    %v3014 = vsub.s32 0, %v3012
    %v3015 = vsel %vm3013, %v3014, %v3012
    %v3016 = vclz %v3015
    %v3017 = vsub.s32 %v3016, 2
    %vm3018 = vcmp.gt.s32.totalorder 0, %v3017
    %v3019 = vsel %vm3018, 0, %v3017
    %v3020 = vsub.s32 32, %v3019
    %v3021 = vshll.u32 %v3012, %v3019
    %v3022 = vshrl.u32 %v3004, %v3020
    %v3023 = vor.u32 %v3021, %v3022
    %v3024 = vsub.s32 4294967266, %v3019
    %v3025 = vadd.s32 %v3024, 127
    %v3026 = vshll.u32 %v3025, 23
    %v3027 = vor.u32 4788187, %v3026
    %v3028 = vand.u32 2147483647, %v3027
    %v3030 = vcvt.s32.f32 %v3023
    %v3031 = vmul.f32 %v3030, %v3028
    %v3032 = vxor.u32 %v3031, 2147483648
    %v3033 = vsel %vm2950, %v3032, %v3031
    %v3034 = vsub.s32 4, %v3010
    %v3035 = vsel %vm2950, %v3034, %v3010
    %v3036 = vsel %vm2949, %v1910, %v3033
    %v3037 = vsel %vm2949, 0, %v3035
    %v3038 = vcosq.f32.pop %v3036
    %v3039 = vsinq.f32.pop %v3036
    %vm3040 = vweird.f32 %v1910
    %v3041 = vand.u32 %v3037, 3
    %vm3042 = vcmp.lt.s32.totalorder %v3041, 2
    %vm3043 = vcmp.eq.s32.totalorder %v3041, 0
    %v3044 = vxor.u32 %v3039, 2147483648
    %v3045 = vsel %vm3043, %v3038, %v3044
    %vm3046 = vcmp.eq.s32.totalorder %v3041, 2
    %v3047 = vxor.u32 %v3038, 2147483648
    %v3048 = vsel %vm3046, %v3047, %v3039
    %v3049 = vsel %vm3042, %v3045, %v3048
    %v3050 = vsel %vm3040, nan, %v3049
    %v3051 = vand.u32 2147483647, %v1911
    %vm3052 = vcmp.le.f32.partialorder %v3051, 0.7853982
    %vm3053 = vcmp.lt.s32.totalorder %v1911, 0
    %v3054 = vand.u32 %v1911, 2139095040
    %v3055 = vshrl.u32 %v3054, 23
    %v3056 = vsub.s32 %v3055, 127
    %v3057 = vand.u32 2147483647, %v1911
    %v3058 = vand.u32 %v3057, 8388607
    %v3059 = vor.u32 %v3058, 8388608
    %v3060 = vsub.s32 0, %v3059
    %v3061 = vadd.s32 %v3056, 1
    %vm3062 = vcmp.gt.s32.totalorder %v3061, 0
    %v3063 = vsel %vm3062, %v3061, 0
    %v3064 = vshrl.u32 %v3063, 5
    %v3065 = vand.u32 %v3063, 31
    %v3066 = vsub.s32 32, %v3065
    %v3067 = vshrl.u32 683565275, %v3066
    %v3068 = vshll.u32 683565275, %v3065
    %v3069 = vshrl.u32 2475754826, %v3066
    %v3070 = vor.u32 %v3068, %v3069
    %v3071 = vshll.u32 2475754826, %v3065
    %v3072 = vshrl.u32 2131351028, %v3066
    %v3073 = vor.u32 %v3071, %v3072
    %v3074 = vshll.u32 2131351028, %v3065
    %v3075 = vshrl.u32 2102212464, %v3066
    %v3076 = vor.u32 %v3074, %v3075
    %v3077 = vshll.u32 2102212464, %v3065
    %v3078 = vshrl.u32 920167782, %v3066
    %v3079 = vor.u32 %v3077, %v3078
    %v3080 = vshll.u32 920167782, %v3065
    %v3081 = vshrl.u32 1326507024, %v3066
    %v3082 = vor.u32 %v3080, %v3081
    %vm3083 = vcmp.lt.s32.totalorder %v3064, 1
    %vm3084 = vcmp.lt.s32.totalorder %v3064, 2
    %vm3085 = vcmp.lt.s32.totalorder %v3064, 3
    %vm3086 = vcmp.lt.s32.totalorder %v3064, 4
    %v3087 = vsel %vm3083, %v3067, %v3070
    %v3088 = vsel %vm3086, %v3076, 2102212464
    %v3089 = vsel %vm3085, %v3073, %v3088
    %v3090 = vsel %vm3084, %v3087, %v3089
    %v3091 = vsel %vm3083, %v3070, %v3073
    %v3092 = vsel %vm3086, %v3079, 920167782
    %v3093 = vsel %vm3085, %v3076, %v3092
    %v3094 = vsel %vm3084, %v3091, %v3093
    %v3095 = vsel %vm3083, %v3073, %v3076
    %v3096 = vsel %vm3086, %v3082, 1326507024
    %v3097 = vsel %vm3085, %v3079, %v3096
    %v3098 = vsel %vm3084, %v3095, %v3097
    %v3099 = vshll.u32 %v3059, 8
    %v3100 = vmul.u32.u64.compose %v3099, %v3098
    %v3101 = vextract.low.u32 %v3100
    %v3102 = vextract.high.u32 %v3100
    %v3103 = vmul.u32.u64.compose %v3099, %v3094
    %v3104 = vextract.low.u32 %v3103
    %v3105 = vextract.high.u32 %v3103
    %v3106 = vmul.u32 %v3099, %v3090
    %v3107 = vadd.s32 %v3102, %v3104
    %vm3108 = vc.u32 %v3102, %v3104
    %v3109 = vadd.s32 %v3105, 1
    %v3110 = vsel %vm3108, %v3109, %v3105
    %v3111 = vadd.s32 %v3106, %v3110
    %v3112 = vadd.s32 %v3111, 536870912
    %v3113 = vshrl.u32 %v3112, 30
    %v3114 = vshll.u32 %v3113, 30
    %v3115 = vsub.s32 %v3111, %v3114
    %vm3116 = vcmp.lt.s32.totalorder %v3115, 0
    %v3117 = vsub.s32 0, %v3115
    %v3118 = vsel %vm3116, %v3117, %v3115
    %v3119 = vclz %v3118
    %v3120 = vsub.s32 %v3119, 2
    %vm3121 = vcmp.gt.s32.totalorder 0, %v3120
    %v3122 = vsel %vm3121, 0, %v3120
    %v3123 = vsub.s32 32, %v3122
    %v3124 = vshll.u32 %v3115, %v3122
    %v3125 = vshrl.u32 %v3107, %v3123
    %v3126 = vor.u32 %v3124, %v3125
    %v3127 = vsub.s32 4294967266, %v3122
    %v3128 = vadd.s32 %v3127, 127
    %v3129 = vshll.u32 %v3128, 23
    %v3130 = vor.u32 4788187, %v3129
    %v3131 = vand.u32 2147483647, %v3130
    %v3133 = vcvt.s32.f32 %v3126
    %v3134 = vmul.f32 %v3133, %v3131
    %v3135 = vxor.u32 %v3134, 2147483648
    %v3136 = vsel %vm3053, %v3135, %v3134
    %v3137 = vsub.s32 4, %v3113
    %v3138 = vsel %vm3053, %v3137, %v3113
    %v3139 = vsel %vm3052, %v1911, %v3136
    %v3140 = vsel %vm3052, 0, %v3138
    %v3141 = vcosq.f32.pop %v3139
    %v3142 = vsinq.f32.pop %v3139
    %vm3143 = vweird.f32 %v1911
    %v3144 = vand.u32 %v3140, 3
    %vm3145 = vcmp.lt.s32.totalorder %v3144, 2
    %vm3146 = vcmp.eq.s32.totalorder %v3144, 0
    %v3147 = vxor.u32 %v3142, 2147483648
    %v3148 = vsel %vm3146, %v3141, %v3147
    %vm3149 = vcmp.eq.s32.totalorder %v3144, 2
    %v3150 = vxor.u32 %v3141, 2147483648
    %v3151 = vsel %vm3149, %v3150, %v3142
    %v3152 = vsel %vm3145, %v3148, %v3151
    %v3153 = vsel %vm3143, nan, %v3152
    %v3154 = vrcp.pop %v2638
    %v3155 = vmul.f32 %v2015, %v3154
    %v3156 = vrcp.pop %v2741
    %v3157 = vmul.f32 %v2119, %v3156
    %v3158 = vrcp.pop %v2844
    %v3159 = vmul.f32 %v2223, %v3158
    %v3160 = vrcp.pop %v2947
    %v3161 = vmul.f32 %v2327, %v3160
    %v3162 = vrcp.pop %v3050
    %v3163 = vmul.f32 %v2431, %v3162
    %v3164 = vrcp.pop %v3153
    %v3165 = vmul.f32 %v2535, %v3164
    %vm3166 = vcmp.gt.f32.partialorder %v3155, 10.0
    %vm3167 = vcmp.gt.f32.partialorder %v3157, 10.0
    %vm3168 = vcmp.gt.f32.partialorder %v3159, 10.0
    %vm3169 = vcmp.gt.f32.partialorder %v3161, 10.0
    %vm3170 = vcmp.gt.f32.partialorder %v3163, 10.0
    %vm3171 = vcmp.gt.f32.partialorder %v3165, 10.0
    %v3172 = vsel %vm3166, 10.0, %v3155
    %v3173 = vsel %vm3167, 10.0, %v3157
    %v3174 = vsel %vm3168, 10.0, %v3159
    %v3175 = vsel %vm3169, 10.0, %v3161
    %v3176 = vsel %vm3170, 10.0, %v3163
    %v3177 = vsel %vm3171, 10.0, %v3165
    %v3178 = vlog2.pop %v1541
    %v3179 = vmul.f32 %v3178, 0.6931472
    %v3180 = vlog2.pop %v1542
    %v3181 = vmul.f32 %v3180, 0.6931472
    %v3182 = vlog2.pop %v1543
    %v3183 = vmul.f32 %v3182, 0.6931472
    %v3184 = vlog2.pop %v1544
    %v3185 = vmul.f32 %v3184, 0.6931472
    %v3186 = vlog2.pop %v1545
    %v3187 = vmul.f32 %v3186, 0.6931472
    %v3188 = vlog2.pop %v1546
    %v3189 = vmul.f32 %v3188, 0.6931472
    %v3190 = vlog2.pop %v1547
    %v3191 = vmul.f32 %v3190, 0.6931472
    %v3192 = vlog2.pop %v1548
    %v3193 = vmul.f32 %v3192, 0.6931472
    %v3194 = vlog2.pop %v1549
    %v3195 = vmul.f32 %v3194, 0.6931472
    %v3196 = vlog2.pop %v1550
    %v3197 = vmul.f32 %v3196, 0.6931472
    %v3198 = vlog2.pop %v1551
    %v3199 = vmul.f32 %v3198, 0.6931472
    %v3200 = vlog2.pop %v1552
    %v3201 = vmul.f32 %v3200, 0.6931472
    %v3202 = vlog2.pop %v1553
    %v3203 = vmul.f32 %v3202, 0.6931472
    %v3204 = vlog2.pop %v1554
    %v3205 = vmul.f32 %v3204, 0.6931472
    %v3206 = vlog2.pop %v1555
    %v3207 = vmul.f32 %v3206, 0.6931472
    %v3208 = vlog2.pop %v1556
    %v3209 = vmul.f32 %v3208, 0.6931472
    %v3210 = vlog2.pop %v1557
    %v3211 = vmul.f32 %v3210, 0.6931472
    %v3212 = vlog2.pop %v1558
    %v3213 = vmul.f32 %v3212, 0.6931472
    %v3214 = vrcp.pop %v1541
    %v3215 = vrcp.pop %v1542
    %v3216 = vrcp.pop %v1543
    %v3217 = vrcp.pop %v1544
    %v3218 = vrcp.pop %v1545
    %v3219 = vrcp.pop %v1546
    %v3220 = vrcp.pop %v1547
    %v3221 = vrcp.pop %v1548
    %v3222 = vrcp.pop %v1549
    %v3223 = vrcp.pop %v1550
    %v3224 = vrcp.pop %v1551
    %v3225 = vrcp.pop %v1552
    %v3226 = vrcp.pop %v1553
    %v3227 = vrcp.pop %v1554
    %v3228 = vrcp.pop %v1555
    %v3229 = vrcp.pop %v1556
    %v3230 = vrcp.pop %v1557
    %v3231 = vrcp.pop %v1558
    %v3232 = vmul.f32 %v882, %v3214
    %v3233 = vmul.f32 %v883, %v3215
    %v3234 = vmul.f32 %v884, %v3216
    %v3235 = vmul.f32 %v885, %v3217
    %v3236 = vmul.f32 %v886, %v3218
    %v3237 = vmul.f32 %v887, %v3219
    %v3238 = vmul.f32 %v888, %v3220
    %v3239 = vmul.f32 %v889, %v3221
    %v3240 = vmul.f32 %v890, %v3222
    %v3241 = vmul.f32 %v891, %v3223
    %v3242 = vmul.f32 %v892, %v3224
    %v3243 = vmul.f32 %v893, %v3225
    %v3244 = vmul.f32 %v894, %v3226
    %v3245 = vmul.f32 %v895, %v3227
    %v3246 = vmul.f32 %v896, %v3228
    %v3247 = vmul.f32 %v897, %v3229
    %v3248 = vmul.f32 %v898, %v3230
    %v3249 = vmul.f32 %v899, %v3231
    %v3250 = vmul.f32 %v3172, %v3179
    %v3251 = vmul.f32 %v3173, %v3181
    %v3252 = vmul.f32 %v3174, %v3183
    %v3253 = vmul.f32 %v3175, %v3185
    %v3254 = vmul.f32 %v3176, %v3187
    %v3255 = vmul.f32 %v3177, %v3189
    %v3256 = vmul.f32 %v3250, 1.442695
    %v3257 = vpow.pop %v3256
    %v3258 = vmul.f32 %v3251, 1.442695
    %v3259 = vpow.pop %v3258
    %v3260 = vmul.f32 %v3252, 1.442695
    %v3261 = vpow.pop %v3260
    %v3262 = vmul.f32 %v3253, 1.442695
    %v3263 = vpow.pop %v3262
    %v3264 = vmul.f32 %v3254, 1.442695
    %v3265 = vpow.pop %v3264
    %v3266 = vmul.f32 %v3255, 1.442695
    %v3267 = vpow.pop %v3266
    %v3268 = vadd.f32 %v3257, 2.220446e-16
    %v3269 = vadd.f32 %v3259, 2.220446e-16
    %v3270 = vadd.f32 %v3261, 2.220446e-16
    %v3271 = vadd.f32 %v3263, 2.220446e-16
    %v3272 = vadd.f32 %v3265, 2.220446e-16
    %v3273 = vadd.f32 %v3267, 2.220446e-16
    %v3274 = vmul.f32 %v3268, %v3232
    %v3275 = vmul.f32 %v3269, %v3233
    %v3276 = vmul.f32 %v3270, %v3234
    %v3277 = vmul.f32 %v3271, %v3235
    %v3278 = vmul.f32 %v3272, %v3236
    %v3279 = vmul.f32 %v3273, %v3237
    %v3280 = vadd.f32 %v3274, 0.0
    %v3281 = vadd.f32 %v3275, 0.0
    %v3282 = vadd.f32 %v3276, 0.0
    %v3283 = vadd.f32 %v3277, 0.0
    %v3284 = vadd.f32 %v3278, 0.0
    %v3285 = vadd.f32 %v3279, 0.0
    %v3286 = vadd.f32 %v3268, 0.0
    %v3287 = vadd.f32 %v3269, 0.0
    %v3288 = vadd.f32 %v3270, 0.0
    %v3289 = vadd.f32 %v3271, 0.0
    %v3290 = vadd.f32 %v3272, 0.0
    %v3291 = vadd.f32 %v3273, 0.0
    %v3292 = vmul.f32 %v3172, %v3191
    %v3293 = vmul.f32 %v3173, %v3193
    %v3294 = vmul.f32 %v3174, %v3195
    %v3295 = vmul.f32 %v3175, %v3197
    %v3296 = vmul.f32 %v3176, %v3199
    %v3297 = vmul.f32 %v3177, %v3201
    %v3298 = vmul.f32 %v3292, 1.442695
    %v3299 = vpow.pop %v3298
    %v3300 = vmul.f32 %v3293, 1.442695
    %v3301 = vpow.pop %v3300
    %v3302 = vmul.f32 %v3294, 1.442695
    %v3303 = vpow.pop %v3302
    %v3304 = vmul.f32 %v3295, 1.442695
    %v3305 = vpow.pop %v3304
    %v3306 = vmul.f32 %v3296, 1.442695
    %v3307 = vpow.pop %v3306
    %v3308 = vmul.f32 %v3297, 1.442695
    %v3309 = vpow.pop %v3308
    %v3310 = vadd.f32 %v3299, 2.220446e-16
    %v3311 = vadd.f32 %v3301, 2.220446e-16
    %v3312 = vadd.f32 %v3303, 2.220446e-16
    %v3313 = vadd.f32 %v3305, 2.220446e-16
    %v3314 = vadd.f32 %v3307, 2.220446e-16
    %v3315 = vadd.f32 %v3309, 2.220446e-16
    %v3316 = vmul.f32 %v3310, %v3238
    %v3317 = vmul.f32 %v3311, %v3239
    %v3318 = vmul.f32 %v3312, %v3240
    %v3319 = vmul.f32 %v3313, %v3241
    %v3320 = vmul.f32 %v3314, %v3242
    %v3321 = vmul.f32 %v3315, %v3243
    %v3322 = vadd.f32 %v3280, %v3316
    %v3323 = vadd.f32 %v3281, %v3317
    %v3324 = vadd.f32 %v3282, %v3318
    %v3325 = vadd.f32 %v3283, %v3319
    %v3326 = vadd.f32 %v3284, %v3320
    %v3327 = vadd.f32 %v3285, %v3321
    %v3328 = vadd.f32 %v3286, %v3310
    %v3329 = vadd.f32 %v3287, %v3311
    %v3330 = vadd.f32 %v3288, %v3312
    %v3331 = vadd.f32 %v3289, %v3313
    %v3332 = vadd.f32 %v3290, %v3314
    %v3333 = vadd.f32 %v3291, %v3315
    %v3334 = vmul.f32 %v3172, %v3203
    %v3335 = vmul.f32 %v3173, %v3205
    %v3336 = vmul.f32 %v3174, %v3207
    %v3337 = vmul.f32 %v3175, %v3209
    %v3338 = vmul.f32 %v3176, %v3211
    %v3339 = vmul.f32 %v3177, %v3213
    %v3340 = vmul.f32 %v3334, 1.442695
    %v3341 = vpow.pop %v3340
    %v3342 = vmul.f32 %v3335, 1.442695
    %v3343 = vpow.pop %v3342
    %v3344 = vmul.f32 %v3336, 1.442695
    %v3345 = vpow.pop %v3344
    %v3346 = vmul.f32 %v3337, 1.442695
    %v3347 = vpow.pop %v3346
    %v3348 = vmul.f32 %v3338, 1.442695
    %v3349 = vpow.pop %v3348
    %v3350 = vmul.f32 %v3339, 1.442695
    %v3351 = vpow.pop %v3350
    %v3352 = vadd.f32 %v3341, 2.220446e-16
    %v3353 = vadd.f32 %v3343, 2.220446e-16
    %v3354 = vadd.f32 %v3345, 2.220446e-16
    %v3355 = vadd.f32 %v3347, 2.220446e-16
    %v3356 = vadd.f32 %v3349, 2.220446e-16
    %v3357 = vadd.f32 %v3351, 2.220446e-16
    %v3358 = vmul.f32 %v3352, %v3244
    %v3359 = vmul.f32 %v3353, %v3245
    %v3360 = vmul.f32 %v3354, %v3246
    %v3361 = vmul.f32 %v3355, %v3247
    %v3362 = vmul.f32 %v3356, %v3248
    %v3363 = vmul.f32 %v3357, %v3249
    %v3364 = vadd.f32 %v3322, %v3358
    %v3365 = vadd.f32 %v3323, %v3359
    %v3366 = vadd.f32 %v3324, %v3360
    %v3367 = vadd.f32 %v3325, %v3361
    %v3368 = vadd.f32 %v3326, %v3362
    %v3369 = vadd.f32 %v3327, %v3363
    %v3370 = vadd.f32 %v3328, %v3352
    %v3371 = vadd.f32 %v3329, %v3353
    %v3372 = vadd.f32 %v3330, %v3354
    %v3373 = vadd.f32 %v3331, %v3355
    %v3374 = vadd.f32 %v3332, %v3356
    %v3375 = vadd.f32 %v3333, %v3357
    %v3376 = vrcp.pop %v3370
    %v3377 = vrcp.pop %v3371
    %v3378 = vrcp.pop %v3372
    %v3379 = vrcp.pop %v3373
    %v3380 = vrcp.pop %v3374
    %v3381 = vrcp.pop %v3375
    %v3382 = vmul.f32 %v3364, %v3376
    %v3383 = vmul.f32 %v3365, %v3377
    %v3384 = vmul.f32 %v3366, %v3378
    %v3385 = vmul.f32 %v3367, %v3379
    %v3386 = vmul.f32 %v3368, %v3380
    %v3387 = vmul.f32 %v3369, %v3381
    %v3388 = vmul.f32 %v3382, %v3382
    %v3389 = vmul.f32 %v3383, %v3383
    %v3390 = vmul.f32 %v3384, %v3384
    %v3391 = vmul.f32 %v3385, %v3385
    %v3392 = vmul.f32 %v3386, %v3386
    %v3393 = vmul.f32 %v3387, %v3387
    %v3394 = vsel %vm375, %v3388, 0.0
    %v3395 = vsel %vm376, %v3389, 0.0
    %v3396 = vsel %vm377, %v3390, 0.0
    %v3397 = vsel %vm378, %v3391, 0.0
    %v3398 = vsel %vm379, %v3392, 0.0
    %v3399 = vsel %vm380, %v3393, 0.0
    %3400 = vmatprep.subr.mxu0 0.0
    %3401 = vmatpush1.msra.mxu0 %v97
    %3402 = vmatprep.subr.mxu0 0.0
    %3403 = vmatpush1.msra.mxu0 %v98
    %3404 = vmatprep.subr.mxu0 0.0
    %3405 = vmatpush1.msra.mxu0 %v99
    %3406 = vmatprep.subr.mxu0 0.0
    %3407 = vmatpush1.msra.mxu0 %v100
    %3408 = vmatprep.subr.mxu0 0.0
    %3409 = vmatpush1.msra.mxu0 %v101
    %3410 = vmatprep.subr.mxu0 0.0
    %3411 = vmatpush1.msra.mxu0 %v102
    %3412 = vmatprep.subr.mxu0 0.0
    %3413 = vmatpush1.msra.mxu0 %v103
    %3414 = vmatprep.subr.mxu0 0.0
    %3415 = vmatpush1.msra.mxu0 %v104
    %3416 = vmatprep.subr.mxu0 0.0
    %3417 = vmatpush1.msra.mxu0 %v105
    %3418 = vmatprep.subr.mxu0 0.0
    %3419 = vmatpush1.msra.mxu0 %v106
    %3420 = vmatprep.subr.mxu0 0.0
    %3421 = vmatpush1.msra.mxu0 %v107
    %3422 = vmatprep.subr.mxu0 0.0
    %3423 = vmatpush1.msra.mxu0 %v108
    %3424 = vmatprep.subr.mxu0 0.0
    %3425 = vmatpush1.msra.mxu0 %v109
    %3426 = vmatprep.subr.mxu0 0.0
    %3427 = vmatpush1.msra.mxu0 %v110
    %3428 = vmatprep.subr.mxu0 0.0
    %3429 = vmatpush1.msra.mxu0 %v111
    %3430 = vmatprep.subr.mxu0 0.0
    %3431 = vmatpush1.msra.mxu0 %v112
    %3432 = vmatprep.subr.mxu0 0.0
    %3433 = vmatpush1.msra.mxu0 0.0
    %3434 = vmatprep.subr.mxu0 0.0
    %3435 = vmatpush1.msra.mxu0 0.0
    %3436 = vmatprep.subr.mxu0 0.0
    %3437 = vmatpush1.msra.mxu0 0.0
    %3438 = vmatprep.subr.mxu0 0.0
    %3439 = vmatpush1.msra.mxu0 0.0
    %3440 = vmatprep.subr.mxu0 0.0
    %3441 = vmatpush1.msra.mxu0 0.0
    %3442 = vmatprep.subr.mxu0 0.0
    %3443 = vmatpush1.msra.mxu0 0.0
    %3444 = vmatprep.subr.mxu0 0.0
    %3445 = vmatpush1.msra.mxu0 0.0
    %3446 = vmatprep.subr.mxu0 0.0
    %3447 = vmatpush1.msra.mxu0 0.0
    %3448 = vmatprep.subr.mxu0 0.0
    %3449 = vmatpush1.msra.mxu0 0.0
    %3450 = vmatprep.subr.mxu0 0.0
    %3451 = vmatpush1.msra.mxu0 0.0
    %3452 = vmatprep.subr.mxu0 0.0
    %3453 = vmatpush1.msra.mxu0 0.0
    %3454 = vmatprep.subr.mxu0 0.0
    %3455 = vmatpush1.msra.mxu0 0.0
    %3456 = vmatprep.subr.mxu0 0.0
    %3457 = vmatpush1.msra.mxu0 0.0
    %3458 = vmatprep.subr.mxu0 0.0
    %3459 = vmatpush1.msra.mxu0 0.0
    %3460 = vmatprep.subr.mxu0 0.0
    %3461 = vmatpush1.msra.mxu0 0.0
    %3462 = vmatprep.subr.mxu0 0.0
    %3463 = vmatpush1.msra.mxu0 0.0
    %3464 = vmatprep.mubr.f32.mxu0 0.0
    %3465 = vmatmul.mubr.f32.gmra.mrb[0].mxu0 %v3394
    %v3466 = vpop.f32.mrb[0].mxu0
    %v3467 = vadd.f32 0.0, %v3466
    %v3468 = vpop.f32.mrb[0].mxu0
    %3469 = vmatprep.mubr.f32.mxu0 0.0
    %3470 = vmatmul.mubr.f32.gmra.mrb[0].mxu0 %v3395
    %v3471 = vpop.f32.mrb[0].mxu0
    %v3472 = vadd.f32 0.0, %v3471
    %v3473 = vpop.f32.mrb[0].mxu0
    %3474 = vmatprep.mubr.f32.mxu0 0.0
    %3475 = vmatmul.mubr.f32.gmra.mrb[0].mxu0 %v3396
    %v3476 = vpop.f32.mrb[0].mxu0
    %v3477 = vadd.f32 0.0, %v3476
    %v3478 = vpop.f32.mrb[0].mxu0
    %3479 = vmatprep.mubr.f32.mxu0 0.0
    %3480 = vmatmul.mubr.f32.gmra.mrb[0].mxu0 %v3397
    %v3481 = vpop.f32.mrb[0].mxu0
    %v3482 = vadd.f32 0.0, %v3481
    %v3483 = vpop.f32.mrb[0].mxu0
    %3484 = vmatprep.mubr.f32.mxu0 0.0
    %3485 = vmatmul.mubr.f32.gmra.mrb[0].mxu0 %v3398
    %v3486 = vpop.f32.mrb[0].mxu0
    %v3487 = vadd.f32 0.0, %v3486
    %v3488 = vpop.f32.mrb[0].mxu0
    %3489 = vmatprep.mubr.f32.mxu0 0.0
    %3490 = vmatmul.mubr.f32.gmra.mrb[0].mxu0 %v3399
    %v3491 = vpop.f32.mrb[0].mxu0
    %v3492 = vadd.f32 0.0, %v3491
    %v3493 = vpop.f32.mrb[0].mxu0
    %3494 = vdwg.mxu0
    %v3495 = vrot.slane %v3467, 7
    %v3496 = vrot.slane %v3472, 7
    %v3497 = vrot.slane %v3477, 7
    %v3498 = vrot.slane %v3482, 7
    %v3499 = vrot.slane %v3487, 7
    %v3500 = vrot.slane %v3492, 7
    %v3501 = vsel %vm554, %v3499, %v3500
    %v3502 = vsel %vm554, %v3498, %v3499
    %v3503 = vsel %vm554, %v3497, %v3498
    %v3504 = vsel %vm554, %v3496, %v3497
    %v3505 = vsel %vm554, %v3495, %v3496
    %v3506 = vsel %vm554, %v3500, %v3495
    %v3507 = vadd.f32 %v3467, %v3506
    %v3508 = vadd.f32 %v3472, %v3505
    %v3509 = vadd.f32 %v3477, %v3504
    %v3510 = vadd.f32 %v3482, %v3503
    %v3511 = vadd.f32 %v3487, %v3502
    %v3512 = vadd.f32 %v3492, %v3501
    %v3513 = vrot.slane %v3467, 1
    %v3514 = vrot.slane %v3472, 1
    %v3515 = vrot.slane %v3477, 1
    %v3516 = vrot.slane %v3482, 1
    %v3517 = vrot.slane %v3487, 1
    %v3518 = vrot.slane %v3492, 1
    %v3519 = vsel %vm609, %v3517, %v3518
    %v3520 = vsel %vm609, %v3516, %v3517
    %v3521 = vsel %vm609, %v3515, %v3516
    %v3522 = vsel %vm609, %v3514, %v3515
    %v3523 = vsel %vm609, %v3513, %v3514
    %v3524 = vsel %vm609, %v3518, %v3513
    %v3525 = vadd.f32 %v3507, %v3523
    %v3526 = vadd.f32 %v3508, %v3522
    %v3527 = vadd.f32 %v3509, %v3521
    %v3528 = vadd.f32 %v3510, %v3520
    %v3529 = vadd.f32 %v3511, %v3519
    %v3530 = vadd.f32 %v3512, %v3524
    %v3531 = vrot.slane %v3525, 5
    %v3532 = vrot.slane %v3526, 5
    %v3533 = vrot.slane %v3527, 5
    %v3534 = vrot.slane %v3528, 5
    %v3535 = vrot.slane %v3529, 5
    %v3536 = vrot.slane %v3530, 5
    %v3537 = vsel %vm664, %v3535, %v3536
    %v3538 = vsel %vm664, %v3534, %v3535
    %v3539 = vsel %vm664, %v3533, %v3534
    %v3540 = vsel %vm664, %v3532, %v3533
    %v3541 = vsel %vm664, %v3531, %v3532
    %v3542 = vsel %vm664, %v3536, %v3531
    %v3543 = vadd.f32 %v3525, %v3542
    %v3544 = vadd.f32 %v3526, %v3541
    %v3545 = vadd.f32 %v3527, %v3540
    %v3546 = vadd.f32 %v3528, %v3539
    %v3547 = vadd.f32 %v3529, %v3538
    %v3548 = vadd.f32 %v3530, %v3537
    %v3549 = vrot.slane %v3525, 3
    %v3550 = vrot.slane %v3526, 3
    %v3551 = vrot.slane %v3527, 3
    %v3552 = vrot.slane %v3528, 3
    %v3553 = vrot.slane %v3529, 3
    %v3554 = vrot.slane %v3530, 3
    %v3555 = vsel %vm719, %v3553, %v3554
    %v3556 = vsel %vm719, %v3552, %v3553
    %v3557 = vsel %vm719, %v3551, %v3552
    %v3558 = vsel %vm719, %v3550, %v3551
    %v3559 = vsel %vm719, %v3549, %v3550
    %v3560 = vsel %vm719, %v3554, %v3549
    %v3561 = vadd.f32 %v3543, %v3559
    %v3562 = vadd.f32 %v3544, %v3558
    %v3563 = vadd.f32 %v3545, %v3557
    %v3564 = vadd.f32 %v3546, %v3556
    %v3565 = vadd.f32 %v3547, %v3555
    %v3566 = vadd.f32 %v3548, %v3560
    %v3567 = vrot.slane %v3467, 3
    %v3568 = vrot.slane %v3472, 3
    %v3569 = vrot.slane %v3477, 3
    %v3570 = vrot.slane %v3482, 3
    %v3571 = vrot.slane %v3487, 3
    %v3572 = vrot.slane %v3492, 3
    %v3573 = vsel %vm719, %v3571, %v3572
    %v3574 = vsel %vm719, %v3570, %v3571
    %v3575 = vsel %vm719, %v3569, %v3570
    %v3576 = vsel %vm719, %v3568, %v3569
    %v3577 = vsel %vm719, %v3567, %v3568
    %v3578 = vsel %vm719, %v3572, %v3567
    %v3579 = vadd.f32 %v3561, %v3578
    %v3580 = vadd.f32 %v3562, %v3577
    %v3581 = vadd.f32 %v3563, %v3576
    %v3582 = vadd.f32 %v3564, %v3575
    %v3583 = vadd.f32 %v3565, %v3574
    %v3584 = vadd.f32 %v3566, %v3573
    %v3585 = vrot.slane %v3467, 5
    %v3586 = vrot.slane %v3472, 5
    %v3587 = vrot.slane %v3477, 5
    %v3588 = vrot.slane %v3482, 5
    %v3589 = vrot.slane %v3487, 5
    %v3590 = vrot.slane %v3492, 5
    %v3591 = vsel %vm664, %v3589, %v3590
    %v3592 = vsel %vm664, %v3588, %v3589
    %v3593 = vsel %vm664, %v3587, %v3588
    %v3594 = vsel %vm664, %v3586, %v3587
    %v3595 = vsel %vm664, %v3585, %v3586
    %v3596 = vsel %vm664, %v3590, %v3585
    %v3597 = vadd.f32 %v3579, %v3595
    %v3598 = vadd.f32 %v3580, %v3594
    %v3599 = vadd.f32 %v3581, %v3593
    %v3600 = vadd.f32 %v3582, %v3592
    %v3601 = vadd.f32 %v3583, %v3591
    %v3602 = vadd.f32 %v3584, %v3596
    %v3603 = vrsqrt.pop %v3597
    %v3604 = vrsqrt.pop %v3598
    %v3605 = vrsqrt.pop %v3599
    %v3606 = vrsqrt.pop %v3600
    %v3607 = vrsqrt.pop %v3601
    %v3608 = vrsqrt.pop %v3602
    %v3609 = vmul.f32 %v3382, %v3603
    %v3610 = vmul.f32 %v3383, %v3604
    %v3611 = vmul.f32 %v3384, %v3605
    %v3612 = vmul.f32 %v3385, %v3606
    %v3613 = vmul.f32 %v3386, %v3607
    %v3614 = vmul.f32 %v3387, %v3608
    %v3615 = vmul.f32 %v1577, %v3609
    %v3616 = vmul.f32 %v1578, %v3610
    %v3617 = vmul.f32 %v1579, %v3611
    %v3618 = vmul.f32 %v1580, %v3612
    %v3619 = vmul.f32 %v1581, %v3613
    %v3620 = vmul.f32 %v1582, %v3614
    %v3621 = vsel %vm375, %v3615, 0.0
    %v3622 = vsel %vm376, %v3616, 0.0
    %v3623 = vsel %vm377, %v3617, 0.0
    %v3624 = vsel %vm378, %v3618, 0.0
    %v3625 = vsel %vm379, %v3619, 0.0
    %v3626 = vsel %vm380, %v3620, 0.0
    %3627 = vst [vmem:[#allocation2] sm:$0xff] %v3621
    %3628 = vst [vmem:[#allocation2 + $0x8] sm:$0xff] %v3622
    %3629 = vst [vmem:[#allocation2 + $0x10] sm:$0xff] %v3623
    %3630 = vst [vmem:[#allocation2 + $0x18] sm:$0xff] %v3624
    %3631 = vst [vmem:[#allocation2 + $0x20] sm:$0xff] %v3625
    %3632 = vst [vmem:[#allocation2 + $0x28] sm:$0xff] %v3626
    %3633 = vst [vmem:[#allocation2 + $0x30] sm:$0xff] %v91
    %3634 = vst [vmem:[#allocation2 + $0x38] sm:$0xff] %v92
    %3635 = vst [vmem:[#allocation2 + $0x40] sm:$0xff] %v93
    %3636 = vst [vmem:[#allocation2 + $0x48] sm:$0xff] %v94
    %3637 = vst [vmem:[#allocation2 + $0x50] sm:$0xff] %v95
    %3638 = vst [vmem:[#allocation2 + $0x58] sm:$0xff] %v96
    %v3639 = vmul.f32 %v3621, %v3621
    %v3640 = vmul.f32 %v3622, %v3622
    %v3641 = vmul.f32 %v3623, %v3623
    %v3642 = vmul.f32 %v3624, %v3624
    %v3643 = vmul.f32 %v3625, %v3625
    %v3644 = vmul.f32 %v3626, %v3626
    %3645 = vst [vmem:[#allocation2 + $0x60] sm:$0xff] %v3639
    %3646 = vst [vmem:[#allocation2 + $0x68] sm:$0xff] %v3640
    %3647 = vst [vmem:[#allocation2 + $0x70] sm:$0xff] %v3641
    %3648 = vst [vmem:[#allocation2 + $0x78] sm:$0xff] %v3642
    %3649 = vst [vmem:[#allocation2 + $0x80] sm:$0xff] %v3643
    %3650 = vst [vmem:[#allocation2 + $0x88] sm:$0xff] %v3644
    %v3651 = vmul.f32 %v91, %v91
    %v3652 = vmul.f32 %v92, %v92
    %v3653 = vmul.f32 %v93, %v93
    %v3654 = vmul.f32 %v94, %v94
    %v3655 = vmul.f32 %v95, %v95
    %v3656 = vmul.f32 %v96, %v96
    %3657 = vst [vmem:[#allocation2 + $0x90] sm:$0xff] %v3651
    %3658 = vst [vmem:[#allocation2 + $0x98] sm:$0xff] %v3652
    %3659 = vst [vmem:[#allocation2 + $0xa0] sm:$0xff] %v3653
    %3660 = vst [vmem:[#allocation2 + $0xa8] sm:$0xff] %v3654
    %3661 = vst [vmem:[#allocation2 + $0xb0] sm:$0xff] %v3655
    %3662 = vst [vmem:[#allocation2 + $0xb8] sm:$0xff] %v3656
    %v3663 = vmul.f32 %v3621, %v91
    %v3664 = vmul.f32 %v3622, %v92
    %v3665 = vmul.f32 %v3623, %v93
    %v3666 = vmul.f32 %v3624, %v94
    %v3667 = vmul.f32 %v3625, %v95
    %v3668 = vmul.f32 %v3626, %v96
    %3669 = vst [vmem:[#allocation2 + $0xc0] sm:$0xff] %v3663
    %3670 = vst [vmem:[#allocation2 + $0xc8] sm:$0xff] %v3664
    %3671 = vst [vmem:[#allocation2 + $0xd0] sm:$0xff] %v3665
    %3672 = vst [vmem:[#allocation2 + $0xd8] sm:$0xff] %v3666
    %3673 = vst [vmem:[#allocation2 + $0xe0] sm:$0xff] %v3667
    %3674 = vst [vmem:[#allocation2 + $0xe8] sm:$0xff] %v3668
    %v3675 = vld [vmem:[#allocation2] sm:$0xff]
    %v3676 = vld [vmem:[#allocation2 + $0x8] sm:$0xff]
    %v3677 = vld [vmem:[#allocation2 + $0x10] sm:$0xff]
    %v3678 = vld [vmem:[#allocation2 + $0x18] sm:$0xff]
    %v3679 = vld [vmem:[#allocation2 + $0x20] sm:$0xff]
    %v3680 = vld [vmem:[#allocation2 + $0x28] sm:$0xff]
    %v3681 = vld [vmem:[#allocation2 + $0x30] sm:$0xff]
    %v3682 = vld [vmem:[#allocation2 + $0x38] sm:$0xff]
    %v3683 = vld [vmem:[#allocation2 + $0x40] sm:$0xff]
    %v3684 = vld [vmem:[#allocation2 + $0x48] sm:$0xff]
    %v3685 = vld [vmem:[#allocation2 + $0x50] sm:$0xff]
    %v3686 = vld [vmem:[#allocation2 + $0x58] sm:$0xff]
    %v3687 = vld [vmem:[#allocation2 + $0x60] sm:$0xff]
    %v3688 = vld [vmem:[#allocation2 + $0x68] sm:$0xff]
    %v3689 = vld [vmem:[#allocation2 + $0x70] sm:$0xff]
    %v3690 = vld [vmem:[#allocation2 + $0x78] sm:$0xff]
    %v3691 = vld [vmem:[#allocation2 + $0x80] sm:$0xff]
    %v3692 = vld [vmem:[#allocation2 + $0x88] sm:$0xff]
    %v3693 = vld [vmem:[#allocation2 + $0x90] sm:$0xff]
    %v3694 = vld [vmem:[#allocation2 + $0x98] sm:$0xff]
    %v3695 = vld [vmem:[#allocation2 + $0xa0] sm:$0xff]
    %v3696 = vld [vmem:[#allocation2 + $0xa8] sm:$0xff]
    %v3697 = vld [vmem:[#allocation2 + $0xb0] sm:$0xff]
    %v3698 = vld [vmem:[#allocation2 + $0xb8] sm:$0xff]
    %v3699 = vld [vmem:[#allocation2 + $0xc0] sm:$0xff]
    %v3700 = vld [vmem:[#allocation2 + $0xc8] sm:$0xff]
    %v3701 = vld [vmem:[#allocation2 + $0xd0] sm:$0xff]
    %v3702 = vld [vmem:[#allocation2 + $0xd8] sm:$0xff]
    %v3703 = vld [vmem:[#allocation2 + $0xe0] sm:$0xff]
    %v3704 = vld [vmem:[#allocation2 + $0xe8] sm:$0xff]
    %3705 = vmatprep.subr.mxu0 0.0
    %3706 = vmatpush1.msra.mxu0 %v113
    %3707 = vmatprep.subr.mxu0 0.0
    %3708 = vmatpush1.msra.mxu0 %v114
    %3709 = vmatprep.subr.mxu0 0.0
    %3710 = vmatpush1.msra.mxu0 %v115
    %3711 = vmatprep.subr.mxu0 0.0
    %3712 = vmatpush1.msra.mxu0 %v116
    %3713 = vmatprep.subr.mxu0 0.0
    %3714 = vmatpush1.msra.mxu0 %v117
    %3715 = vmatprep.subr.mxu0 0.0
    %3716 = vmatpush1.msra.mxu0 %v118
    %3717 = vmatprep.subr.mxu0 0.0
    %3718 = vmatpush1.msra.mxu0 %v119
    %3719 = vmatprep.subr.mxu0 0.0
    %3720 = vmatpush1.msra.mxu0 %v120
    %3721 = vmatprep.subr.mxu0 0.0
    %3722 = vmatpush1.msra.mxu0 %v121
    %3723 = vmatprep.subr.mxu0 0.0
    %3724 = vmatpush1.msra.mxu0 %v122
    %3725 = vmatprep.subr.mxu0 0.0
    %3726 = vmatpush1.msra.mxu0 %v123
    %3727 = vmatprep.subr.mxu0 0.0
    %3728 = vmatpush1.msra.mxu0 %v124
    %3729 = vmatprep.subr.mxu0 0.0
    %3730 = vmatpush1.msra.mxu0 %v125
    %3731 = vmatprep.subr.mxu0 0.0
    %3732 = vmatpush1.msra.mxu0 %v126
    %3733 = vmatprep.subr.mxu0 0.0
    %3734 = vmatpush1.msra.mxu0 %v127
    %3735 = vmatprep.subr.mxu0 0.0
    %3736 = vmatpush1.msra.mxu0 %v128
    %3737 = vmatprep.subr.mxu0 0.0
    %3738 = vmatpush1.msra.mxu0 0.0
    %3739 = vmatprep.subr.mxu0 0.0
    %3740 = vmatpush1.msra.mxu0 0.0
    %3741 = vmatprep.subr.mxu0 0.0
    %3742 = vmatpush1.msra.mxu0 0.0
    %3743 = vmatprep.subr.mxu0 0.0
    %3744 = vmatpush1.msra.mxu0 0.0
    %3745 = vmatprep.subr.mxu0 0.0
    %3746 = vmatpush1.msra.mxu0 0.0
    %3747 = vmatprep.subr.mxu0 0.0
    %3748 = vmatpush1.msra.mxu0 0.0
    %3749 = vmatprep.subr.mxu0 0.0
    %3750 = vmatpush1.msra.mxu0 0.0
    %3751 = vmatprep.subr.mxu0 0.0
    %3752 = vmatpush1.msra.mxu0 0.0
    %3753 = vmatprep.subr.mxu0 0.0
    %3754 = vmatpush1.msra.mxu0 0.0
    %3755 = vmatprep.subr.mxu0 0.0
    %3756 = vmatpush1.msra.mxu0 0.0
    %3757 = vmatprep.subr.mxu0 0.0
    %3758 = vmatpush1.msra.mxu0 0.0
    %3759 = vmatprep.subr.mxu0 0.0
    %3760 = vmatpush1.msra.mxu0 0.0
    %3761 = vmatprep.subr.mxu0 0.0
    %3762 = vmatpush1.msra.mxu0 0.0
    %3763 = vmatprep.subr.mxu0 0.0
    %3764 = vmatpush1.msra.mxu0 0.0
    %3765 = vmatprep.subr.mxu0 0.0
    %3766 = vmatpush1.msra.mxu0 0.0
    %3767 = vmatprep.subr.mxu0 0.0
    %3768 = vmatpush1.msra.mxu0 0.0
    %3769 = vmatprep.mubr.f32.mxu0 0.0
    %3770 = vmatmul.mubr.f32.gmra.mrb[0].mxu0 %v3675
    %v3771 = vpop.f32.mrb[0].mxu0
    %v3772 = vadd.f32 0.0, %v3771
    %v3773 = vpop.f32.mrb[0].mxu0
    %3774 = vmatprep.mubr.f32.mxu0 0.0
    %3775 = vmatmul.mubr.f32.gmra.mrb[0].mxu0 %v3676
    %v3776 = vpop.f32.mrb[0].mxu0
    %v3777 = vadd.f32 0.0, %v3776
    %v3778 = vpop.f32.mrb[0].mxu0
    %3779 = vmatprep.mubr.f32.mxu0 0.0
    %3780 = vmatmul.mubr.f32.gmra.mrb[0].mxu0 %v3677
    %v3781 = vpop.f32.mrb[0].mxu0
    %v3782 = vadd.f32 0.0, %v3781
    %v3783 = vpop.f32.mrb[0].mxu0
    %3784 = vmatprep.mubr.f32.mxu0 0.0
    %3785 = vmatmul.mubr.f32.gmra.mrb[0].mxu0 %v3678
    %v3786 = vpop.f32.mrb[0].mxu0
    %v3787 = vadd.f32 0.0, %v3786
    %v3788 = vpop.f32.mrb[0].mxu0
    %3789 = vmatprep.mubr.f32.mxu0 0.0
    %3790 = vmatmul.mubr.f32.gmra.mrb[0].mxu0 %v3679
    %v3791 = vpop.f32.mrb[0].mxu0
    %v3792 = vadd.f32 0.0, %v3791
    %v3793 = vpop.f32.mrb[0].mxu0
    %3794 = vmatprep.mubr.f32.mxu0 0.0
    %3795 = vmatmul.mubr.f32.gmra.mrb[0].mxu0 %v3680
    %v3796 = vpop.f32.mrb[0].mxu0
    %v3797 = vadd.f32 0.0, %v3796
    %v3798 = vpop.f32.mrb[0].mxu0
    %3799 = vmatprep.mubr.f32.mxu0 0.0
    %3800 = vmatmul.mubr.f32.gmra.mrb[0].mxu0 %v3681
    %v3801 = vpop.f32.mrb[0].mxu0
    %v3802 = vadd.f32 0.0, %v3801
    %v3803 = vpop.f32.mrb[0].mxu0
    %3804 = vmatprep.mubr.f32.mxu0 0.0
    %3805 = vmatmul.mubr.f32.gmra.mrb[0].mxu0 %v3682
    %v3806 = vpop.f32.mrb[0].mxu0
    %v3807 = vadd.f32 0.0, %v3806
    %v3808 = vpop.f32.mrb[0].mxu0
    %3809 = vmatprep.mubr.f32.mxu0 0.0
    %3810 = vmatmul.mubr.f32.gmra.mrb[0].mxu0 %v3683
    %v3811 = vpop.f32.mrb[0].mxu0
    %v3812 = vadd.f32 0.0, %v3811
    %v3813 = vpop.f32.mrb[0].mxu0
    %3814 = vmatprep.mubr.f32.mxu0 0.0
    %3815 = vmatmul.mubr.f32.gmra.mrb[0].mxu0 %v3684
    %v3816 = vpop.f32.mrb[0].mxu0
    %v3817 = vadd.f32 0.0, %v3816
    %v3818 = vpop.f32.mrb[0].mxu0
    %3819 = vmatprep.mubr.f32.mxu0 0.0
    %3820 = vmatmul.mubr.f32.gmra.mrb[0].mxu0 %v3685
    %v3821 = vpop.f32.mrb[0].mxu0
    %v3822 = vadd.f32 0.0, %v3821
    %v3823 = vpop.f32.mrb[0].mxu0
    %3824 = vmatprep.mubr.f32.mxu0 0.0
    %3825 = vmatmul.mubr.f32.gmra.mrb[0].mxu0 %v3686
    %v3826 = vpop.f32.mrb[0].mxu0
    %v3827 = vadd.f32 0.0, %v3826
    %v3828 = vpop.f32.mrb[0].mxu0
    %3829 = vmatprep.mubr.f32.mxu0 0.0
    %3830 = vmatmul.mubr.f32.gmra.mrb[0].mxu0 %v3687
    %v3831 = vpop.f32.mrb[0].mxu0
    %v3832 = vadd.f32 0.0, %v3831
    %v3833 = vpop.f32.mrb[0].mxu0
    %3834 = vmatprep.mubr.f32.mxu0 0.0
    %3835 = vmatmul.mubr.f32.gmra.mrb[0].mxu0 %v3688
    %v3836 = vpop.f32.mrb[0].mxu0
    %v3837 = vadd.f32 0.0, %v3836
    %v3838 = vpop.f32.mrb[0].mxu0
    %3839 = vmatprep.mubr.f32.mxu0 0.0
    %3840 = vmatmul.mubr.f32.gmra.mrb[0].mxu0 %v3689
    %v3841 = vpop.f32.mrb[0].mxu0
    %v3842 = vadd.f32 0.0, %v3841
    %v3843 = vpop.f32.mrb[0].mxu0
    %3844 = vmatprep.mubr.f32.mxu0 0.0
    %3845 = vmatmul.mubr.f32.gmra.mrb[0].mxu0 %v3690
    %v3846 = vpop.f32.mrb[0].mxu0
    %v3847 = vadd.f32 0.0, %v3846
    %v3848 = vpop.f32.mrb[0].mxu0
    %3849 = vmatprep.mubr.f32.mxu0 0.0
    %3850 = vmatmul.mubr.f32.gmra.mrb[0].mxu0 %v3691
    %v3851 = vpop.f32.mrb[0].mxu0
    %v3852 = vadd.f32 0.0, %v3851
    %v3853 = vpop.f32.mrb[0].mxu0
    %3854 = vmatprep.mubr.f32.mxu0 0.0
    %3855 = vmatmul.mubr.f32.gmra.mrb[0].mxu0 %v3692
    %v3856 = vpop.f32.mrb[0].mxu0
    %v3857 = vadd.f32 0.0, %v3856
    %v3858 = vpop.f32.mrb[0].mxu0
    %3859 = vmatprep.mubr.f32.mxu0 0.0
    %3860 = vmatmul.mubr.f32.gmra.mrb[0].mxu0 %v3693
    %v3861 = vpop.f32.mrb[0].mxu0
    %v3862 = vadd.f32 0.0, %v3861
    %v3863 = vpop.f32.mrb[0].mxu0
    %3864 = vmatprep.mubr.f32.mxu0 0.0
    %3865 = vmatmul.mubr.f32.gmra.mrb[0].mxu0 %v3694
    %v3866 = vpop.f32.mrb[0].mxu0
    %v3867 = vadd.f32 0.0, %v3866
    %v3868 = vpop.f32.mrb[0].mxu0
    %3869 = vmatprep.mubr.f32.mxu0 0.0
    %3870 = vmatmul.mubr.f32.gmra.mrb[0].mxu0 %v3695
    %v3871 = vpop.f32.mrb[0].mxu0
    %v3872 = vadd.f32 0.0, %v3871
    %v3873 = vpop.f32.mrb[0].mxu0
    %3874 = vmatprep.mubr.f32.mxu0 0.0
    %3875 = vmatmul.mubr.f32.gmra.mrb[0].mxu0 %v3696
    %v3876 = vpop.f32.mrb[0].mxu0
    %v3877 = vadd.f32 0.0, %v3876
    %v3878 = vpop.f32.mrb[0].mxu0
    %3879 = vmatprep.mubr.f32.mxu0 0.0
    %3880 = vmatmul.mubr.f32.gmra.mrb[0].mxu0 %v3697
    %v3881 = vpop.f32.mrb[0].mxu0
    %v3882 = vadd.f32 0.0, %v3881
    %v3883 = vpop.f32.mrb[0].mxu0
    %3884 = vmatprep.mubr.f32.mxu0 0.0
    %3885 = vmatmul.mubr.f32.gmra.mrb[0].mxu0 %v3698
    %v3886 = vpop.f32.mrb[0].mxu0
    %v3887 = vadd.f32 0.0, %v3886
    %v3888 = vpop.f32.mrb[0].mxu0
    %3889 = vmatprep.mubr.f32.mxu0 0.0
    %3890 = vmatmul.mubr.f32.gmra.mrb[0].mxu0 %v3699
    %v3891 = vpop.f32.mrb[0].mxu0
    %v3892 = vadd.f32 0.0, %v3891
    %v3893 = vpop.f32.mrb[0].mxu0
    %3894 = vmatprep.mubr.f32.mxu0 0.0
    %3895 = vmatmul.mubr.f32.gmra.mrb[0].mxu0 %v3700
    %v3896 = vpop.f32.mrb[0].mxu0
    %v3897 = vadd.f32 0.0, %v3896
    %v3898 = vpop.f32.mrb[0].mxu0
    %3899 = vmatprep.mubr.f32.mxu0 0.0
    %3900 = vmatmul.mubr.f32.gmra.mrb[0].mxu0 %v3701
    %v3901 = vpop.f32.mrb[0].mxu0
    %v3902 = vadd.f32 0.0, %v3901
    %v3903 = vpop.f32.mrb[0].mxu0
    %3904 = vmatprep.mubr.f32.mxu0 0.0
    %3905 = vmatmul.mubr.f32.gmra.mrb[0].mxu0 %v3702
    %v3906 = vpop.f32.mrb[0].mxu0
    %v3907 = vadd.f32 0.0, %v3906
    %v3908 = vpop.f32.mrb[0].mxu0
    %3909 = vmatprep.mubr.f32.mxu0 0.0
    %3910 = vmatmul.mubr.f32.gmra.mrb[0].mxu0 %v3703
    %v3911 = vpop.f32.mrb[0].mxu0
    %v3912 = vadd.f32 0.0, %v3911
    %v3913 = vpop.f32.mrb[0].mxu0
    %3914 = vmatprep.mubr.f32.mxu0 0.0
    %3915 = vmatmul.mubr.f32.gmra.mrb[0].mxu0 %v3704
    %v3916 = vpop.f32.mrb[0].mxu0
    %v3917 = vadd.f32 0.0, %v3916
    %v3918 = vpop.f32.mrb[0].mxu0
    %3919 = vdwg.mxu0
    %v3920 = vmul.f32 %v3772, 0.26601171
    %v3921 = vmul.f32 %v3777, 0.26601171
    %v3922 = vmul.f32 %v3782, 0.26601171
    %v3923 = vmul.f32 %v3787, 0.26601171
    %v3924 = vmul.f32 %v3792, 0.26601171
    %v3925 = vmul.f32 %v3797, 0.26601171
    %v3926 = vmul.f32 %v3802, 0.26601171
    %v3927 = vmul.f32 %v3807, 0.26601171
    %v3928 = vmul.f32 %v3812, 0.26601171
    %v3929 = vmul.f32 %v3817, 0.26601171
    %v3930 = vmul.f32 %v3822, 0.26601171
    %v3931 = vmul.f32 %v3827, 0.26601171
    %v3932 = vmul.f32 %v3832, 0.26601171
    %v3933 = vmul.f32 %v3837, 0.26601171
    %v3934 = vmul.f32 %v3842, 0.26601171
    %v3935 = vmul.f32 %v3847, 0.26601171
    %v3936 = vmul.f32 %v3852, 0.26601171
    %v3937 = vmul.f32 %v3857, 0.26601171
    %v3938 = vmul.f32 %v3862, 0.26601171
    %v3939 = vmul.f32 %v3867, 0.26601171
    %v3940 = vmul.f32 %v3872, 0.26601171
    %v3941 = vmul.f32 %v3877, 0.26601171
    %v3942 = vmul.f32 %v3882, 0.26601171
    %v3943 = vmul.f32 %v3887, 0.26601171
    %v3944 = vmul.f32 %v3892, 0.26601171
    %v3945 = vmul.f32 %v3897, 0.26601171
    %v3946 = vmul.f32 %v3902, 0.26601171
    %v3947 = vmul.f32 %v3907, 0.26601171
    %v3948 = vmul.f32 %v3912, 0.26601171
    %v3949 = vmul.f32 %v3917, 0.26601171
    %v3950 = vrot.slane %v3772, 7
    %v3951 = vrot.slane %v3777, 7
    %v3952 = vrot.slane %v3782, 7
    %v3953 = vrot.slane %v3787, 7
    %v3954 = vrot.slane %v3792, 7
    %v3955 = vrot.slane %v3797, 7
    %v3956 = vrot.slane %v3802, 7
    %v3957 = vrot.slane %v3807, 7
    %v3958 = vrot.slane %v3812, 7
    %v3959 = vrot.slane %v3817, 7
    %v3960 = vrot.slane %v3822, 7
    %v3961 = vrot.slane %v3827, 7
    %v3962 = vrot.slane %v3832, 7
    %v3963 = vrot.slane %v3837, 7
    %v3964 = vrot.slane %v3842, 7
    %v3965 = vrot.slane %v3847, 7
    %v3966 = vrot.slane %v3852, 7
    %v3967 = vrot.slane %v3857, 7
    %v3968 = vrot.slane %v3862, 7
    %v3969 = vrot.slane %v3867, 7
    %v3970 = vrot.slane %v3872, 7
    %v3971 = vrot.slane %v3877, 7
    %v3972 = vrot.slane %v3882, 7
    %v3973 = vrot.slane %v3887, 7
    %v3974 = vrot.slane %v3892, 7
    %v3975 = vrot.slane %v3897, 7
    %v3976 = vrot.slane %v3902, 7
    %v3977 = vrot.slane %v3907, 7
    %v3978 = vrot.slane %v3912, 7
    %v3979 = vrot.slane %v3917, 7
    %v3980 = vsel %vm554, %v3978, %v3979
    %v3981 = vsel %vm554, %v3977, %v3978
    %v3982 = vsel %vm554, %v3976, %v3977
    %v3983 = vsel %vm554, %v3975, %v3976
    %v3984 = vsel %vm554, %v3974, %v3975
    %v3985 = vsel %vm554, %v3973, %v3974
    %v3986 = vsel %vm554, %v3972, %v3973
    %v3987 = vsel %vm554, %v3971, %v3972
    %v3988 = vsel %vm554, %v3970, %v3971
    %v3989 = vsel %vm554, %v3969, %v3970
    %v3990 = vsel %vm554, %v3968, %v3969
    %v3991 = vsel %vm554, %v3967, %v3968
    %v3992 = vsel %vm554, %v3966, %v3967
    %v3993 = vsel %vm554, %v3965, %v3966
    %v3994 = vsel %vm554, %v3964, %v3965
    %v3995 = vsel %vm554, %v3963, %v3964
    %v3996 = vsel %vm554, %v3962, %v3963
    %v3997 = vsel %vm554, %v3961, %v3962
    %v3998 = vsel %vm554, %v3960, %v3961
    %v3999 = vsel %vm554, %v3959, %v3960
    %v4000 = vsel %vm554, %v3958, %v3959
    %v4001 = vsel %vm554, %v3957, %v3958
    %v4002 = vsel %vm554, %v3956, %v3957
    %v4003 = vsel %vm554, %v3955, %v3956
    %v4004 = vsel %vm554, %v3954, %v3955
    %v4005 = vsel %vm554, %v3953, %v3954
    %v4006 = vsel %vm554, %v3952, %v3953
    %v4007 = vsel %vm554, %v3951, %v3952
    %v4008 = vsel %vm554, %v3950, %v3951
    %v4009 = vsel %vm554, %v3979, %v3950
    %v4010 = vrot.slane %v3772, 1
    %v4011 = vrot.slane %v3777, 1
    %v4012 = vrot.slane %v3782, 1
    %v4013 = vrot.slane %v3787, 1
    %v4014 = vrot.slane %v3792, 1
    %v4015 = vrot.slane %v3797, 1
    %v4016 = vrot.slane %v3802, 1
    %v4017 = vrot.slane %v3807, 1
    %v4018 = vrot.slane %v3812, 1
    %v4019 = vrot.slane %v3817, 1
    %v4020 = vrot.slane %v3822, 1
    %v4021 = vrot.slane %v3827, 1
    %v4022 = vrot.slane %v3832, 1
    %v4023 = vrot.slane %v3837, 1
    %v4024 = vrot.slane %v3842, 1
    %v4025 = vrot.slane %v3847, 1
    %v4026 = vrot.slane %v3852, 1
    %v4027 = vrot.slane %v3857, 1
    %v4028 = vrot.slane %v3862, 1
    %v4029 = vrot.slane %v3867, 1
    %v4030 = vrot.slane %v3872, 1
    %v4031 = vrot.slane %v3877, 1
    %v4032 = vrot.slane %v3882, 1
    %v4033 = vrot.slane %v3887, 1
    %v4034 = vrot.slane %v3892, 1
    %v4035 = vrot.slane %v3897, 1
    %v4036 = vrot.slane %v3902, 1
    %v4037 = vrot.slane %v3907, 1
    %v4038 = vrot.slane %v3912, 1
    %v4039 = vrot.slane %v3917, 1
    %v4040 = vsel %vm609, %v4038, %v4039
    %v4041 = vsel %vm609, %v4037, %v4038
    %v4042 = vsel %vm609, %v4036, %v4037
    %v4043 = vsel %vm609, %v4035, %v4036
    %v4044 = vsel %vm609, %v4034, %v4035
    %v4045 = vsel %vm609, %v4033, %v4034
    %v4046 = vsel %vm609, %v4032, %v4033
    %v4047 = vsel %vm609, %v4031, %v4032
    %v4048 = vsel %vm609, %v4030, %v4031
    %v4049 = vsel %vm609, %v4029, %v4030
    %v4050 = vsel %vm609, %v4028, %v4029
    %v4051 = vsel %vm609, %v4027, %v4028
    %v4052 = vsel %vm609, %v4026, %v4027
    %v4053 = vsel %vm609, %v4025, %v4026
    %v4054 = vsel %vm609, %v4024, %v4025
    %v4055 = vsel %vm609, %v4023, %v4024
    %v4056 = vsel %vm609, %v4022, %v4023
    %v4057 = vsel %vm609, %v4021, %v4022
    %v4058 = vsel %vm609, %v4020, %v4021
    %v4059 = vsel %vm609, %v4019, %v4020
    %v4060 = vsel %vm609, %v4018, %v4019
    %v4061 = vsel %vm609, %v4017, %v4018
    %v4062 = vsel %vm609, %v4016, %v4017
    %v4063 = vsel %vm609, %v4015, %v4016
    %v4064 = vsel %vm609, %v4014, %v4015
    %v4065 = vsel %vm609, %v4013, %v4014
    %v4066 = vsel %vm609, %v4012, %v4013
    %v4067 = vsel %vm609, %v4011, %v4012
    %v4068 = vsel %vm609, %v4010, %v4011
    %v4069 = vsel %vm609, %v4039, %v4010
    %v4070 = vadd.f32 %v4009, %v4068
    %v4071 = vadd.f32 %v4008, %v4067
    %v4072 = vadd.f32 %v4007, %v4066
    %v4073 = vadd.f32 %v4006, %v4065
    %v4074 = vadd.f32 %v4005, %v4064
    %v4075 = vadd.f32 %v4004, %v4063
    %v4076 = vadd.f32 %v4003, %v4062
    %v4077 = vadd.f32 %v4002, %v4061
    %v4078 = vadd.f32 %v4001, %v4060
    %v4079 = vadd.f32 %v4000, %v4059
    %v4080 = vadd.f32 %v3999, %v4058
    %v4081 = vadd.f32 %v3998, %v4057
    %v4082 = vadd.f32 %v3997, %v4056
    %v4083 = vadd.f32 %v3996, %v4055
    %v4084 = vadd.f32 %v3995, %v4054
    %v4085 = vadd.f32 %v3994, %v4053
    %v4086 = vadd.f32 %v3993, %v4052
    %v4087 = vadd.f32 %v3992, %v4051
    %v4088 = vadd.f32 %v3991, %v4050
    %v4089 = vadd.f32 %v3990, %v4049
    %v4090 = vadd.f32 %v3989, %v4048
    %v4091 = vadd.f32 %v3988, %v4047
    %v4092 = vadd.f32 %v3987, %v4046
    %v4093 = vadd.f32 %v3986, %v4045
    %v4094 = vadd.f32 %v3985, %v4044
    %v4095 = vadd.f32 %v3984, %v4043
    %v4096 = vadd.f32 %v3983, %v4042
    %v4097 = vadd.f32 %v3982, %v4041
    %v4098 = vadd.f32 %v3981, %v4040
    %v4099 = vadd.f32 %v3980, %v4069
    %v4100 = vmul.f32 %v4070, 0.21300554
    %v4101 = vmul.f32 %v4071, 0.21300554
    %v4102 = vmul.f32 %v4072, 0.21300554
    %v4103 = vmul.f32 %v4073, 0.21300554
    %v4104 = vmul.f32 %v4074, 0.21300554
    %v4105 = vmul.f32 %v4075, 0.21300554
    %v4106 = vmul.f32 %v4076, 0.21300554
    %v4107 = vmul.f32 %v4077, 0.21300554
    %v4108 = vmul.f32 %v4078, 0.21300554
    %v4109 = vmul.f32 %v4079, 0.21300554
    %v4110 = vmul.f32 %v4080, 0.21300554
    %v4111 = vmul.f32 %v4081, 0.21300554
    %v4112 = vmul.f32 %v4082, 0.21300554
    %v4113 = vmul.f32 %v4083, 0.21300554
    %v4114 = vmul.f32 %v4084, 0.21300554
    %v4115 = vmul.f32 %v4085, 0.21300554
    %v4116 = vmul.f32 %v4086, 0.21300554
    %v4117 = vmul.f32 %v4087, 0.21300554
    %v4118 = vmul.f32 %v4088, 0.21300554
    %v4119 = vmul.f32 %v4089, 0.21300554
    %v4120 = vmul.f32 %v4090, 0.21300554
    %v4121 = vmul.f32 %v4091, 0.21300554
    %v4122 = vmul.f32 %v4092, 0.21300554
    %v4123 = vmul.f32 %v4093, 0.21300554
    %v4124 = vmul.f32 %v4094, 0.21300554
    %v4125 = vmul.f32 %v4095, 0.21300554
    %v4126 = vmul.f32 %v4096, 0.21300554
    %v4127 = vmul.f32 %v4097, 0.21300554
    %v4128 = vmul.f32 %v4098, 0.21300554
    %v4129 = vmul.f32 %v4099, 0.21300554
    %v4130 = vadd.f32 %v3920, %v4100
    %v4131 = vadd.f32 %v3921, %v4101
    %v4132 = vadd.f32 %v3922, %v4102
    %v4133 = vadd.f32 %v3923, %v4103
    %v4134 = vadd.f32 %v3924, %v4104
    %v4135 = vadd.f32 %v3925, %v4105
    %v4136 = vadd.f32 %v3926, %v4106
    %v4137 = vadd.f32 %v3927, %v4107
    %v4138 = vadd.f32 %v3928, %v4108
    %v4139 = vadd.f32 %v3929, %v4109
    %v4140 = vadd.f32 %v3930, %v4110
    %v4141 = vadd.f32 %v3931, %v4111
    %v4142 = vadd.f32 %v3932, %v4112
    %v4143 = vadd.f32 %v3933, %v4113
    %v4144 = vadd.f32 %v3934, %v4114
    %v4145 = vadd.f32 %v3935, %v4115
    %v4146 = vadd.f32 %v3936, %v4116
    %v4147 = vadd.f32 %v3937, %v4117
    %v4148 = vadd.f32 %v3938, %v4118
    %v4149 = vadd.f32 %v3939, %v4119
    %v4150 = vadd.f32 %v3940, %v4120
    %v4151 = vadd.f32 %v3941, %v4121
    %v4152 = vadd.f32 %v3942, %v4122
    %v4153 = vadd.f32 %v3943, %v4123
    %v4154 = vadd.f32 %v3944, %v4124
    %v4155 = vadd.f32 %v3945, %v4125
    %v4156 = vadd.f32 %v3946, %v4126
    %v4157 = vadd.f32 %v3947, %v4127
    %v4158 = vadd.f32 %v3948, %v4128
    %v4159 = vadd.f32 %v3949, %v4129
    %v4160 = vrot.slane %v3772, 6
    %v4161 = vrot.slane %v3777, 6
    %v4162 = vrot.slane %v3782, 6
    %v4163 = vrot.slane %v3787, 6
    %v4164 = vrot.slane %v3792, 6
    %v4165 = vrot.slane %v3797, 6
    %v4166 = vrot.slane %v3802, 6
    %v4167 = vrot.slane %v3807, 6
    %v4168 = vrot.slane %v3812, 6
    %v4169 = vrot.slane %v3817, 6
    %v4170 = vrot.slane %v3822, 6
    %v4171 = vrot.slane %v3827, 6
    %v4172 = vrot.slane %v3832, 6
    %v4173 = vrot.slane %v3837, 6
    %v4174 = vrot.slane %v3842, 6
    %v4175 = vrot.slane %v3847, 6
    %v4176 = vrot.slane %v3852, 6
    %v4177 = vrot.slane %v3857, 6
    %v4178 = vrot.slane %v3862, 6
    %v4179 = vrot.slane %v3867, 6
    %v4180 = vrot.slane %v3872, 6
    %v4181 = vrot.slane %v3877, 6
    %v4182 = vrot.slane %v3882, 6
    %v4183 = vrot.slane %v3887, 6
    %v4184 = vrot.slane %v3892, 6
    %v4185 = vrot.slane %v3897, 6
    %v4186 = vrot.slane %v3902, 6
    %v4187 = vrot.slane %v3907, 6
    %v4188 = vrot.slane %v3912, 6
    %v4189 = vrot.slane %v3917, 6
    %vm4190 = vcmp.lt.s32.totalorder %v130, 2
    %v4191 = vsel %vm4190, %v4188, %v4189
    %v4192 = vsel %vm4190, %v4187, %v4188
    %v4193 = vsel %vm4190, %v4186, %v4187
    %v4194 = vsel %vm4190, %v4185, %v4186
    %v4195 = vsel %vm4190, %v4184, %v4185
    %v4196 = vsel %vm4190, %v4183, %v4184
    %v4197 = vsel %vm4190, %v4182, %v4183
    %v4198 = vsel %vm4190, %v4181, %v4182
    %v4199 = vsel %vm4190, %v4180, %v4181
    %v4200 = vsel %vm4190, %v4179, %v4180
    %v4201 = vsel %vm4190, %v4178, %v4179
    %v4202 = vsel %vm4190, %v4177, %v4178
    %v4203 = vsel %vm4190, %v4176, %v4177
    %v4204 = vsel %vm4190, %v4175, %v4176
    %v4205 = vsel %vm4190, %v4174, %v4175
    %v4206 = vsel %vm4190, %v4173, %v4174
    %v4207 = vsel %vm4190, %v4172, %v4173
    %v4208 = vsel %vm4190, %v4171, %v4172
    %v4209 = vsel %vm4190, %v4170, %v4171
    %v4210 = vsel %vm4190, %v4169, %v4170
    %v4211 = vsel %vm4190, %v4168, %v4169
    %v4212 = vsel %vm4190, %v4167, %v4168
    %v4213 = vsel %vm4190, %v4166, %v4167
    %v4214 = vsel %vm4190, %v4165, %v4166
    %v4215 = vsel %vm4190, %v4164, %v4165
    %v4216 = vsel %vm4190, %v4163, %v4164
    %v4217 = vsel %vm4190, %v4162, %v4163
    %v4218 = vsel %vm4190, %v4161, %v4162
    %v4219 = vsel %vm4190, %v4160, %v4161
    %v4220 = vsel %vm4190, %v4189, %v4160
    %v4221 = vrot.slane %v3772, 2
    %v4222 = vrot.slane %v3777, 2
    %v4223 = vrot.slane %v3782, 2
    %v4224 = vrot.slane %v3787, 2
    %v4225 = vrot.slane %v3792, 2
    %v4226 = vrot.slane %v3797, 2
    %v4227 = vrot.slane %v3802, 2
    %v4228 = vrot.slane %v3807, 2
    %v4229 = vrot.slane %v3812, 2
    %v4230 = vrot.slane %v3817, 2
    %v4231 = vrot.slane %v3822, 2
    %v4232 = vrot.slane %v3827, 2
    %v4233 = vrot.slane %v3832, 2
    %v4234 = vrot.slane %v3837, 2
    %v4235 = vrot.slane %v3842, 2
    %v4236 = vrot.slane %v3847, 2
    %v4237 = vrot.slane %v3852, 2
    %v4238 = vrot.slane %v3857, 2
    %v4239 = vrot.slane %v3862, 2
    %v4240 = vrot.slane %v3867, 2
    %v4241 = vrot.slane %v3872, 2
    %v4242 = vrot.slane %v3877, 2
    %v4243 = vrot.slane %v3882, 2
    %v4244 = vrot.slane %v3887, 2
    %v4245 = vrot.slane %v3892, 2
    %v4246 = vrot.slane %v3897, 2
    %v4247 = vrot.slane %v3902, 2
    %v4248 = vrot.slane %v3907, 2
    %v4249 = vrot.slane %v3912, 2
    %v4250 = vrot.slane %v3917, 2
    %vm4251 = vcmp.lt.s32.totalorder %v130, 6
    %v4252 = vsel %vm4251, %v4249, %v4250
    %v4253 = vsel %vm4251, %v4248, %v4249
    %v4254 = vsel %vm4251, %v4247, %v4248
    %v4255 = vsel %vm4251, %v4246, %v4247
    %v4256 = vsel %vm4251, %v4245, %v4246
    %v4257 = vsel %vm4251, %v4244, %v4245
    %v4258 = vsel %vm4251, %v4243, %v4244
    %v4259 = vsel %vm4251, %v4242, %v4243
    %v4260 = vsel %vm4251, %v4241, %v4242
    %v4261 = vsel %vm4251, %v4240, %v4241
    %v4262 = vsel %vm4251, %v4239, %v4240
    %v4263 = vsel %vm4251, %v4238, %v4239
    %v4264 = vsel %vm4251, %v4237, %v4238
    %v4265 = vsel %vm4251, %v4236, %v4237
    %v4266 = vsel %vm4251, %v4235, %v4236
    %v4267 = vsel %vm4251, %v4234, %v4235
    %v4268 = vsel %vm4251, %v4233, %v4234
    %v4269 = vsel %vm4251, %v4232, %v4233
    %v4270 = vsel %vm4251, %v4231, %v4232
    %v4271 = vsel %vm4251, %v4230, %v4231
    %v4272 = vsel %vm4251, %v4229, %v4230
    %v4273 = vsel %vm4251, %v4228, %v4229
    %v4274 = vsel %vm4251, %v4227, %v4228
    %v4275 = vsel %vm4251, %v4226, %v4227
    %v4276 = vsel %vm4251, %v4225, %v4226
    %v4277 = vsel %vm4251, %v4224, %v4225
    %v4278 = vsel %vm4251, %v4223, %v4224
    %v4279 = vsel %vm4251, %v4222, %v4223
    %v4280 = vsel %vm4251, %v4221, %v4222
    %v4281 = vsel %vm4251, %v4250, %v4221
    %v4282 = vadd.f32 %v4220, %v4280
    %v4283 = vadd.f32 %v4219, %v4279
    %v4284 = vadd.f32 %v4218, %v4278
    %v4285 = vadd.f32 %v4217, %v4277
    %v4286 = vadd.f32 %v4216, %v4276
    %v4287 = vadd.f32 %v4215, %v4275
    %v4288 = vadd.f32 %v4214, %v4274
    %v4289 = vadd.f32 %v4213, %v4273
    %v4290 = vadd.f32 %v4212, %v4272
    %v4291 = vadd.f32 %v4211, %v4271
    %v4292 = vadd.f32 %v4210, %v4270
    %v4293 = vadd.f32 %v4209, %v4269
    %v4294 = vadd.f32 %v4208, %v4268
    %v4295 = vadd.f32 %v4207, %v4267
    %v4296 = vadd.f32 %v4206, %v4266
    %v4297 = vadd.f32 %v4205, %v4265
    %v4298 = vadd.f32 %v4204, %v4264
    %v4299 = vadd.f32 %v4203, %v4263
    %v4300 = vadd.f32 %v4202, %v4262
    %v4301 = vadd.f32 %v4201, %v4261
    %v4302 = vadd.f32 %v4200, %v4260
    %v4303 = vadd.f32 %v4199, %v4259
    %v4304 = vadd.f32 %v4198, %v4258
    %v4305 = vadd.f32 %v4197, %v4257
    %v4306 = vadd.f32 %v4196, %v4256
    %v4307 = vadd.f32 %v4195, %v4255
    %v4308 = vadd.f32 %v4194, %v4254
    %v4309 = vadd.f32 %v4193, %v4253
    %v4310 = vadd.f32 %v4192, %v4252
    %v4311 = vadd.f32 %v4191, %v4281
    %v4312 = vmul.f32 %v4282, 0.10936069
    %v4313 = vmul.f32 %v4283, 0.10936069
    %v4314 = vmul.f32 %v4284, 0.10936069
    %v4315 = vmul.f32 %v4285, 0.10936069
    %v4316 = vmul.f32 %v4286, 0.10936069
    %v4317 = vmul.f32 %v4287, 0.10936069
    %v4318 = vmul.f32 %v4288, 0.10936069
    %v4319 = vmul.f32 %v4289, 0.10936069
    %v4320 = vmul.f32 %v4290, 0.10936069
    %v4321 = vmul.f32 %v4291, 0.10936069
    %v4322 = vmul.f32 %v4292, 0.10936069
    %v4323 = vmul.f32 %v4293, 0.10936069
    %v4324 = vmul.f32 %v4294, 0.10936069
    %v4325 = vmul.f32 %v4295, 0.10936069
    %v4326 = vmul.f32 %v4296, 0.10936069
    %v4327 = vmul.f32 %v4297, 0.10936069
    %v4328 = vmul.f32 %v4298, 0.10936069
    %v4329 = vmul.f32 %v4299, 0.10936069
    %v4330 = vmul.f32 %v4300, 0.10936069
    %v4331 = vmul.f32 %v4301, 0.10936069
    %v4332 = vmul.f32 %v4302, 0.10936069
    %v4333 = vmul.f32 %v4303, 0.10936069
    %v4334 = vmul.f32 %v4304, 0.10936069
    %v4335 = vmul.f32 %v4305, 0.10936069
    %v4336 = vmul.f32 %v4306, 0.10936069
    %v4337 = vmul.f32 %v4307, 0.10936069
    %v4338 = vmul.f32 %v4308, 0.10936069
    %v4339 = vmul.f32 %v4309, 0.10936069
    %v4340 = vmul.f32 %v4310, 0.10936069
    %v4341 = vmul.f32 %v4311, 0.10936069
    %v4342 = vadd.f32 %v4130, %v4312
    %v4343 = vadd.f32 %v4131, %v4313
    %v4344 = vadd.f32 %v4132, %v4314
    %v4345 = vadd.f32 %v4133, %v4315
    %v4346 = vadd.f32 %v4134, %v4316
    %v4347 = vadd.f32 %v4135, %v4317
    %v4348 = vadd.f32 %v4136, %v4318
    %v4349 = vadd.f32 %v4137, %v4319
    %v4350 = vadd.f32 %v4138, %v4320
    %v4351 = vadd.f32 %v4139, %v4321
    %v4352 = vadd.f32 %v4140, %v4322
    %v4353 = vadd.f32 %v4141, %v4323
    %v4354 = vadd.f32 %v4142, %v4324
    %v4355 = vadd.f32 %v4143, %v4325
    %v4356 = vadd.f32 %v4144, %v4326
    %v4357 = vadd.f32 %v4145, %v4327
    %v4358 = vadd.f32 %v4146, %v4328
    %v4359 = vadd.f32 %v4147, %v4329
    %v4360 = vadd.f32 %v4148, %v4330
    %v4361 = vadd.f32 %v4149, %v4331
    %v4362 = vadd.f32 %v4150, %v4332
    %v4363 = vadd.f32 %v4151, %v4333
    %v4364 = vadd.f32 %v4152, %v4334
    %v4365 = vadd.f32 %v4153, %v4335
    %v4366 = vadd.f32 %v4154, %v4336
    %v4367 = vadd.f32 %v4155, %v4337
    %v4368 = vadd.f32 %v4156, %v4338
    %v4369 = vadd.f32 %v4157, %v4339
    %v4370 = vadd.f32 %v4158, %v4340
    %v4371 = vadd.f32 %v4159, %v4341
    %v4372 = vrot.slane %v3772, 5
    %v4373 = vrot.slane %v3777, 5
    %v4374 = vrot.slane %v3782, 5
    %v4375 = vrot.slane %v3787, 5
    %v4376 = vrot.slane %v3792, 5
    %v4377 = vrot.slane %v3797, 5
    %v4378 = vrot.slane %v3802, 5
    %v4379 = vrot.slane %v3807, 5
    %v4380 = vrot.slane %v3812, 5
    %v4381 = vrot.slane %v3817, 5
    %v4382 = vrot.slane %v3822, 5
    %v4383 = vrot.slane %v3827, 5
    %v4384 = vrot.slane %v3832, 5
    %v4385 = vrot.slane %v3837, 5
    %v4386 = vrot.slane %v3842, 5
    %v4387 = vrot.slane %v3847, 5
    %v4388 = vrot.slane %v3852, 5
    %v4389 = vrot.slane %v3857, 5
    %v4390 = vrot.slane %v3862, 5
    %v4391 = vrot.slane %v3867, 5
    %v4392 = vrot.slane %v3872, 5
    %v4393 = vrot.slane %v3877, 5
    %v4394 = vrot.slane %v3882, 5
    %v4395 = vrot.slane %v3887, 5
    %v4396 = vrot.slane %v3892, 5
    %v4397 = vrot.slane %v3897, 5
    %v4398 = vrot.slane %v3902, 5
    %v4399 = vrot.slane %v3907, 5
    %v4400 = vrot.slane %v3912, 5
    %v4401 = vrot.slane %v3917, 5
    %v4402 = vsel %vm664, %v4400, %v4401
    %v4403 = vsel %vm664, %v4399, %v4400
    %v4404 = vsel %vm664, %v4398, %v4399
    %v4405 = vsel %vm664, %v4397, %v4398
    %v4406 = vsel %vm664, %v4396, %v4397
    %v4407 = vsel %vm664, %v4395, %v4396
    %v4408 = vsel %vm664, %v4394, %v4395
    %v4409 = vsel %vm664, %v4393, %v4394
    %v4410 = vsel %vm664, %v4392, %v4393
    %v4411 = vsel %vm664, %v4391, %v4392
    %v4412 = vsel %vm664, %v4390, %v4391
    %v4413 = vsel %vm664, %v4389, %v4390
    %v4414 = vsel %vm664, %v4388, %v4389
    %v4415 = vsel %vm664, %v4387, %v4388
    %v4416 = vsel %vm664, %v4386, %v4387
    %v4417 = vsel %vm664, %v4385, %v4386
    %v4418 = vsel %vm664, %v4384, %v4385
    %v4419 = vsel %vm664, %v4383, %v4384
    %v4420 = vsel %vm664, %v4382, %v4383
    %v4421 = vsel %vm664, %v4381, %v4382
    %v4422 = vsel %vm664, %v4380, %v4381
    %v4423 = vsel %vm664, %v4379, %v4380
    %v4424 = vsel %vm664, %v4378, %v4379
    %v4425 = vsel %vm664, %v4377, %v4378
    %v4426 = vsel %vm664, %v4376, %v4377
    %v4427 = vsel %vm664, %v4375, %v4376
    %v4428 = vsel %vm664, %v4374, %v4375
    %v4429 = vsel %vm664, %v4373, %v4374
    %v4430 = vsel %vm664, %v4372, %v4373
    %v4431 = vsel %vm664, %v4401, %v4372
    %v4432 = vrot.slane %v3772, 3
    %v4433 = vrot.slane %v3777, 3
    %v4434 = vrot.slane %v3782, 3
    %v4435 = vrot.slane %v3787, 3
    %v4436 = vrot.slane %v3792, 3
    %v4437 = vrot.slane %v3797, 3
    %v4438 = vrot.slane %v3802, 3
    %v4439 = vrot.slane %v3807, 3
    %v4440 = vrot.slane %v3812, 3
    %v4441 = vrot.slane %v3817, 3
    %v4442 = vrot.slane %v3822, 3
    %v4443 = vrot.slane %v3827, 3
    %v4444 = vrot.slane %v3832, 3
    %v4445 = vrot.slane %v3837, 3
    %v4446 = vrot.slane %v3842, 3
    %v4447 = vrot.slane %v3847, 3
    %v4448 = vrot.slane %v3852, 3
    %v4449 = vrot.slane %v3857, 3
    %v4450 = vrot.slane %v3862, 3
    %v4451 = vrot.slane %v3867, 3
    %v4452 = vrot.slane %v3872, 3
    %v4453 = vrot.slane %v3877, 3
    %v4454 = vrot.slane %v3882, 3
    %v4455 = vrot.slane %v3887, 3
    %v4456 = vrot.slane %v3892, 3
    %v4457 = vrot.slane %v3897, 3
    %v4458 = vrot.slane %v3902, 3
    %v4459 = vrot.slane %v3907, 3
    %v4460 = vrot.slane %v3912, 3
    %v4461 = vrot.slane %v3917, 3
    %v4462 = vsel %vm719, %v4460, %v4461
    %v4463 = vsel %vm719, %v4459, %v4460
    %v4464 = vsel %vm719, %v4458, %v4459
    %v4465 = vsel %vm719, %v4457, %v4458
    %v4466 = vsel %vm719, %v4456, %v4457
    %v4467 = vsel %vm719, %v4455, %v4456
    %v4468 = vsel %vm719, %v4454, %v4455
    %v4469 = vsel %vm719, %v4453, %v4454
    %v4470 = vsel %vm719, %v4452, %v4453
    %v4471 = vsel %vm719, %v4451, %v4452
    %v4472 = vsel %vm719, %v4450, %v4451
    %v4473 = vsel %vm719, %v4449, %v4450
    %v4474 = vsel %vm719, %v4448, %v4449
    %v4475 = vsel %vm719, %v4447, %v4448
    %v4476 = vsel %vm719, %v4446, %v4447
    %v4477 = vsel %vm719, %v4445, %v4446
    %v4478 = vsel %vm719, %v4444, %v4445
    %v4479 = vsel %vm719, %v4443, %v4444
    %v4480 = vsel %vm719, %v4442, %v4443
    %v4481 = vsel %vm719, %v4441, %v4442
    %v4482 = vsel %vm719, %v4440, %v4441
    %v4483 = vsel %vm719, %v4439, %v4440
    %v4484 = vsel %vm719, %v4438, %v4439
    %v4485 = vsel %vm719, %v4437, %v4438
    %v4486 = vsel %vm719, %v4436, %v4437
    %v4487 = vsel %vm719, %v4435, %v4436
    %v4488 = vsel %vm719, %v4434, %v4435
    %v4489 = vsel %vm719, %v4433, %v4434
    %v4490 = vsel %vm719, %v4432, %v4433
    %v4491 = vsel %vm719, %v4461, %v4432
    %v4492 = vadd.f32 %v4431, %v4490
    %v4493 = vadd.f32 %v4430, %v4489
    %v4494 = vadd.f32 %v4429, %v4488
    %v4495 = vadd.f32 %v4428, %v4487
    %v4496 = vadd.f32 %v4427, %v4486
    %v4497 = vadd.f32 %v4426, %v4485
    %v4498 = vadd.f32 %v4425, %v4484
    %v4499 = vadd.f32 %v4424, %v4483
    %v4500 = vadd.f32 %v4423, %v4482
    %v4501 = vadd.f32 %v4422, %v4481
    %v4502 = vadd.f32 %v4421, %v4480
    %v4503 = vadd.f32 %v4420, %v4479
    %v4504 = vadd.f32 %v4419, %v4478
    %v4505 = vadd.f32 %v4418, %v4477
    %v4506 = vadd.f32 %v4417, %v4476
    %v4507 = vadd.f32 %v4416, %v4475
    %v4508 = vadd.f32 %v4415, %v4474
    %v4509 = vadd.f32 %v4414, %v4473
    %v4510 = vadd.f32 %v4413, %v4472
    %v4511 = vadd.f32 %v4412, %v4471
    %v4512 = vadd.f32 %v4411, %v4470
    %v4513 = vadd.f32 %v4410, %v4469
    %v4514 = vadd.f32 %v4409, %v4468
    %v4515 = vadd.f32 %v4408, %v4467
    %v4516 = vadd.f32 %v4407, %v4466
    %v4517 = vadd.f32 %v4406, %v4465
    %v4518 = vadd.f32 %v4405, %v4464
    %v4519 = vadd.f32 %v4404, %v4463
    %v4520 = vadd.f32 %v4403, %v4462
    %v4521 = vadd.f32 %v4402, %v4491
    %v4522 = vmul.f32 %v4492, 0.036000773
    %v4523 = vmul.f32 %v4493, 0.036000773
    %v4524 = vmul.f32 %v4494, 0.036000773
    %v4525 = vmul.f32 %v4495, 0.036000773
    %v4526 = vmul.f32 %v4496, 0.036000773
    %v4527 = vmul.f32 %v4497, 0.036000773
    %v4528 = vmul.f32 %v4498, 0.036000773
    %v4529 = vmul.f32 %v4499, 0.036000773
    %v4530 = vmul.f32 %v4500, 0.036000773
    %v4531 = vmul.f32 %v4501, 0.036000773
    %v4532 = vmul.f32 %v4502, 0.036000773
    %v4533 = vmul.f32 %v4503, 0.036000773
    %v4534 = vmul.f32 %v4504, 0.036000773
    %v4535 = vmul.f32 %v4505, 0.036000773
    %v4536 = vmul.f32 %v4506, 0.036000773
    %v4537 = vmul.f32 %v4507, 0.036000773
    %v4538 = vmul.f32 %v4508, 0.036000773
    %v4539 = vmul.f32 %v4509, 0.036000773
    %v4540 = vmul.f32 %v4510, 0.036000773
    %v4541 = vmul.f32 %v4511, 0.036000773
    %v4542 = vmul.f32 %v4512, 0.036000773
    %v4543 = vmul.f32 %v4513, 0.036000773
    %v4544 = vmul.f32 %v4514, 0.036000773
    %v4545 = vmul.f32 %v4515, 0.036000773
    %v4546 = vmul.f32 %v4516, 0.036000773
    %v4547 = vmul.f32 %v4517, 0.036000773
    %v4548 = vmul.f32 %v4518, 0.036000773
    %v4549 = vmul.f32 %v4519, 0.036000773
    %v4550 = vmul.f32 %v4520, 0.036000773
    %v4551 = vmul.f32 %v4521, 0.036000773
    %v4552 = vadd.f32 %v4342, %v4522
    %v4553 = vadd.f32 %v4343, %v4523
    %v4554 = vadd.f32 %v4344, %v4524
    %v4555 = vadd.f32 %v4345, %v4525
    %v4556 = vadd.f32 %v4346, %v4526
    %v4557 = vadd.f32 %v4347, %v4527
    %v4558 = vadd.f32 %v4348, %v4528
    %v4559 = vadd.f32 %v4349, %v4529
    %v4560 = vadd.f32 %v4350, %v4530
    %v4561 = vadd.f32 %v4351, %v4531
    %v4562 = vadd.f32 %v4352, %v4532
    %v4563 = vadd.f32 %v4353, %v4533
    %v4564 = vadd.f32 %v4354, %v4534
    %v4565 = vadd.f32 %v4355, %v4535
    %v4566 = vadd.f32 %v4356, %v4536
    %v4567 = vadd.f32 %v4357, %v4537
    %v4568 = vadd.f32 %v4358, %v4538
    %v4569 = vadd.f32 %v4359, %v4539
    %v4570 = vadd.f32 %v4360, %v4540
    %v4571 = vadd.f32 %v4361, %v4541
    %v4572 = vadd.f32 %v4362, %v4542
    %v4573 = vadd.f32 %v4363, %v4543
    %v4574 = vadd.f32 %v4364, %v4544
    %v4575 = vadd.f32 %v4365, %v4545
    %v4576 = vadd.f32 %v4366, %v4546
    %v4577 = vadd.f32 %v4367, %v4547
    %v4578 = vadd.f32 %v4368, %v4548
    %v4579 = vadd.f32 %v4369, %v4549
    %v4580 = vadd.f32 %v4370, %v4550
    %v4581 = vadd.f32 %v4371, %v4551
    %v4582 = vrot.slane %v3772, 4
    %v4583 = vrot.slane %v3777, 4
    %v4584 = vrot.slane %v3782, 4
    %v4585 = vrot.slane %v3787, 4
    %v4586 = vrot.slane %v3792, 4
    %v4587 = vrot.slane %v3797, 4
    %v4588 = vrot.slane %v3802, 4
    %v4589 = vrot.slane %v3807, 4
    %v4590 = vrot.slane %v3812, 4
    %v4591 = vrot.slane %v3817, 4
    %v4592 = vrot.slane %v3822, 4
    %v4593 = vrot.slane %v3827, 4
    %v4594 = vrot.slane %v3832, 4
    %v4595 = vrot.slane %v3837, 4
    %v4596 = vrot.slane %v3842, 4
    %v4597 = vrot.slane %v3847, 4
    %v4598 = vrot.slane %v3852, 4
    %v4599 = vrot.slane %v3857, 4
    %v4600 = vrot.slane %v3862, 4
    %v4601 = vrot.slane %v3867, 4
    %v4602 = vrot.slane %v3872, 4
    %v4603 = vrot.slane %v3877, 4
    %v4604 = vrot.slane %v3882, 4
    %v4605 = vrot.slane %v3887, 4
    %v4606 = vrot.slane %v3892, 4
    %v4607 = vrot.slane %v3897, 4
    %v4608 = vrot.slane %v3902, 4
    %v4609 = vrot.slane %v3907, 4
    %v4610 = vrot.slane %v3912, 4
    %v4611 = vrot.slane %v3917, 4
    %vm4612 = vcmp.lt.s32.totalorder %v130, 4
    %v4613 = vsel %vm4612, %v4610, %v4611
    %v4614 = vsel %vm4612, %v4609, %v4610
    %v4615 = vsel %vm4612, %v4608, %v4609
    %v4616 = vsel %vm4612, %v4607, %v4608
    %v4617 = vsel %vm4612, %v4606, %v4607
    %v4618 = vsel %vm4612, %v4605, %v4606
    %v4619 = vsel %vm4612, %v4604, %v4605
    %v4620 = vsel %vm4612, %v4603, %v4604
    %v4621 = vsel %vm4612, %v4602, %v4603
    %v4622 = vsel %vm4612, %v4601, %v4602
    %v4623 = vsel %vm4612, %v4600, %v4601
    %v4624 = vsel %vm4612, %v4599, %v4600
    %v4625 = vsel %vm4612, %v4598, %v4599
    %v4626 = vsel %vm4612, %v4597, %v4598
    %v4627 = vsel %vm4612, %v4596, %v4597
    %v4628 = vsel %vm4612, %v4595, %v4596
    %v4629 = vsel %vm4612, %v4594, %v4595
    %v4630 = vsel %vm4612, %v4593, %v4594
    %v4631 = vsel %vm4612, %v4592, %v4593
    %v4632 = vsel %vm4612, %v4591, %v4592
    %v4633 = vsel %vm4612, %v4590, %v4591
    %v4634 = vsel %vm4612, %v4589, %v4590
    %v4635 = vsel %vm4612, %v4588, %v4589
    %v4636 = vsel %vm4612, %v4587, %v4588
    %v4637 = vsel %vm4612, %v4586, %v4587
    %v4638 = vsel %vm4612, %v4585, %v4586
    %v4639 = vsel %vm4612, %v4584, %v4585
    %v4640 = vsel %vm4612, %v4583, %v4584
    %v4641 = vsel %vm4612, %v4582, %v4583
    %v4642 = vsel %vm4612, %v4611, %v4582
    %v4643 = vadd.f32 %v4642, %v4641
    %v4644 = vadd.f32 %v4641, %v4640
    %v4645 = vadd.f32 %v4640, %v4639
    %v4646 = vadd.f32 %v4639, %v4638
    %v4647 = vadd.f32 %v4638, %v4637
    %v4648 = vadd.f32 %v4637, %v4636
    %v4649 = vadd.f32 %v4636, %v4635
    %v4650 = vadd.f32 %v4635, %v4634
    %v4651 = vadd.f32 %v4634, %v4633
    %v4652 = vadd.f32 %v4633, %v4632
    %v4653 = vadd.f32 %v4632, %v4631
    %v4654 = vadd.f32 %v4631, %v4630
    %v4655 = vadd.f32 %v4630, %v4629
    %v4656 = vadd.f32 %v4629, %v4628
    %v4657 = vadd.f32 %v4628, %v4627
    %v4658 = vadd.f32 %v4627, %v4626
    %v4659 = vadd.f32 %v4626, %v4625
    %v4660 = vadd.f32 %v4625, %v4624
    %v4661 = vadd.f32 %v4624, %v4623
    %v4662 = vadd.f32 %v4623, %v4622
    %v4663 = vadd.f32 %v4622, %v4621
    %v4664 = vadd.f32 %v4621, %v4620
    %v4665 = vadd.f32 %v4620, %v4619
    %v4666 = vadd.f32 %v4619, %v4618
    %v4667 = vadd.f32 %v4618, %v4617
    %v4668 = vadd.f32 %v4617, %v4616
    %v4669 = vadd.f32 %v4616, %v4615
    %v4670 = vadd.f32 %v4615, %v4614
    %v4671 = vadd.f32 %v4614, %v4613
    %v4672 = vadd.f32 %v4613, %v4642
    %v4673 = vmul.f32 %v4643, 0.007598758
    %v4674 = vmul.f32 %v4644, 0.007598758
    %v4675 = vmul.f32 %v4645, 0.007598758
    %v4676 = vmul.f32 %v4646, 0.007598758
    %v4677 = vmul.f32 %v4647, 0.007598758
    %v4678 = vmul.f32 %v4648, 0.007598758
    %v4679 = vmul.f32 %v4649, 0.007598758
    %v4680 = vmul.f32 %v4650, 0.007598758
    %v4681 = vmul.f32 %v4651, 0.007598758
    %v4682 = vmul.f32 %v4652, 0.007598758
    %v4683 = vmul.f32 %v4653, 0.007598758
    %v4684 = vmul.f32 %v4654, 0.007598758
    %v4685 = vmul.f32 %v4655, 0.007598758
    %v4686 = vmul.f32 %v4656, 0.007598758
    %v4687 = vmul.f32 %v4657, 0.007598758
    %v4688 = vmul.f32 %v4658, 0.007598758
    %v4689 = vmul.f32 %v4659, 0.007598758
    %v4690 = vmul.f32 %v4660, 0.007598758
    %v4691 = vmul.f32 %v4661, 0.007598758
    %v4692 = vmul.f32 %v4662, 0.007598758
    %v4693 = vmul.f32 %v4663, 0.007598758
    %v4694 = vmul.f32 %v4664, 0.007598758
    %v4695 = vmul.f32 %v4665, 0.007598758
    %v4696 = vmul.f32 %v4666, 0.007598758
    %v4697 = vmul.f32 %v4667, 0.007598758
    %v4698 = vmul.f32 %v4668, 0.007598758
    %v4699 = vmul.f32 %v4669, 0.007598758
    %v4700 = vmul.f32 %v4670, 0.007598758
    %v4701 = vmul.f32 %v4671, 0.007598758
    %v4702 = vmul.f32 %v4672, 0.007598758
    %v4703 = vadd.f32 %v4552, %v4673
    %v4704 = vadd.f32 %v4553, %v4674
    %v4705 = vadd.f32 %v4554, %v4675
    %v4706 = vadd.f32 %v4555, %v4676
    %v4707 = vadd.f32 %v4556, %v4677
    %v4708 = vadd.f32 %v4557, %v4678
    %v4709 = vadd.f32 %v4558, %v4679
    %v4710 = vadd.f32 %v4559, %v4680
    %v4711 = vadd.f32 %v4560, %v4681
    %v4712 = vadd.f32 %v4561, %v4682
    %v4713 = vadd.f32 %v4562, %v4683
    %v4714 = vadd.f32 %v4563, %v4684
    %v4715 = vadd.f32 %v4564, %v4685
    %v4716 = vadd.f32 %v4565, %v4686
    %v4717 = vadd.f32 %v4566, %v4687
    %v4718 = vadd.f32 %v4567, %v4688
    %v4719 = vadd.f32 %v4568, %v4689
    %v4720 = vadd.f32 %v4569, %v4690
    %v4721 = vadd.f32 %v4570, %v4691
    %v4722 = vadd.f32 %v4571, %v4692
    %v4723 = vadd.f32 %v4572, %v4693
    %v4724 = vadd.f32 %v4573, %v4694
    %v4725 = vadd.f32 %v4574, %v4695
    %v4726 = vadd.f32 %v4575, %v4696
    %v4727 = vadd.f32 %v4576, %v4697
    %v4728 = vadd.f32 %v4577, %v4698
    %v4729 = vadd.f32 %v4578, %v4699
    %v4730 = vadd.f32 %v4579, %v4700
    %v4731 = vadd.f32 %v4580, %v4701
    %v4732 = vadd.f32 %v4581, %v4702
    %v4733 = vadd.f32 %v4491, %v4430
    %v4734 = vadd.f32 %v4490, %v4429
    %v4735 = vadd.f32 %v4489, %v4428
    %v4736 = vadd.f32 %v4488, %v4427
    %v4737 = vadd.f32 %v4487, %v4426
    %v4738 = vadd.f32 %v4486, %v4425
    %v4739 = vadd.f32 %v4485, %v4424
    %v4740 = vadd.f32 %v4484, %v4423
    %v4741 = vadd.f32 %v4483, %v4422
    %v4742 = vadd.f32 %v4482, %v4421
    %v4743 = vadd.f32 %v4481, %v4420
    %v4744 = vadd.f32 %v4480, %v4419
    %v4745 = vadd.f32 %v4479, %v4418
    %v4746 = vadd.f32 %v4478, %v4417
    %v4747 = vadd.f32 %v4477, %v4416
    %v4748 = vadd.f32 %v4476, %v4415
    %v4749 = vadd.f32 %v4475, %v4414
    %v4750 = vadd.f32 %v4474, %v4413
    %v4751 = vadd.f32 %v4473, %v4412
    %v4752 = vadd.f32 %v4472, %v4411
    %v4753 = vadd.f32 %v4471, %v4410
    %v4754 = vadd.f32 %v4470, %v4409
    %v4755 = vadd.f32 %v4469, %v4408
    %v4756 = vadd.f32 %v4468, %v4407
    %v4757 = vadd.f32 %v4467, %v4406
    %v4758 = vadd.f32 %v4466, %v4405
    %v4759 = vadd.f32 %v4465, %v4404
    %v4760 = vadd.f32 %v4464, %v4403
    %v4761 = vadd.f32 %v4463, %v4402
    %v4762 = vadd.f32 %v4462, %v4431
    %v4763 = vmul.f32 %v4733, 0.0010283801
    %v4764 = vmul.f32 %v4734, 0.0010283801
    %v4765 = vmul.f32 %v4735, 0.0010283801
    %v4766 = vmul.f32 %v4736, 0.0010283801
    %v4767 = vmul.f32 %v4737, 0.0010283801
    %v4768 = vmul.f32 %v4738, 0.0010283801
    %v4769 = vmul.f32 %v4739, 0.0010283801
    %v4770 = vmul.f32 %v4740, 0.0010283801
    %v4771 = vmul.f32 %v4741, 0.0010283801
    %v4772 = vmul.f32 %v4742, 0.0010283801
    %v4773 = vmul.f32 %v4743, 0.0010283801
    %v4774 = vmul.f32 %v4744, 0.0010283801
    %v4775 = vmul.f32 %v4745, 0.0010283801
    %v4776 = vmul.f32 %v4746, 0.0010283801
    %v4777 = vmul.f32 %v4747, 0.0010283801
    %v4778 = vmul.f32 %v4748, 0.0010283801
    %v4779 = vmul.f32 %v4749, 0.0010283801
    %v4780 = vmul.f32 %v4750, 0.0010283801
    %v4781 = vmul.f32 %v4751, 0.0010283801
    %v4782 = vmul.f32 %v4752, 0.0010283801
    %v4783 = vmul.f32 %v4753, 0.0010283801
    %v4784 = vmul.f32 %v4754, 0.0010283801
    %v4785 = vmul.f32 %v4755, 0.0010283801
    %v4786 = vmul.f32 %v4756, 0.0010283801
    %v4787 = vmul.f32 %v4757, 0.0010283801
    %v4788 = vmul.f32 %v4758, 0.0010283801
    %v4789 = vmul.f32 %v4759, 0.0010283801
    %v4790 = vmul.f32 %v4760, 0.0010283801
    %v4791 = vmul.f32 %v4761, 0.0010283801
    %v4792 = vmul.f32 %v4762, 0.0010283801
    %v4793 = vadd.f32 %v4703, %v4763
    %v4794 = vadd.f32 %v4704, %v4764
    %v4795 = vadd.f32 %v4705, %v4765
    %v4796 = vadd.f32 %v4706, %v4766
    %v4797 = vadd.f32 %v4707, %v4767
    %v4798 = vadd.f32 %v4708, %v4768
    %v4799 = vadd.f32 %v4709, %v4769
    %v4800 = vadd.f32 %v4710, %v4770
    %v4801 = vadd.f32 %v4711, %v4771
    %v4802 = vadd.f32 %v4712, %v4772
    %v4803 = vadd.f32 %v4713, %v4773
    %v4804 = vadd.f32 %v4714, %v4774
    %v4805 = vadd.f32 %v4715, %v4775
    %v4806 = vadd.f32 %v4716, %v4776
    %v4807 = vadd.f32 %v4717, %v4777
    %v4808 = vadd.f32 %v4718, %v4778
    %v4809 = vadd.f32 %v4719, %v4779
    %v4810 = vadd.f32 %v4720, %v4780
    %v4811 = vadd.f32 %v4721, %v4781
    %v4812 = vadd.f32 %v4722, %v4782
    %v4813 = vadd.f32 %v4723, %v4783
    %v4814 = vadd.f32 %v4724, %v4784
    %v4815 = vadd.f32 %v4725, %v4785
    %v4816 = vadd.f32 %v4726, %v4786
    %v4817 = vadd.f32 %v4727, %v4787
    %v4818 = vadd.f32 %v4728, %v4788
    %v4819 = vadd.f32 %v4729, %v4789
    %v4820 = vadd.f32 %v4730, %v4790
    %v4821 = vadd.f32 %v4731, %v4791
    %v4822 = vadd.f32 %v4732, %v4792
    %v4823 = vmul.f32 %v4793, %v4793
    %v4824 = vmul.f32 %v4794, %v4794
    %v4825 = vmul.f32 %v4795, %v4795
    %v4826 = vmul.f32 %v4796, %v4796
    %v4827 = vmul.f32 %v4797, %v4797
    %v4828 = vmul.f32 %v4798, %v4798
    %v4829 = vsub.f32 %v4805, %v4823
    %v4830 = vsub.f32 %v4806, %v4824
    %v4831 = vsub.f32 %v4807, %v4825
    %v4832 = vsub.f32 %v4808, %v4826
    %v4833 = vsub.f32 %v4809, %v4827
    %v4834 = vsub.f32 %v4810, %v4828
    %v4835 = vmul.f32 %v4799, %v4799
    %v4836 = vmul.f32 %v4800, %v4800
    %v4837 = vmul.f32 %v4801, %v4801
    %v4838 = vmul.f32 %v4802, %v4802
    %v4839 = vmul.f32 %v4803, %v4803
    %v4840 = vmul.f32 %v4804, %v4804
    %v4841 = vsub.f32 %v4811, %v4835
    %v4842 = vsub.f32 %v4812, %v4836
    %v4843 = vsub.f32 %v4813, %v4837
    %v4844 = vsub.f32 %v4814, %v4838
    %v4845 = vsub.f32 %v4815, %v4839
    %v4846 = vsub.f32 %v4816, %v4840
    %v4847 = vmul.f32 %v4793, %v4799
    %v4848 = vmul.f32 %v4794, %v4800
    %v4849 = vmul.f32 %v4795, %v4801
    %v4850 = vmul.f32 %v4796, %v4802
    %v4851 = vmul.f32 %v4797, %v4803
    %v4852 = vmul.f32 %v4798, %v4804
    %v4853 = vsub.f32 %v4817, %v4847
    %v4854 = vsub.f32 %v4818, %v4848
    %v4855 = vsub.f32 %v4819, %v4849
    %v4856 = vsub.f32 %v4820, %v4850
    %v4857 = vsub.f32 %v4821, %v4851
    %v4858 = vsub.f32 %v4822, %v4852
    %v4859 = vmul.f32 %v4853, 2.0
    %v4860 = vmul.f32 %v4854, 2.0
    %v4861 = vmul.f32 %v4855, 2.0
    %v4862 = vmul.f32 %v4856, 2.0
    %v4863 = vmul.f32 %v4857, 2.0
    %v4864 = vmul.f32 %v4858, 2.0
    %v4865 = vadd.f32 %v4859, 58.5225
    %v4866 = vadd.f32 %v4860, 58.5225
    %v4867 = vadd.f32 %v4861, 58.5225
    %v4868 = vadd.f32 %v4862, 58.5225
    %v4869 = vadd.f32 %v4863, 58.5225
    %v4870 = vadd.f32 %v4864, 58.5225
    %v4871 = vadd.f32 %v4829, %v4841
    %v4872 = vadd.f32 %v4830, %v4842
    %v4873 = vadd.f32 %v4831, %v4843
    %v4874 = vadd.f32 %v4832, %v4844
    %v4875 = vadd.f32 %v4833, %v4845
    %v4876 = vadd.f32 %v4834, %v4846
    %v4877 = vadd.f32 %v4871, 58.5225
    %v4878 = vadd.f32 %v4872, 58.5225
    %v4879 = vadd.f32 %v4873, 58.5225
    %v4880 = vadd.f32 %v4874, 58.5225
    %v4881 = vadd.f32 %v4875, 58.5225
    %v4882 = vadd.f32 %v4876, 58.5225
    %v4883 = vrcp.pop %v4877
    %v4884 = vrcp.pop %v4878
    %v4885 = vrcp.pop %v4879
    %v4886 = vrcp.pop %v4880
    %v4887 = vrcp.pop %v4881
    %v4888 = vrcp.pop %v4882
    %v4889 = vmul.f32 %v4865, %v4883
    %v4890 = vmul.f32 %v4866, %v4884
    %v4891 = vmul.f32 %v4867, %v4885
    %v4892 = vmul.f32 %v4868, %v4886
    %v4893 = vmul.f32 %v4869, %v4887
    %v4894 = vmul.f32 %v4870, %v4888
    %v4895 = vsel %vm375, %v4889, 0.0
    %v4896 = vsel %vm376, %v4890, 0.0
    %v4897 = vsel %vm377, %v4891, 0.0
    %v4898 = vsel %vm378, %v4892, 0.0
    %v4899 = vsel %vm379, %v4893, 0.0
    %v4900 = vsel %vm380, %v4894, 0.0
    %v4901 = vadd.f32 %v4895, %v4896
    %v4902 = vadd.f32 %v4901, %v4897
    %v4903 = vadd.f32 %v4902, %v4898
    %v4904 = vadd.f32 %v4903, %v4899
    %v4905 = vadd.f32 %v4904, %v4900
    %4906 = vadd.xlane.f32.xlu0 %v4905
    %v4907 = vpop.xlane.xlu0 %4906
    %v4908 = vrot.slane %v4907, 4
    %v4909 = vadd.f32 %v4907, %v4908
    %v4910 = vrot.slane %v4909, 2
    %v4911 = vadd.f32 %v4909, %v4910
    %v4912 = vrot.slane %v4911, 1
    %v4913 = vadd.f32 %v4911, %v4912
    %s4914 = vtos %v4913
    %s4915 = smul.f32 %s4914, 0.0009765625
    %s4916 = scalar_lea.smem [#allocation11], 0
    %4917 = sst [smem:[%s4916]] %s4915
    // Predicated region
    $region34: #{tpu_custom_call.1} parent=1 // pred_check
      _
    $region35: #{tpu_custom_call.1} parent=1 // pred_check_branch
      %4919 = sbr.rel (0) target = $region37
    $region36: #{tpu_custom_call.1} parent=1 // pred_region
      %s4921 = ssub.s32 16, 16
      %4922 = vsyncadd [#allocation5], %s4921
      %4925 = dma.smem_to_hbm [#allocation11], 16, %s4, [#allocation5]
    $region37: #{tpu_custom_call.1} parent=1 // pred_fallthru
      _
    // Predicated region
    $region38: #{tpu_custom_call.1} parent=1 // pred_check
      _
    $region39: #{tpu_custom_call.1} parent=1 // pred_check_branch
      %4927 = sbr.rel (0) target = $region41
    $region40: #{tpu_custom_call.1} parent=1 // pred_region
      %4928 = dma.done [#allocation5], 16
    $region41: #{tpu_custom_call.1} parent=1 // pred_fallthru
      _
    %4929 = sfence
    %4930 = vsyncpa [#allocation4], 1
    %4931 = vsyncpa [#allocation7], 1
    %4932 = vsyncpa [#allocation10], 1
    %4933 = vsyncpa [#allocation5], 1

</llo_original>
